<compile_context>
chip_gen: v6e
topology: v6e:2x2x1
jax: 0.10.0
libtpu: 0.0.40
codegen_flags: <defaults>
</compile_context>

<pallas_src>
import numpy as np
import jax
import jax.numpy as jnp
from jax.experimental import pallas as pl
from jax.experimental.pallas import tpu as pltpu

DT = jnp.float32
BF = jnp.bfloat16

REF_SIZE = 32          # MODNet ref_size (512 in the reference; shrunk for toy shapes)
OUTPUT_SIZE_S2 = 64    # args.output_size_s2
HIDDEN = 8             # local_encoder output channels (aligned_target_volume)

_SMEM = pl.BlockSpec(memory_space=pltpu.MemorySpace.SMEM)


# ----------------------------------------------------------------------------
# Generation-aware VMEM budgeting
# ----------------------------------------------------------------------------

def _vmem_budget_bytes():
    """Per-grid-step working-set budget (double-buffered blocks), derived from
    the actual chip so v7x (64 MiB) is not tiled like v6e (128 MiB)."""
    try:
        cap = int(pltpu.get_tpu_info().vmem_capacity_bytes)
    except Exception:
        cap = 64 << 20                                   # v7x-safe default
    return int(min(24 << 20, max(8 << 20, cap // 4)))


_BUDGET = _vmem_budget_bytes()
_VMEM_LIMIT = int(min(100 << 20, 3 * _BUDGET))


def _cparams(sem):
    return pltpu.CompilerParams(dimension_semantics=sem,
                                vmem_limit_bytes=_VMEM_LIMIT)


# ----------------------------------------------------------------------------
# Interpolation matrices (glue, built host-side with numpy at trace time)
# ----------------------------------------------------------------------------

def bilinear_matrix(out_size, in_size):
    """PyTorch F.interpolate(mode='bilinear', align_corners=False) as a matrix."""
    scale = in_size / out_size
    i = np.arange(out_size)
    src = np.maximum(scale * (i + 0.5) - 0.5, 0.0)
    i0 = np.minimum(np.floor(src).astype(np.int64), in_size - 1)
    i1 = np.minimum(i0 + 1, in_size - 1)
    w1 = src - i0
    w0 = 1.0 - w1
    m = np.zeros((out_size, in_size), np.float32)
    m[i, i0] += w0
    m[i, i1] += w1
    return m


def area_matrix(out_size, in_size):
    """PyTorch F.interpolate(mode='area') == adaptive_avg_pool as a matrix."""
    m = np.zeros((out_size, in_size), np.float32)
    for i in range(out_size):
        start = (i * in_size) // out_size
        end = -((-(i + 1) * in_size) // out_size)  # ceil
        m[i, start:end] = 1.0 / (end - start)
    return m


# ----------------------------------------------------------------------------
# Tiling helpers
# ----------------------------------------------------------------------------

def _plane_view(h, w):
    """Lane-dense view of an (H, W) plane: (H*W/128, 128) when possible."""
    hw = h * w
    if hw % 128 == 0:
        return hw // 128, 128
    return h, w


def _pick_rows(s, l, n_planes, n_batch):
    """Sublane-row tile: as large as the VMEM budget allows, multiple of 8 (or
    full), and never collapsing the grid to a single step (v7x megacore)."""
    per_row = 2 * n_planes * l * 4                     # double-buffered f32
    st = max(1, min(s, _BUDGET // max(per_row, 1)))
    if st < s:
        st = max(8, (st // 8) * 8)
    if n_batch * pl.cdiv(s, st) < 2 and s >= 16:
        st = max(8, ((s // 2) // 8) * 8)
    return min(st, s)


def _pick_planes(b, hi, wi, ho, wo):
    """Plane-block size for the resize kernel: VMEM budgeted, >= 2 grid steps,
    and a divisor of the total plane count."""
    per_plane = 8 * (hi * wi + ho * wo + hi * wo + ho * wi)
    bt = max(1, min(b, _BUDGET // max(per_plane, 1)))
    if b >= 2:
        bt = min(bt, pl.cdiv(b, 2))
    while b % bt:
        bt -= 1
    return bt


def _swap_minor(x):
    """Swap the two minor dims of a rank-3 value (lane-layout aware)."""
    try:
        return pltpu.einshape("bhw->bwh", x)
    except Exception:                                  # pragma: no cover
        return jnp.swapaxes(x, 1, 2)


# ----------------------------------------------------------------------------
# Pallas kernels
# ----------------------------------------------------------------------------

def _matte_kernel(x_ref, w_ref, b_ref, o_ref):
    """sigmoid(1x1 conv Cin->1) as VPU FMAs; normalization pre-folded in (w, b).
    x: (1, Cin, S, 128) VMEM (lane-dense plane view); w: (Cin, 1), b: (1,) SMEM."""
    cin = x_ref.shape[1]
    acc = x_ref[0, 0] * w_ref[0, 0]
    for c in range(1, cin):
        acc = acc + x_ref[0, c] * w_ref[c, 0]
    o_ref[0, 0] = jax.nn.sigmoid(acc + b_ref[0])


def _make_resize_kernel(w_first):
    """Separable resize of a block of planes via two flattened bf16 MXU matmuls.
    x: (bt, hi, wi); mht: (hi, ho); mwt: (wi, wo); o: (bt, ho, wo)."""
    def kernel(x_ref, mht_ref, mwt_ref, o_ref):
        bt, hi, wi = x_ref.shape
        ho = mht_ref.shape[1]
        wo = mwt_ref.shape[1]
        x = x_ref[...].astype(BF)
        if w_first:
            # W pass: (bt*hi, wi) @ (wi, wo) — plane index fills the M dim.
            t = jnp.dot(x.reshape(bt * hi, wi), mwt_ref[...],
                        preferred_element_type=jnp.float32)           # (bt*hi, wo)
            t = _swap_minor(t.reshape(bt, hi, wo))                     # (bt, wo, hi)
            # H pass: (bt*wo, hi) @ (hi, ho)
            y = jnp.dot(t.astype(BF).reshape(bt * wo, hi), mht_ref[...],
                        preferred_element_type=jnp.float32)           # (bt*wo, ho)
            y = _swap_minor(y.reshape(bt, wo, ho))                     # (bt, ho, wo)
        else:
            t = _swap_minor(x)                                         # (bt, wi, hi)
            t = jnp.dot(t.reshape(bt * wi, hi), mht_ref[...],
                        preferred_element_type=jnp.float32)           # (bt*wi, ho)
            t = _swap_minor(t.reshape(bt, wi, ho))                     # (bt, ho, wi)
            y = jnp.dot(t.astype(BF).reshape(bt * ho, wi), mwt_ref[...],
                        preferred_element_type=jnp.float32)           # (bt*ho, wo)
            y = y.reshape(bt, ho, wo)
        o_ref[...] = y.astype(o_ref.dtype)
    return kernel


def _sep_resize_2d(plane, mh, mwt):
    """In-kernel 2-D separable resize mh @ plane @ mwt; pass order picked to
    contract through the smaller intermediate; bf16 operands, f32 accumulation."""
    hi, wi = plane.shape
    ho, wo = mh.shape[0], mwt.shape[1]
    p = plane.astype(BF)
    if hi * wi * wo + ho * hi * wo <= ho * hi * wi + ho * wi * wo:
        t = jnp.dot(p, mwt, preferred_element_type=jnp.float32)
        return jnp.dot(mh, t.astype(BF), preferred_element_type=jnp.float32)
    t = jnp.dot(mh, p, preferred_element_type=jnp.float32)
    return jnp.dot(t.astype(BF), mwt, preferred_element_type=jnp.float32)


def _make_mask_tail_kernel(do_resize):
    """Fused output_size_s2 branch of forward(), one image per grid step:
       matte     = area_up(sigmoid(area_dn(1x1 conv(img))))   # MODNet stand-in
       face_mask = sigmoid(1x1 conv(img))                     # FaceParsing stand-in
       vol       = relu(1x1 conv(img * matte))                # local_encoder stand-in
       add       = tanh(1x1 conv(vol))                        # decoder stand-in
       ffhq      = clamp(img + add * (matte * face_mask), 0, 1)
    The MODNet 1x1 conv is applied *before* the area downscale (both are
    linear, so they commute exactly), halving the resize matmul work."""
    def kernel(img_ref, mw, mb, dnh_ref, dnwt_ref, uph_ref, upwt_ref,
               fw, fb, ew, eb, dw, db, o_ref):
        cin = img_ref.shape[1]
        hidden = ew.shape[1]
        cout = dw.shape[1]
        x = [img_ref[0, c] for c in range(cin)]              # (H, W) planes

        # --- matte (MODNet stand-in; normalization folded into mw/mb) -------
        z = x[0] * mw[0, 0]
        for c in range(1, cin):
            z = z + x[c] * mw[c, 0]
        z = z + mb[0]
        if do_resize:
            z = _sep_resize_2d(z, dnh_ref[...], dnwt_ref[...])
        m = jax.nn.sigmoid(z)
        if do_resize:
            m = _sep_resize_2d(m, uph_ref[...], upwt_ref[...])

        # --- face mask (FaceParsing stand-in), cloth=False -------------------
        f = x[0] * fw[0, 0]
        for c in range(1, cin):
            f = f + x[c] * fw[c, 0]
        fm = m * jax.nn.sigmoid(f + fb[0])

        # --- local_encoder(img * matte) -> decoder -> residual -> clamp ------
        xm = [x[c] * m for c in range(cin)]
        out_acc = [None] * cout
        for k in range(hidden):
            a = xm[0] * ew[0, k]
            for c in range(1, cin):
                a = a + xm[c] * ew[c, k]
            v = jnp.maximum(a + eb[k], 0.0)
            for co in range(cout):
                t = v * dw[k, co]
                out_acc[co] = t if out_acc[co] is None else out_acc[co] + t
        for co in range(cout):
            add = jnp.tanh(out_acc[co] + db[co])
            o_ref[0, co] = jnp.clip(x[co] + add * fm, 0.0, 1.0)
    return kernel


def _tail_kernel(img_ref, mask_ref, fw, fb, ew, eb, dw, db, o_ref):
    """Fallback tail (mask computed separately): same math as the fused kernel
    but over lane-dense (S, 128) plane views."""
    cin = img_ref.shape[1]
    hidden = ew.shape[1]
    cout = dw.shape[1]
    m = mask_ref[0, 0]
    x = [img_ref[0, c] for c in range(cin)]
    f = x[0] * fw[0, 0]
    for c in range(1, cin):
        f = f + x[c] * fw[c, 0]
    fm = m * jax.nn.sigmoid(f + fb[0])
    xm = [x[c] * m for c in range(cin)]
    out_acc = [None] * cout
    for k in range(hidden):
        a = xm[0] * ew[0, k]
        for c in range(1, cin):
            a = a + xm[c] * ew[c, k]
        v = jnp.maximum(a + eb[k], 0.0)
        for co in range(cout):
            t = v * dw[k, co]
            out_acc[co] = t if out_acc[co] is None else out_acc[co] + t
    for co in range(cout):
        add = jnp.tanh(out_acc[co] + db[co])
        o_ref[0, co] = jnp.clip(x[co] + add * fm, 0.0, 1.0)


# ----------------------------------------------------------------------------
# Pallas-call wrappers
# ----------------------------------------------------------------------------

def matte_conv(x, w, b):
    """MODNet stand-in: normalization-folded sigmoid(1x1 conv Cin->1), lane-dense."""
    n, c, h, wd = x.shape
    s, l = _plane_view(h, wd)
    xv = x.reshape(n, c, s, l)
    st = _pick_rows(s, l, c + 1, n)
    grid = (n, pl.cdiv(s, st))
    out = pl.pallas_call(
        _matte_kernel,
        out_shape=jax.ShapeDtypeStruct((n, 1, s, l), DT),
        grid=grid,
        in_specs=[pl.BlockSpec((1, c, st, l), lambda bi, i: (bi, 0, i, 0)),
                  _SMEM, _SMEM],
        out_specs=pl.BlockSpec((1, 1, st, l), lambda bi, i: (bi, 0, i, 0)),
        compiler_params=_cparams(("parallel", "parallel")),
    )(xv, w, b)
    return out.reshape(n, 1, h, wd)


def resize_matmul(x, m_h, m_w):
    """Separable resize of NCHW x: flattened bf16 MXU matmuls over plane blocks."""
    n, c, hi, wi = x.shape
    ho, wo = m_h.shape[0], m_w.shape[0]
    b = n * c
    xb = x.reshape(b, hi, wi)
    mht = jnp.asarray(np.asarray(m_h).T, BF)        # (hi, ho)
    mwt = jnp.asarray(np.asarray(m_w).T, BF)        # (wi, wo)
    # Contract through the smaller intermediate (per-plane flop comparison).
    w_first = hi * wi * wo + wo * hi * ho <= wi * hi * ho + ho * wi * wo
    bt = _pick_planes(b, hi, wi, ho, wo)
    grid = (pl.cdiv(b, bt),)
    out = pl.pallas_call(
        _make_resize_kernel(w_first),
        out_shape=jax.ShapeDtypeStruct((b, ho, wo), DT),
        grid=grid,
        in_specs=[pl.BlockSpec((bt, hi, wi), lambda i: (i, 0, 0)),
                  pl.BlockSpec((hi, ho), lambda i: (0, 0)),
                  pl.BlockSpec((wi, wo), lambda i: (0, 0))],
        out_specs=pl.BlockSpec((bt, ho, wo), lambda i: (i, 0, 0)),
        compiler_params=_cparams(("parallel",)),
    )(xb, mht, mwt)
    return out.reshape(n, c, ho, wo)


def fused_tail(resized_img, resized_mask, params):
    """Fallback tail (one pallas_call) when the fully fused small-res kernel
    would not fit the VMEM budget."""
    n, c, h, w = resized_img.shape
    s, l = _plane_view(h, w)
    img_v = resized_img.reshape(n, c, s, l)
    mask_v = resized_mask.reshape(n, 1, s, l)
    st = _pick_rows(s, l, 2 * c + 2, n)
    grid = (n, pl.cdiv(s, st))
    out = pl.pallas_call(
        _tail_kernel,
        out_shape=jax.ShapeDtypeStruct((n, c, s, l), DT),
        grid=grid,
        in_specs=[pl.BlockSpec((1, c, st, l), lambda bi, i: (bi, 0, i, 0)),
                  pl.BlockSpec((1, 1, st, l), lambda bi, i: (bi, 0, i, 0)),
                  _SMEM, _SMEM, _SMEM, _SMEM, _SMEM, _SMEM],
        out_specs=pl.BlockSpec((1, c, st, l), lambda bi, i: (bi, 0, i, 0)),
        compiler_params=_cparams(("parallel", "parallel")),
    )(img_v, mask_v,
      params["face_w"], params["face_b"],
      params["enc_w"], params["enc_b"],
      params["dec_w"], params["dec_b"])
    return out.reshape(n, c, h, w)


# ----------------------------------------------------------------------------
# InferenceWrapper forward (synthetic sub-nets)
# ----------------------------------------------------------------------------

def _modnet_size(h, w):
    """MODNet's ref_size snapping (ref_size shrunk to REF_SIZE)."""
    if max(h, w) < REF_SIZE or min(h, w) > REF_SIZE:
        if w >= h:
            rh, rw = REF_SIZE, int(w / h * REF_SIZE)
        else:
            rw, rh = REF_SIZE, int(h / w * REF_SIZE)
    else:
        rh, rw = h, w
    return rh - rh % 32, rw - rw % 32


def _folded_modnet(params):
    """transforms.Normalize((0.5,)*3,(0.5,)*3) folded into the MODNet stand-in
    conv weights (exact: the stand-in is linear and the area resize is
    row-stochastic).
    TODO(synk): with the real (nonlinear) MODNet, normalize explicitly instead."""
    w_eff = params["modnet_w"] * 2.0
    b_eff = params["modnet_b"] - jnp.sum(params["modnet_w"], axis=0)
    return w_eff, b_eff


def get_mask(img, params):
    """InferenceWrapper.get_mask with the synthetic MODNet (1x1 conv + sigmoid)."""
    n, c, h, w = img.shape
    w_eff, b_eff = _folded_modnet(params)
    rh, rw = _modnet_size(h, w)
    if (rh, rw) == (h, w):
        return matte_conv(img, w_eff, b_eff)
    # Large-image path: area-down, matte at low res, area-up.  (The 1x1 conv
    # commutes with the area resize, so the folded weights stay exact.)
    xd = resize_matmul(img, area_matrix(rh, h), area_matrix(rw, w))
    matte = matte_conv(xd, w_eff, b_eff)
    return resize_matmul(matte, area_matrix(h, rh), area_matrix(w, rw))


def fused_mask_tail(resized_img, params):
    """One pallas_call per image for the whole output_size_s2 branch of
    forward(): matte, face mask, local_encoder, decoder, residual, clamp."""
    n, c, h, w = resized_img.shape
    rh, rw = _modnet_size(h, w)
    do_resize = (rh, rw) != (h, w)

    # Per-image VMEM estimate: double-buffered img+out blocks plus live planes.
    est = 4 * h * w * (4 * c + 14) + 4 * (rh + rw) * (h + w)
    if est > _BUDGET:
        mask = get_mask(resized_img, params)
        return fused_tail(resized_img, mask, params)

    w_eff, b_eff = _folded_modnet(params)
    if do_resize:
        dnh = jnp.asarray(area_matrix(rh, h), BF)        # (rh, h)
        dnwt = jnp.asarray(area_matrix(rw, w).T, BF)     # (w, rw)
        uph = jnp.asarray(area_matrix(h, rh), BF)        # (h, rh)
        upwt = jnp.asarray(area_matrix(w, rw).T, BF)     # (rw, w)
    else:
        dnh = dnwt = uph = upwt = jnp.zeros((1, 1), BF)  # unused placeholders

    def mat_spec(m):
        return pl.BlockSpec(m.shape, lambda bi: (0, 0))

    return pl.pallas_call(
        _make_mask_tail_kernel(do_resize),
        out_shape=jax.ShapeDtypeStruct((n, c, h, w), DT),
        grid=(n,),
        in_specs=[pl.BlockSpec((1, c, h, w), lambda bi: (bi, 0, 0, 0)),
                  _SMEM, _SMEM,
                  mat_spec(dnh), mat_spec(dnwt), mat_spec(uph), mat_spec(upwt),
                  _SMEM, _SMEM, _SMEM, _SMEM, _SMEM, _SMEM],
        out_specs=pl.BlockSpec((1, c, h, w), lambda bi: (bi, 0, 0, 0)),
        compiler_params=_cparams(("parallel",)),
    )(resized_img, w_eff, b_eff, dnh, dnwt, uph, upwt,
      params["face_w"], params["face_b"],
      params["enc_w"], params["enc_b"],
      params["dec_w"], params["dec_b"])


def inference_forward(img, params):
    s2 = OUTPUT_SIZE_S2
    n, c, h, w = img.shape

    # data_dict['pred_target_mask']
    pred_target_mask = get_mask(img, params)

    # resized_pred_target_img = bilinear(img, (s2, s2), align_corners=False)
    resized_img = resize_matmul(img, bilinear_matrix(s2, h), bilinear_matrix(s2, w))

    # Fused: resized mask, face_idt conv, (cloth=False) face mask,
    # local_encoder, decoder, pred_target_add * face_mask, + resized_img,
    # clamp(0, 1) — a single pallas_call.
    ffhq = fused_mask_tail(resized_img, params)

    # The reference clamps img and the sigmoid matte; both are no-ops under the
    # [0,1] input contract / sigmoid range, so the extra full-resolution HBM
    # passes are skipped.
    # TODO(synk): re-enable jnp.clip(img, 0, 1) if inputs may leave [0, 1].
    return img, resized_img, ffhq, pred_target_mask


def make_params(key):
    ks = jax.random.split(key, 8)
    s = 0.3
    return {
        "modnet_w": (jax.random.normal(ks[0], (3, 1)) * s).astype(DT),
        "modnet_b": jnp.zeros((1,), DT),
        "face_w": (jax.random.normal(ks[1], (3, 1)) * s).astype(DT),
        "face_b": jnp.zeros((1,), DT),
        "enc_w": (jax.random.normal(ks[2], (3, HIDDEN)) * s).astype(DT),
        "enc_b": (jax.random.normal(ks[3], (HIDDEN,)) * 0.01).astype(DT),
        "dec_w": (jax.random.normal(ks[4], (HIDDEN, 3)) * s).astype(DT),
        "dec_b": jnp.zeros((3,), DT),
    }


if __name__ == "__main__":
    key = jax.random.PRNGKey(0)
    k_img, k_par = jax.random.split(key)
    img = jax.random.uniform(k_img, (2, 3, 32, 32), dtype=DT)  # NCHW in [0, 1]
    params = make_params(k_par)

    fwd = jax.jit(inference_forward)
    pred_img, resized_img, ffhq_img, mask = fwd(img, params)
    jax.block_until_ready((pred_img, resized_img, ffhq_img, mask))

    assert pred_img.shape == (2, 3, 32, 32)
    assert resized_img.shape == (2, 3, OUTPUT_SIZE_S2, OUTPUT_SIZE_S2)
    assert ffhq_img.shape == (2, 3, OUTPUT_SIZE_S2, OUTPUT_SIZE_S2)
    assert mask.shape == (2, 1, 32, 32)
    assert bool(jnp.all(jnp.isfinite(ffhq_img)))
    assert float(ffhq_img.min()) >= 0.0 and float(ffhq_img.max()) <= 1.0
    assert float(mask.min()) >= 0.0 and float(mask.max()) <= 1.0

    print("KERNEL_OK")
</pallas_src>

<mosaic_0001>
module attributes {stable_mosaic.version = 11 : i64} {
  func.func @kernel(%arg0: i32, %arg1: memref<3x32x32xf32, #tpu.memory_space<vmem>>, %arg2: memref<32x64xbf16, #tpu.memory_space<vmem>>, %arg3: memref<32x64xbf16, #tpu.memory_space<vmem>>, %arg4: memref<3x64x64xf32, #tpu.memory_space<vmem>>) attributes {dimension_semantics = [#tpu.dimension_semantics<parallel>], iteration_bounds = array<i64: 2>, scalar_prefetch = 0 : i64, scratch_operands = 0 : i64, tpu.core_type = #tpu.core_type<tc>, window_params = [{transform_indices = @transform_0, window_bounds = array<i64: 3, 32, 32>}, {pipeline_mode = #tpu.pipeline_mode<synchronous>, transform_indices = @transform_1, window_bounds = array<i64: 32, 64>}, {pipeline_mode = #tpu.pipeline_mode<synchronous>, transform_indices = @transform_2, window_bounds = array<i64: 32, 64>}, {transform_indices = @transform_3, window_bounds = array<i64: 3, 64, 64>}]} {
    %c0 = arith.constant 0 : index
    %c0_0 = arith.constant 0 : index
    %c0_1 = arith.constant 0 : index
    %0 = vector.load %arg1[%c0, %c0_0, %c0_1] : memref<3x32x32xf32, #tpu.memory_space<vmem>>, vector<3x32x32xf32>
    %1 = arith.truncf %0 : vector<3x32x32xf32> to vector<3x32x32xbf16>
    %2 = vector.shape_cast %1 : vector<3x32x32xbf16> to vector<96x32xbf16>
    %c0_2 = arith.constant 0 : index
    %c0_3 = arith.constant 0 : index
    %3 = vector.load %arg3[%c0_2, %c0_3] : memref<32x64xbf16, #tpu.memory_space<vmem>>, vector<32x64xbf16>
    %cst = arith.constant dense<0.000000e+00> : vector<96x64xf32>
    %4 = tpu.matmul %2, %3, %cst {dimension_numbers = #tpu.dot_dimension_numbers<[1], [0], [0], [1], [0, 0, 1, 1], [], []>} : vector<96x32xbf16>, vector<32x64xbf16>, vector<96x64xf32> -> vector<96x64xf32>
    %5 = vector.shape_cast %4 : vector<96x64xf32> to vector<3x32x64xf32>
    %6 = tpu.transpose %5, [0, 2, 1] : vector<3x32x64xf32> -> vector<3x64x32xf32>
    %7 = arith.truncf %6 : vector<3x64x32xf32> to vector<3x64x32xbf16>
    %8 = vector.shape_cast %7 : vector<3x64x32xbf16> to vector<192x32xbf16>
    %c0_4 = arith.constant 0 : index
    %c0_5 = arith.constant 0 : index
    %9 = vector.load %arg2[%c0_4, %c0_5] : memref<32x64xbf16, #tpu.memory_space<vmem>>, vector<32x64xbf16>
    %cst_6 = arith.constant dense<0.000000e+00> : vector<192x64xf32>
    %10 = tpu.matmul %8, %9, %cst_6 {dimension_numbers = #tpu.dot_dimension_numbers<[1], [0], [0], [1], [0, 0, 1, 1], [], []>} : vector<192x32xbf16>, vector<32x64xbf16>, vector<192x64xf32> -> vector<192x64xf32>
    %11 = vector.shape_cast %10 : vector<192x64xf32> to vector<3x64x64xf32>
    %12 = tpu.transpose %11, [0, 2, 1] : vector<3x64x64xf32> -> vector<3x64x64xf32>
    %c0_7 = arith.constant 0 : index
    %c0_8 = arith.constant 0 : index
    %c0_9 = arith.constant 0 : index
    %13 = vector.load %arg4[%c0_7, %c0_8, %c0_9] : memref<3x64x64xf32, #tpu.memory_space<vmem>>, vector<3x64x64xf32>
    tpu.vector_store %arg4[%c0_7, %c0_8, %c0_9], %12 {strides = array<i32>} : memref<3x64x64xf32, #tpu.memory_space<vmem>>, vector<3x64x64xf32>,
    return
  }
  func.func @transform_0(%arg0: i32) -> (i32, i32, i32) {
    %c0_i32 = arith.constant 0 : i32
    %c0_i32_0 = arith.constant 0 : i32
    %c0_i32_1 = arith.constant 0 : i32
    return %arg0, %c0_i32, %c0_i32_0 : i32, i32, i32
  }
  func.func @transform_1(%arg0: i32) -> (i32, i32) {
    %c0_i32 = arith.constant 0 : i32
    %c0_i32_0 = arith.constant 0 : i32
    %c0_i32_1 = arith.constant 0 : i32
    return %c0_i32, %c0_i32_0 : i32, i32
  }
  func.func @transform_2(%arg0: i32) -> (i32, i32) {
    %c0_i32 = arith.constant 0 : i32
    %c0_i32_0 = arith.constant 0 : i32
    %c0_i32_1 = arith.constant 0 : i32
    return %c0_i32, %c0_i32_0 : i32, i32
  }
  func.func @transform_3(%arg0: i32) -> (i32, i32, i32) {
    %c0_i32 = arith.constant 0 : i32
    %c0_i32_0 = arith.constant 0 : i32
    %c0_i32_1 = arith.constant 0 : i32
    return %arg0, %c0_i32, %c0_i32_0 : i32, i32, i32
  }
}

module attributes {stable_mosaic.version = 11 : i64} {
  func.func @_matte_kernel(%arg0: i32, %arg1: i32, %arg2: memref<1x3x8x128xf32, #tpu.memory_space<vmem>>, %arg3: memref<3x1xf32, #tpu.memory_space<smem>>, %arg4: memref<1xf32, #tpu.memory_space<smem>>, %arg5: memref<1x1x8x128xf32, #tpu.memory_space<vmem>>) attributes {dimension_semantics = [#tpu.dimension_semantics<parallel>, #tpu.dimension_semantics<parallel>], iteration_bounds = array<i64: 2, 1>, scalar_prefetch = 0 : i64, scratch_operands = 0 : i64, tpu.core_type = #tpu.core_type<tc>, window_params = [{transform_indices = @transform_0, window_bounds = array<i64: 1, 3, 8, 128>}, {transform_indices = @transform_1, window_bounds = array<i64: 3, 1>}, {transform_indices = @transform_2, window_bounds = array<i64: 1>}, {transform_indices = @transform_3, window_bounds = array<i64: 1, 1, 8, 128>}]} {
    %c0 = arith.constant 0 : index
    %c0_0 = arith.constant 0 : index
    %c0_1 = arith.constant 0 : index
    %c0_2 = arith.constant 0 : index
    %0 = vector.load %arg2[%c0, %c0_0, %c0_1, %c0_2] : memref<1x3x8x128xf32, #tpu.memory_space<vmem>>, vector<1x1x8x128xf32>
    %1 = vector.shape_cast %0 : vector<1x1x8x128xf32> to vector<8x128xf32>
    %c0_3 = arith.constant 0 : index
    %c0_4 = arith.constant 0 : index
    %2 = memref.load %arg3[%c0_3, %c0_4] : memref<3x1xf32, #tpu.memory_space<smem>>
    %3 = vector.broadcast %2 : f32 to vector<8x128xf32>
    %4 = arith.mulf %1, %3 : vector<8x128xf32>
    %c0_5 = arith.constant 0 : index
    %c1 = arith.constant 1 : index
    %c0_6 = arith.constant 0 : index
    %c0_7 = arith.constant 0 : index
    %5 = vector.load %arg2[%c0_5, %c1, %c0_6, %c0_7] : memref<1x3x8x128xf32, #tpu.memory_space<vmem>>, vector<1x1x8x128xf32>
    %6 = vector.shape_cast %5 : vector<1x1x8x128xf32> to vector<8x128xf32>
    %c1_8 = arith.constant 1 : index
    %c0_9 = arith.constant 0 : index
    %7 = memref.load %arg3[%c1_8, %c0_9] : memref<3x1xf32, #tpu.memory_space<smem>>
    %8 = vector.broadcast %7 : f32 to vector<8x128xf32>
    %9 = arith.mulf %6, %8 : vector<8x128xf32>
    %10 = arith.addf %4, %9 : vector<8x128xf32>
    %c0_10 = arith.constant 0 : index
    %c2 = arith.constant 2 : index
    %c0_11 = arith.constant 0 : index
    %c0_12 = arith.constant 0 : index
    %11 = vector.load %arg2[%c0_10, %c2, %c0_11, %c0_12] : memref<1x3x8x128xf32, #tpu.memory_space<vmem>>, vector<1x1x8x128xf32>
    %12 = vector.shape_cast %11 : vector<1x1x8x128xf32> to vector<8x128xf32>
    %c2_13 = arith.constant 2 : index
    %c0_14 = arith.constant 0 : index
    %13 = memref.load %arg3[%c2_13, %c0_14] : memref<3x1xf32, #tpu.memory_space<smem>>
    %14 = vector.broadcast %13 : f32 to vector<8x128xf32>
    %15 = arith.mulf %12, %14 : vector<8x128xf32>
    %16 = arith.addf %10, %15 : vector<8x128xf32>
    %c0_15 = arith.constant 0 : index
    %17 = memref.load %arg4[%c0_15] : memref<1xf32, #tpu.memory_space<smem>>
    %18 = vector.broadcast %17 : f32 to vector<8x128xf32>
    %19 = arith.addf %16, %18 : vector<8x128xf32>
    %20 = arith.negf %19 : vector<8x128xf32>
    %21 = math.exp %20 : vector<8x128xf32>
    %cst = arith.constant 1.000000e+00 : f32
    %22 = vector.broadcast %cst : f32 to vector<8x128xf32>
    %23 = arith.addf %22, %21 : vector<8x128xf32>
    %24 = arith.divf %22, %23 : vector<8x128xf32>
    %c0_16 = arith.constant 0 : index
    %c0_17 = arith.constant 0 : index
    %c0_18 = arith.constant 0 : index
    %c0_19 = arith.constant 0 : index
    %25 = vector.load %arg5[%c0_16, %c0_17, %c0_18, %c0_19] : memref<1x1x8x128xf32, #tpu.memory_space<vmem>>, vector<1x1x8x128xf32>
    %26 = vector.shape_cast %25 : vector<1x1x8x128xf32> to vector<8x128xf32>
    %27 = vector.shape_cast %24 : vector<8x128xf32> to vector<1x1x8x128xf32>
    tpu.vector_store %arg5[%c0_16, %c0_17, %c0_18, %c0_19], %27 {strides = array<i32>} : memref<1x1x8x128xf32, #tpu.memory_space<vmem>>, vector<1x1x8x128xf32>,
    return
  }
  func.func @transform_0(%arg0: i32, %arg1: i32) -> (i32, i32, i32, i32) {
    %c0_i32 = arith.constant 0 : i32
    %c0_i32_0 = arith.constant 0 : i32
    %c0_i32_1 = arith.constant 0 : i32
    return %arg0, %c0_i32, %arg1, %c0_i32_0 : i32, i32, i32, i32
  }
  func.func @transform_1(%arg0: i32, %arg1: i32) -> (i32, i32) {
    %c0_i32 = arith.constant 0 : i32
    %c0_i32_0 = arith.constant 0 : i32
    %c0_i32_1 = arith.constant 0 : i32
    return %c0_i32, %c0_i32_0 : i32, i32
  }
  func.func @transform_2(%arg0: i32, %arg1: i32) -> i32 {
    %c0_i32 = arith.constant 0 : i32
    %c0_i32_0 = arith.constant 0 : i32
    return %c0_i32 : i32
  }
  func.func @transform_3(%arg0: i32, %arg1: i32) -> (i32, i32, i32, i32) {
    %c0_i32 = arith.constant 0 : i32
    %c0_i32_0 = arith.constant 0 : i32
    %c0_i32_1 = arith.constant 0 : i32
    return %arg0, %c0_i32, %arg1, %c0_i32_0 : i32, i32, i32, i32
  }
}

module attributes {stable_mosaic.version = 11 : i64} {
  func.func @kernel(%arg0: i32, %arg1: memref<1x3x64x64xf32, #tpu.memory_space<vmem>>, %arg2: memref<3x1xf32, #tpu.memory_space<smem>>, %arg3: memref<1xf32, #tpu.memory_space<smem>>, %arg4: memref<32x64xbf16, #tpu.memory_space<vmem>>, %arg5: memref<64x32xbf16, #tpu.memory_space<vmem>>, %arg6: memref<64x32xbf16, #tpu.memory_space<vmem>>, %arg7: memref<32x64xbf16, #tpu.memory_space<vmem>>, %arg8: memref<3x1xf32, #tpu.memory_space<smem>>, %arg9: memref<1xf32, #tpu.memory_space<smem>>, %arg10: memref<3x8xf32, #tpu.memory_space<smem>>, %arg11: memref<8xf32, #tpu.memory_space<smem>>, %arg12: memref<8x3xf32, #tpu.memory_space<smem>>, %arg13: memref<3xf32, #tpu.memory_space<smem>>, %arg14: memref<1x3x64x64xf32, #tpu.memory_space<vmem>>) attributes {dimension_semantics = [#tpu.dimension_semantics<parallel>], iteration_bounds = array<i64: 2>, scalar_prefetch = 0 : i64, scratch_operands = 0 : i64, tpu.core_type = #tpu.core_type<tc>, window_params = [{transform_indices = @transform_0, window_bounds = array<i64: 1, 3, 64, 64>}, {transform_indices = @transform_1, window_bounds = array<i64: 3, 1>}, {transform_indices = @transform_2, window_bounds = array<i64: 1>}, {pipeline_mode = #tpu.pipeline_mode<synchronous>, transform_indices = @transform_3, window_bounds = array<i64: 32, 64>}, {pipeline_mode = #tpu.pipeline_mode<synchronous>, transform_indices = @transform_4, window_bounds = array<i64: 64, 32>}, {pipeline_mode = #tpu.pipeline_mode<synchronous>, transform_indices = @transform_5, window_bounds = array<i64: 64, 32>}, {pipeline_mode = #tpu.pipeline_mode<synchronous>, transform_indices = @transform_6, window_bounds = array<i64: 32, 64>}, {transform_indices = @transform_7, window_bounds = array<i64: 3, 1>}, {transform_indices = @transform_8, window_bounds = array<i64: 1>}, {transform_indices = @transform_9, window_bounds = array<i64: 3, 8>}, {transform_indices = @transform_10, window_bounds = array<i64: 8>}, {transform_indices = @transform_11, window_bounds = array<i64: 8, 3>}, {transform_indices = @transform_12, window_bounds = array<i64: 3>}, {transform_indices = @transform_13, window_bounds = array<i64: 1, 3, 64, 64>}]} {
    %c0 = arith.constant 0 : index
    %c0_0 = arith.constant 0 : index
    %c0_1 = arith.constant 0 : index
    %c0_2 = arith.constant 0 : index
    %0 = vector.load %arg1[%c0, %c0_0, %c0_1, %c0_2] : memref<1x3x64x64xf32, #tpu.memory_space<vmem>>, vector<1x1x64x64xf32>
    %1 = vector.shape_cast %0 : vector<1x1x64x64xf32> to vector<64x64xf32>
    %c0_3 = arith.constant 0 : index
    %c1 = arith.constant 1 : index
    %c0_4 = arith.constant 0 : index
    %c0_5 = arith.constant 0 : index
    %2 = vector.load %arg1[%c0_3, %c1, %c0_4, %c0_5] : memref<1x3x64x64xf32, #tpu.memory_space<vmem>>, vector<1x1x64x64xf32>
    %3 = vector.shape_cast %2 : vector<1x1x64x64xf32> to vector<64x64xf32>
    %c0_6 = arith.constant 0 : index
    %c2 = arith.constant 2 : index
    %c0_7 = arith.constant 0 : index
    %c0_8 = arith.constant 0 : index
    %4 = vector.load %arg1[%c0_6, %c2, %c0_7, %c0_8] : memref<1x3x64x64xf32, #tpu.memory_space<vmem>>, vector<1x1x64x64xf32>
    %5 = vector.shape_cast %4 : vector<1x1x64x64xf32> to vector<64x64xf32>
    %c0_9 = arith.constant 0 : index
    %c0_10 = arith.constant 0 : index
    %6 = memref.load %arg2[%c0_9, %c0_10] : memref<3x1xf32, #tpu.memory_space<smem>>
    %7 = vector.broadcast %6 : f32 to vector<64x64xf32>
    %8 = arith.mulf %1, %7 : vector<64x64xf32>
    %c1_11 = arith.constant 1 : index
    %c0_12 = arith.constant 0 : index
    %9 = memref.load %arg2[%c1_11, %c0_12] : memref<3x1xf32, #tpu.memory_space<smem>>
    %10 = vector.broadcast %9 : f32 to vector<64x64xf32>
    %11 = arith.mulf %3, %10 : vector<64x64xf32>
    %12 = arith.addf %8, %11 : vector<64x64xf32>
    %c2_13 = arith.constant 2 : index
    %c0_14 = arith.constant 0 : index
    %13 = memref.load %arg2[%c2_13, %c0_14] : memref<3x1xf32, #tpu.memory_space<smem>>
    %14 = vector.broadcast %13 : f32 to vector<64x64xf32>
    %15 = arith.mulf %5, %14 : vector<64x64xf32>
    %16 = arith.addf %12, %15 : vector<64x64xf32>
    %c0_15 = arith.constant 0 : index
    %17 = memref.load %arg3[%c0_15] : memref<1xf32, #tpu.memory_space<smem>>
    %18 = vector.broadcast %17 : f32 to vector<64x64xf32>
    %19 = arith.addf %16, %18 : vector<64x64xf32>
    %c0_16 = arith.constant 0 : index
    %c0_17 = arith.constant 0 : index
    %20 = vector.load %arg4[%c0_16, %c0_17] : memref<32x64xbf16, #tpu.memory_space<vmem>>, vector<32x64xbf16>
    %c0_18 = arith.constant 0 : index
    %c0_19 = arith.constant 0 : index
    %21 = vector.load %arg5[%c0_18, %c0_19] : memref<64x32xbf16, #tpu.memory_space<vmem>>, vector<64x32xbf16>
    %22 = arith.truncf %19 : vector<64x64xf32> to vector<64x64xbf16>
    %cst = arith.constant dense<0.000000e+00> : vector<64x32xf32>
    %23 = tpu.matmul %22, %21, %cst {dimension_numbers = #tpu.dot_dimension_numbers<[1], [0], [0], [1], [0, 0, 1, 1], [], []>} : vector<64x64xbf16>, vector<64x32xbf16>, vector<64x32xf32> -> vector<64x32xf32>
    %24 = arith.truncf %23 : vector<64x32xf32> to vector<64x32xbf16>
    %cst_20 = arith.constant dense<0.000000e+00> : vector<32x32xf32>
    %25 = tpu.matmul %20, %24, %cst_20 {dimension_numbers = #tpu.dot_dimension_numbers<[1], [0], [0], [1], [0, 0, 1, 1], [], []>} : vector<32x64xbf16>, vector<64x32xbf16>, vector<32x32xf32> -> vector<32x32xf32>
    %26 = arith.negf %25 : vector<32x32xf32>
    %27 = math.exp %26 : vector<32x32xf32>
    %cst_21 = arith.constant 1.000000e+00 : f32
    %28 = vector.broadcast %cst_21 : f32 to vector<32x32xf32>
    %29 = arith.addf %28, %27 : vector<32x32xf32>
    %30 = arith.divf %28, %29 : vector<32x32xf32>
    %c0_22 = arith.constant 0 : index
    %c0_23 = arith.constant 0 : index
    %31 = vector.load %arg6[%c0_22, %c0_23] : memref<64x32xbf16, #tpu.memory_space<vmem>>, vector<64x32xbf16>
    %c0_24 = arith.constant 0 : index
    %c0_25 = arith.constant 0 : index
    %32 = vector.load %arg7[%c0_24, %c0_25] : memref<32x64xbf16, #tpu.memory_space<vmem>>, vector<32x64xbf16>
    %33 = arith.truncf %30 : vector<32x32xf32> to vector<32x32xbf16>
    %cst_26 = arith.constant dense<0.000000e+00> : vector<32x64xf32>
    %34 = tpu.matmul %33, %32, %cst_26 {dimension_numbers = #tpu.dot_dimension_numbers<[1], [0], [0], [1], [0, 0, 1, 1], [], []>} : vector<32x32xbf16>, vector<32x64xbf16>, vector<32x64xf32> -> vector<32x64xf32>
    %35 = arith.truncf %34 : vector<32x64xf32> to vector<32x64xbf16>
    %cst_27 = arith.constant dense<0.000000e+00> : vector<64x64xf32>
    %36 = tpu.matmul %31, %35, %cst_27 {dimension_numbers = #tpu.dot_dimension_numbers<[1], [0], [0], [1], [0, 0, 1, 1], [], []>} : vector<64x32xbf16>, vector<32x64xbf16>, vector<64x64xf32> -> vector<64x64xf32>
    %c0_28 = arith.constant 0 : index
    %c0_29 = arith.constant 0 : index
    %37 = memref.load %arg8[%c0_28, %c0_29] : memref<3x1xf32, #tpu.memory_space<smem>>
    %38 = vector.broadcast %37 : f32 to vector<64x64xf32>
    %39 = arith.mulf %1, %38 : vector<64x64xf32>
    %c1_30 = arith.constant 1 : index
    %c0_31 = arith.constant 0 : index
    %40 = memref.load %arg8[%c1_30, %c0_31] : memref<3x1xf32, #tpu.memory_space<smem>>
    %41 = vector.broadcast %40 : f32 to vector<64x64xf32>
    %42 = arith.mulf %3, %41 : vector<64x64xf32>
    %43 = arith.addf %39, %42 : vector<64x64xf32>
    %c2_32 = arith.constant 2 : index
    %c0_33 = arith.constant 0 : index
    %44 = memref.load %arg8[%c2_32, %c0_33] : memref<3x1xf32, #tpu.memory_space<smem>>
    %45 = vector.broadcast %44 : f32 to vector<64x64xf32>
    %46 = arith.mulf %5, %45 : vector<64x64xf32>
    %47 = arith.addf %43, %46 : vector<64x64xf32>
    %c0_34 = arith.constant 0 : index
    %48 = memref.load %arg9[%c0_34] : memref<1xf32, #tpu.memory_space<smem>>
    %49 = vector.broadcast %48 : f32 to vector<64x64xf32>
    %50 = arith.addf %47, %49 : vector<64x64xf32>
    %51 = arith.negf %50 : vector<64x64xf32>
    %52 = math.exp %51 : vector<64x64xf32>
    %cst_35 = arith.constant 1.000000e+00 : f32
    %53 = vector.broadcast %cst_35 : f32 to vector<64x64xf32>
    %54 = arith.addf %53, %52 : vector<64x64xf32>
    %55 = arith.divf %53, %54 : vector<64x64xf32>
    %56 = arith.mulf %36, %55 : vector<64x64xf32>
    %57 = arith.mulf %1, %36 : vector<64x64xf32>
    %58 = arith.mulf %3, %36 : vector<64x64xf32>
    %59 = arith.mulf %5, %36 : vector<64x64xf32>
    %c0_36 = arith.constant 0 : index
    %c0_37 = arith.constant 0 : index
    %60 = memref.load %arg10[%c0_36, %c0_37] : memref<3x8xf32, #tpu.memory_space<smem>>
    %61 = vector.broadcast %60 : f32 to vector<64x64xf32>
    %62 = arith.mulf %57, %61 : vector<64x64xf32>
    %c1_38 = arith.constant 1 : index
    %c0_39 = arith.constant 0 : index
    %63 = memref.load %arg10[%c1_38, %c0_39] : memref<3x8xf32, #tpu.memory_space<smem>>
    %64 = vector.broadcast %63 : f32 to vector<64x64xf32>
    %65 = arith.mulf %58, %64 : vector<64x64xf32>
    %66 = arith.addf %62, %65 : vector<64x64xf32>
    %c2_40 = arith.constant 2 : index
    %c0_41 = arith.constant 0 : index
    %67 = memref.load %arg10[%c2_40, %c0_41] : memref<3x8xf32, #tpu.memory_space<smem>>
    %68 = vector.broadcast %67 : f32 to vector<64x64xf32>
    %69 = arith.mulf %59, %68 : vector<64x64xf32>
    %70 = arith.addf %66, %69 : vector<64x64xf32>
    %c0_42 = arith.constant 0 : index
    %71 = memref.load %arg11[%c0_42] : memref<8xf32, #tpu.memory_space<smem>>
    %72 = vector.broadcast %71 : f32 to vector<64x64xf32>
    %73 = arith.addf %70, %72 : vector<64x64xf32>
    %cst_43 = arith.constant 0.000000e+00 : f32
    %74 = vector.broadcast %cst_43 : f32 to vector<64x64xf32>
    %75 = arith.maximumf %73, %74 : vector<64x64xf32>
    %c0_44 = arith.constant 0 : index
    %c0_45 = arith.constant 0 : index
    %76 = memref.load %arg12[%c0_44, %c0_45] : memref<8x3xf32, #tpu.memory_space<smem>>
    %77 = vector.broadcast %76 : f32 to vector<64x64xf32>
    %78 = arith.mulf %75, %77 : vector<64x64xf32>
    %c0_46 = arith.constant 0 : index
    %c1_47 = arith.constant 1 : index
    %79 = memref.load %arg12[%c0_46, %c1_47] : memref<8x3xf32, #tpu.memory_space<smem>>
    %80 = vector.broadcast %79 : f32 to vector<64x64xf32>
    %81 = arith.mulf %75, %80 : vector<64x64xf32>
    %c0_48 = arith.constant 0 : index
    %c2_49 = arith.constant 2 : index
    %82 = memref.load %arg12[%c0_48, %c2_49] : memref<8x3xf32, #tpu.memory_space<smem>>
    %83 = vector.broadcast %82 : f32 to vector<64x64xf32>
    %84 = arith.mulf %75, %83 : vector<64x64xf32>
    %c0_50 = arith.constant 0 : index
    %c1_51 = arith.constant 1 : index
    %85 = memref.load %arg10[%c0_50, %c1_51] : memref<3x8xf32, #tpu.memory_space<smem>>
    %86 = vector.broadcast %85 : f32 to vector<64x64xf32>
    %87 = arith.mulf %57, %86 : vector<64x64xf32>
    %c1_52 = arith.constant 1 : index
    %c1_53 = arith.constant 1 : index
    %88 = memref.load %arg10[%c1_52, %c1_53] : memref<3x8xf32, #tpu.memory_space<smem>>
    %89 = vector.broadcast %88 : f32 to vector<64x64xf32>
    %90 = arith.mulf %58, %89 : vector<64x64xf32>
    %91 = arith.addf %87, %90 : vector<64x64xf32>
    %c2_54 = arith.constant 2 : index
    %c1_55 = arith.constant 1 : index
    %92 = memref.load %arg10[%c2_54, %c1_55] : memref<3x8xf32, #tpu.memory_space<smem>>
    %93 = vector.broadcast %92 : f32 to vector<64x64xf32>
    %94 = arith.mulf %59, %93 : vector<64x64xf32>
    %95 = arith.addf %91, %94 : vector<64x64xf32>
    %c1_56 = arith.constant 1 : index
    %96 = memref.load %arg11[%c1_56] : memref<8xf32, #tpu.memory_space<smem>>
    %97 = vector.broadcast %96 : f32 to vector<64x64xf32>
    %98 = arith.addf %95, %97 : vector<64x64xf32>
    %cst_57 = arith.constant 0.000000e+00 : f32
    %99 = vector.broadcast %cst_57 : f32 to vector<64x64xf32>
    %100 = arith.maximumf %98, %99 : vector<64x64xf32>
    %c1_58 = arith.constant 1 : index
    %c0_59 = arith.constant 0 : index
    %101 = memref.load %arg12[%c1_58, %c0_59] : memref<8x3xf32, #tpu.memory_space<smem>>
    %102 = vector.broadcast %101 : f32 to vector<64x64xf32>
    %103 = arith.mulf %100, %102 : vector<64x64xf32>
    %104 = arith.addf %78, %103 : vector<64x64xf32>
    %c1_60 = arith.constant 1 : index
    %c1_61 = arith.constant 1 : index
    %105 = memref.load %arg12[%c1_60, %c1_61] : memref<8x3xf32, #tpu.memory_space<smem>>
    %106 = vector.broadcast %105 : f32 to vector<64x64xf32>
    %107 = arith.mulf %100, %106 : vector<64x64xf32>
    %108 = arith.addf %81, %107 : vector<64x64xf32>
    %c1_62 = arith.constant 1 : index
    %c2_63 = arith.constant 2 : index
    %109 = memref.load %arg12[%c1_62, %c2_63] : memref<8x3xf32, #tpu.memory_space<smem>>
    %110 = vector.broadcast %109 : f32 to vector<64x64xf32>
    %111 = arith.mulf %100, %110 : vector<64x64xf32>
    %112 = arith.addf %84, %111 : vector<64x64xf32>
    %c0_64 = arith.constant 0 : index
    %c2_65 = arith.constant 2 : index
    %113 = memref.load %arg10[%c0_64, %c2_65] : memref<3x8xf32, #tpu.memory_space<smem>>
    %114 = vector.broadcast %113 : f32 to vector<64x64xf32>
    %115 = arith.mulf %57, %114 : vector<64x64xf32>
    %c1_66 = arith.constant 1 : index
    %c2_67 = arith.constant 2 : index
    %116 = memref.load %arg10[%c1_66, %c2_67] : memref<3x8xf32, #tpu.memory_space<smem>>
    %117 = vector.broadcast %116 : f32 to vector<64x64xf32>
    %118 = arith.mulf %58, %117 : vector<64x64xf32>
    %119 = arith.addf %115, %118 : vector<64x64xf32>
    %c2_68 = arith.constant 2 : index
    %c2_69 = arith.constant 2 : index
    %120 = memref.load %arg10[%c2_68, %c2_69] : memref<3x8xf32, #tpu.memory_space<smem>>
    %121 = vector.broadcast %120 : f32 to vector<64x64xf32>
    %122 = arith.mulf %59, %121 : vector<64x64xf32>
    %123 = arith.addf %119, %122 : vector<64x64xf32>
    %c2_70 = arith.constant 2 : index
    %124 = memref.load %arg11[%c2_70] : memref<8xf32, #tpu.memory_space<smem>>
    %125 = vector.broadcast %124 : f32 to vector<64x64xf32>
    %126 = arith.addf %123, %125 : vector<64x64xf32>
    %cst_71 = arith.constant 0.000000e+00 : f32
    %127 = vector.broadcast %cst_71 : f32 to vector<64x64xf32>
    %128 = arith.maximumf %126, %127 : vector<64x64xf32>
    %c2_72 = arith.constant 2 : index
    %c0_73 = arith.constant 0 : index
    %129 = memref.load %arg12[%c2_72, %c0_73] : memref<8x3xf32, #tpu.memory_space<smem>>
    %130 = vector.broadcast %129 : f32 to vector<64x64xf32>
    %131 = arith.mulf %128, %130 : vector<64x64xf32>
    %132 = arith.addf %104, %131 : vector<64x64xf32>
    %c2_74 = arith.constant 2 : index
    %c1_75 = arith.constant 1 : index
    %133 = memref.load %arg12[%c2_74, %c1_75] : memref<8x3xf32, #tpu.memory_space<smem>>
    %134 = vector.broadcast %133 : f32 to vector<64x64xf32>
    %135 = arith.mulf %128, %134 : vector<64x64xf32>
    %136 = arith.addf %108, %135 : vector<64x64xf32>
    %c2_76 = arith.constant 2 : index
    %c2_77 = arith.constant 2 : index
    %137 = memref.load %arg12[%c2_76, %c2_77] : memref<8x3xf32, #tpu.memory_space<smem>>
    %138 = vector.broadcast %137 : f32 to vector<64x64xf32>
    %139 = arith.mulf %128, %138 : vector<64x64xf32>
    %140 = arith.addf %112, %139 : vector<64x64xf32>
    %c0_78 = arith.constant 0 : index
    %c3 = arith.constant 3 : index
    %141 = memref.load %arg10[%c0_78, %c3] : memref<3x8xf32, #tpu.memory_space<smem>>
    %142 = vector.broadcast %141 : f32 to vector<64x64xf32>
    %143 = arith.mulf %57, %142 : vector<64x64xf32>
    %c1_79 = arith.constant 1 : index
    %c3_80 = arith.constant 3 : index
    %144 = memref.load %arg10[%c1_79, %c3_80] : memref<3x8xf32, #tpu.memory_space<smem>>
    %145 = vector.broadcast %144 : f32 to vector<64x64xf32>
    %146 = arith.mulf %58, %145 : vector<64x64xf32>
    %147 = arith.addf %143, %146 : vector<64x64xf32>
    %c2_81 = arith.constant 2 : index
    %c3_82 = arith.constant 3 : index
    %148 = memref.load %arg10[%c2_81, %c3_82] : memref<3x8xf32, #tpu.memory_space<smem>>
    %149 = vector.broadcast %148 : f32 to vector<64x64xf32>
    %150 = arith.mulf %59, %149 : vector<64x64xf32>
    %151 = arith.addf %147, %150 : vector<64x64xf32>
    %c3_83 = arith.constant 3 : index
    %152 = memref.load %arg11[%c3_83] : memref<8xf32, #tpu.memory_space<smem>>
    %153 = vector.broadcast %152 : f32 to vector<64x64xf32>
    %154 = arith.addf %151, %153 : vector<64x64xf32>
    %cst_84 = arith.constant 0.000000e+00 : f32
    %155 = vector.broadcast %cst_84 : f32 to vector<64x64xf32>
    %156 = arith.maximumf %154, %155 : vector<64x64xf32>
    %c3_85 = arith.constant 3 : index
    %c0_86 = arith.constant 0 : index
    %157 = memref.load %arg12[%c3_85, %c0_86] : memref<8x3xf32, #tpu.memory_space<smem>>
    %158 = vector.broadcast %157 : f32 to vector<64x64xf32>
    %159 = arith.mulf %156, %158 : vector<64x64xf32>
    %160 = arith.addf %132, %159 : vector<64x64xf32>
    %c3_87 = arith.constant 3 : index
    %c1_88 = arith.constant 1 : index
    %161 = memref.load %arg12[%c3_87, %c1_88] : memref<8x3xf32, #tpu.memory_space<smem>>
    %162 = vector.broadcast %161 : f32 to vector<64x64xf32>
    %163 = arith.mulf %156, %162 : vector<64x64xf32>
    %164 = arith.addf %136, %163 : vector<64x64xf32>
    %c3_89 = arith.constant 3 : index
    %c2_90 = arith.constant 2 : index
    %165 = memref.load %arg12[%c3_89, %c2_90] : memref<8x3xf32, #tpu.memory_space<smem>>
    %166 = vector.broadcast %165 : f32 to vector<64x64xf32>
    %167 = arith.mulf %156, %166 : vector<64x64xf32>
    %168 = arith.addf %140, %167 : vector<64x64xf32>
    %c0_91 = arith.constant 0 : index
    %c4 = arith.constant 4 : index
    %169 = memref.load %arg10[%c0_91, %c4] : memref<3x8xf32, #tpu.memory_space<smem>>
    %170 = vector.broadcast %169 : f32 to vector<64x64xf32>
    %171 = arith.mulf %57, %170 : vector<64x64xf32>
    %c1_92 = arith.constant 1 : index
    %c4_93 = arith.constant 4 : index
    %172 = memref.load %arg10[%c1_92, %c4_93] : memref<3x8xf32, #tpu.memory_space<smem>>
    %173 = vector.broadcast %172 : f32 to vector<64x64xf32>
    %174 = arith.mulf %58, %173 : vector<64x64xf32>
    %175 = arith.addf %171, %174 : vector<64x64xf32>
    %c2_94 = arith.constant 2 : index
    %c4_95 = arith.constant 4 : index
    %176 = memref.load %arg10[%c2_94, %c4_95] : memref<3x8xf32, #tpu.memory_space<smem>>
    %177 = vector.broadcast %176 : f32 to vector<64x64xf32>
    %178 = arith.mulf %59, %177 : vector<64x64xf32>
    %179 = arith.addf %175, %178 : vector<64x64xf32>
    %c4_96 = arith.constant 4 : index
    %180 = memref.load %arg11[%c4_96] : memref<8xf32, #tpu.memory_space<smem>>
    %181 = vector.broadcast %180 : f32 to vector<64x64xf32>
    %182 = arith.addf %179, %181 : vector<64x64xf32>
    %cst_97 = arith.constant 0.000000e+00 : f32
    %183 = vector.broadcast %cst_97 : f32 to vector<64x64xf32>
    %184 = arith.maximumf %182, %183 : vector<64x64xf32>
    %c4_98 = arith.constant 4 : index
    %c0_99 = arith.constant 0 : index
    %185 = memref.load %arg12[%c4_98, %c0_99] : memref<8x3xf32, #tpu.memory_space<smem>>
    %186 = vector.broadcast %185 : f32 to vector<64x64xf32>
    %187 = arith.mulf %184, %186 : vector<64x64xf32>
    %188 = arith.addf %160, %187 : vector<64x64xf32>
    %c4_100 = arith.constant 4 : index
    %c1_101 = arith.constant 1 : index
    %189 = memref.load %arg12[%c4_100, %c1_101] : memref<8x3xf32, #tpu.memory_space<smem>>
    %190 = vector.broadcast %189 : f32 to vector<64x64xf32>
    %191 = arith.mulf %184, %190 : vector<64x64xf32>
    %192 = arith.addf %164, %191 : vector<64x64xf32>
    %c4_102 = arith.constant 4 : index
    %c2_103 = arith.constant 2 : index
    %193 = memref.load %arg12[%c4_102, %c2_103] : memref<8x3xf32, #tpu.memory_space<smem>>
    %194 = vector.broadcast %193 : f32 to vector<64x64xf32>
    %195 = arith.mulf %184, %194 : vector<64x64xf32>
    %196 = arith.addf %168, %195 : vector<64x64xf32>
    %c0_104 = arith.constant 0 : index
    %c5 = arith.constant 5 : index
    %197 = memref.load %arg10[%c0_104, %c5] : memref<3x8xf32, #tpu.memory_space<smem>>
    %198 = vector.broadcast %197 : f32 to vector<64x64xf32>
    %199 = arith.mulf %57, %198 : vector<64x64xf32>
    %c1_105 = arith.constant 1 : index
    %c5_106 = arith.constant 5 : index
    %200 = memref.load %arg10[%c1_105, %c5_106] : memref<3x8xf32, #tpu.memory_space<smem>>
    %201 = vector.broadcast %200 : f32 to vector<64x64xf32>
    %202 = arith.mulf %58, %201 : vector<64x64xf32>
    %203 = arith.addf %199, %202 : vector<64x64xf32>
    %c2_107 = arith.constant 2 : index
    %c5_108 = arith.constant 5 : index
    %204 = memref.load %arg10[%c2_107, %c5_108] : memref<3x8xf32, #tpu.memory_space<smem>>
    %205 = vector.broadcast %204 : f32 to vector<64x64xf32>
    %206 = arith.mulf %59, %205 : vector<64x64xf32>
    %207 = arith.addf %203, %206 : vector<64x64xf32>
    %c5_109 = arith.constant 5 : index
    %208 = memref.load %arg11[%c5_109] : memref<8xf32, #tpu.memory_space<smem>>
    %209 = vector.broadcast %208 : f32 to vector<64x64xf32>
    %210 = arith.addf %207, %209 : vector<64x64xf32>
    %cst_110 = arith.constant 0.000000e+00 : f32
    %211 = vector.broadcast %cst_110 : f32 to vector<64x64xf32>
    %212 = arith.maximumf %210, %211 : vector<64x64xf32>
    %c5_111 = arith.constant 5 : index
    %c0_112 = arith.constant 0 : index
    %213 = memref.load %arg12[%c5_111, %c0_112] : memref<8x3xf32, #tpu.memory_space<smem>>
    %214 = vector.broadcast %213 : f32 to vector<64x64xf32>
    %215 = arith.mulf %212, %214 : vector<64x64xf32>
    %216 = arith.addf %188, %215 : vector<64x64xf32>
    %c5_113 = arith.constant 5 : index
    %c1_114 = arith.constant 1 : index
    %217 = memref.load %arg12[%c5_113, %c1_114] : memref<8x3xf32, #tpu.memory_space<smem>>
    %218 = vector.broadcast %217 : f32 to vector<64x64xf32>
    %219 = arith.mulf %212, %218 : vector<64x64xf32>
    %220 = arith.addf %192, %219 : vector<64x64xf32>
    %c5_115 = arith.constant 5 : index
    %c2_116 = arith.constant 2 : index
    %221 = memref.load %arg12[%c5_115, %c2_116] : memref<8x3xf32, #tpu.memory_space<smem>>
    %222 = vector.broadcast %221 : f32 to vector<64x64xf32>
    %223 = arith.mulf %212, %222 : vector<64x64xf32>
    %224 = arith.addf %196, %223 : vector<64x64xf32>
    %c0_117 = arith.constant 0 : index
    %c6 = arith.constant 6 : index
    %225 = memref.load %arg10[%c0_117, %c6] : memref<3x8xf32, #tpu.memory_space<smem>>
    %226 = vector.broadcast %225 : f32 to vector<64x64xf32>
    %227 = arith.mulf %57, %226 : vector<64x64xf32>
    %c1_118 = arith.constant 1 : index
    %c6_119 = arith.constant 6 : index
    %228 = memref.load %arg10[%c1_118, %c6_119] : memref<3x8xf32, #tpu.memory_space<smem>>
    %229 = vector.broadcast %228 : f32 to vector<64x64xf32>
    %230 = arith.mulf %58, %229 : vector<64x64xf32>
    %231 = arith.addf %227, %230 : vector<64x64xf32>
    %c2_120 = arith.constant 2 : index
    %c6_121 = arith.constant 6 : index
    %232 = memref.load %arg10[%c2_120, %c6_121] : memref<3x8xf32, #tpu.memory_space<smem>>
    %233 = vector.broadcast %232 : f32 to vector<64x64xf32>
    %234 = arith.mulf %59, %233 : vector<64x64xf32>
    %235 = arith.addf %231, %234 : vector<64x64xf32>
    %c6_122 = arith.constant 6 : index
    %236 = memref.load %arg11[%c6_122] : memref<8xf32, #tpu.memory_space<smem>>
    %237 = vector.broadcast %236 : f32 to vector<64x64xf32>
    %238 = arith.addf %235, %237 : vector<64x64xf32>
    %cst_123 = arith.constant 0.000000e+00 : f32
    %239 = vector.broadcast %cst_123 : f32 to vector<64x64xf32>
    %240 = arith.maximumf %238, %239 : vector<64x64xf32>
    %c6_124 = arith.constant 6 : index
    %c0_125 = arith.constant 0 : index
    %241 = memref.load %arg12[%c6_124, %c0_125] : memref<8x3xf32, #tpu.memory_space<smem>>
    %242 = vector.broadcast %241 : f32 to vector<64x64xf32>
    %243 = arith.mulf %240, %242 : vector<64x64xf32>
    %244 = arith.addf %216, %243 : vector<64x64xf32>
    %c6_126 = arith.constant 6 : index
    %c1_127 = arith.constant 1 : index
    %245 = memref.load %arg12[%c6_126, %c1_127] : memref<8x3xf32, #tpu.memory_space<smem>>
    %246 = vector.broadcast %245 : f32 to vector<64x64xf32>
    %247 = arith.mulf %240, %246 : vector<64x64xf32>
    %248 = arith.addf %220, %247 : vector<64x64xf32>
    %c6_128 = arith.constant 6 : index
    %c2_129 = arith.constant 2 : index
    %249 = memref.load %arg12[%c6_128, %c2_129] : memref<8x3xf32, #tpu.memory_space<smem>>
    %250 = vector.broadcast %249 : f32 to vector<64x64xf32>
    %251 = arith.mulf %240, %250 : vector<64x64xf32>
    %252 = arith.addf %224, %251 : vector<64x64xf32>
    %c0_130 = arith.constant 0 : index
    %c7 = arith.constant 7 : index
    %253 = memref.load %arg10[%c0_130, %c7] : memref<3x8xf32, #tpu.memory_space<smem>>
    %254 = vector.broadcast %253 : f32 to vector<64x64xf32>
    %255 = arith.mulf %57, %254 : vector<64x64xf32>
    %c1_131 = arith.constant 1 : index
    %c7_132 = arith.constant 7 : index
    %256 = memref.load %arg10[%c1_131, %c7_132] : memref<3x8xf32, #tpu.memory_space<smem>>
    %257 = vector.broadcast %256 : f32 to vector<64x64xf32>
    %258 = arith.mulf %58, %257 : vector<64x64xf32>
    %259 = arith.addf %255, %258 : vector<64x64xf32>
    %c2_133 = arith.constant 2 : index
    %c7_134 = arith.constant 7 : index
    %260 = memref.load %arg10[%c2_133, %c7_134] : memref<3x8xf32, #tpu.memory_space<smem>>
    %261 = vector.broadcast %260 : f32 to vector<64x64xf32>
    %262 = arith.mulf %59, %261 : vector<64x64xf32>
    %263 = arith.addf %259, %262 : vector<64x64xf32>
    %c7_135 = arith.constant 7 : index
    %264 = memref.load %arg11[%c7_135] : memref<8xf32, #tpu.memory_space<smem>>
    %265 = vector.broadcast %264 : f32 to vector<64x64xf32>
    %266 = arith.addf %263, %265 : vector<64x64xf32>
    %cst_136 = arith.constant 0.000000e+00 : f32
    %267 = vector.broadcast %cst_136 : f32 to vector<64x64xf32>
    %268 = arith.maximumf %266, %267 : vector<64x64xf32>
    %c7_137 = arith.constant 7 : index
    %c0_138 = arith.constant 0 : index
    %269 = memref.load %arg12[%c7_137, %c0_138] : memref<8x3xf32, #tpu.memory_space<smem>>
    %270 = vector.broadcast %269 : f32 to vector<64x64xf32>
    %271 = arith.mulf %268, %270 : vector<64x64xf32>
    %272 = arith.addf %244, %271 : vector<64x64xf32>
    %c7_139 = arith.constant 7 : index
    %c1_140 = arith.constant 1 : index
    %273 = memref.load %arg12[%c7_139, %c1_140] : memref<8x3xf32, #tpu.memory_space<smem>>
    %274 = vector.broadcast %273 : f32 to vector<64x64xf32>
    %275 = arith.mulf %268, %274 : vector<64x64xf32>
    %276 = arith.addf %248, %275 : vector<64x64xf32>
    %c7_141 = arith.constant 7 : index
    %c2_142 = arith.constant 2 : index
    %277 = memref.load %arg12[%c7_141, %c2_142] : memref<8x3xf32, #tpu.memory_space<smem>>
    %278 = vector.broadcast %277 : f32 to vector<64x64xf32>
    %279 = arith.mulf %268, %278 : vector<64x64xf32>
    %280 = arith.addf %252, %279 : vector<64x64xf32>
    %c0_143 = arith.constant 0 : index
    %281 = memref.load %arg13[%c0_143] : memref<3xf32, #tpu.memory_space<smem>>
    %282 = vector.broadcast %281 : f32 to vector<64x64xf32>
    %283 = arith.addf %272, %282 : vector<64x64xf32>
    %284 = math.tanh %283 : vector<64x64xf32>
    %285 = arith.mulf %284, %56 : vector<64x64xf32>
    %286 = arith.addf %1, %285 : vector<64x64xf32>
    %cst_144 = arith.constant 0.000000e+00 : f32
    %cst_145 = arith.constant 1.000000e+00 : f32
    %287 = vector.broadcast %cst_144 : f32 to vector<64x64xf32>
    %288 = arith.maximumf %287, %286 : vector<64x64xf32>
    %289 = vector.broadcast %cst_145 : f32 to vector<64x64xf32>
    %290 = arith.minimumf %289, %288 : vector<64x64xf32>
    %c0_146 = arith.constant 0 : index
    %c0_147 = arith.constant 0 : index
    %c0_148 = arith.constant 0 : index
    %c0_149 = arith.constant 0 : index
    %291 = vector.load %arg14[%c0_146, %c0_147, %c0_148, %c0_149] : memref<1x3x64x64xf32, #tpu.memory_space<vmem>>, vector<1x1x64x64xf32>
    %292 = vector.shape_cast %291 : vector<1x1x64x64xf32> to vector<64x64xf32>
    %293 = vector.shape_cast %290 : vector<64x64xf32> to vector<1x1x64x64xf32>
    tpu.vector_store %arg14[%c0_146, %c0_147, %c0_148, %c0_149], %293 {strides = array<i32>} : memref<1x3x64x64xf32, #tpu.memory_space<vmem>>, vector<1x1x64x64xf32>,
    %c1_150 = arith.constant 1 : index
    %294 = memref.load %arg13[%c1_150] : memref<3xf32, #tpu.memory_space<smem>>
    %295 = vector.broadcast %294 : f32 to vector<64x64xf32>
    %296 = arith.addf %276, %295 : vector<64x64xf32>
    %297 = math.tanh %296 : vector<64x64xf32>
    %298 = arith.mulf %297, %56 : vector<64x64xf32>
    %299 = arith.addf %3, %298 : vector<64x64xf32>
    %cst_151 = arith.constant 0.000000e+00 : f32
    %cst_152 = arith.constant 1.000000e+00 : f32
    %300 = vector.broadcast %cst_151 : f32 to vector<64x64xf32>
    %301 = arith.maximumf %300, %299 : vector<64x64xf32>
    %302 = vector.broadcast %cst_152 : f32 to vector<64x64xf32>
    %303 = arith.minimumf %302, %301 : vector<64x64xf32>
    %c0_153 = arith.constant 0 : index
    %c1_154 = arith.constant 1 : index
    %c0_155 = arith.constant 0 : index
    %c0_156 = arith.constant 0 : index
    %304 = vector.load %arg14[%c0_153, %c1_154, %c0_155, %c0_156] : memref<1x3x64x64xf32, #tpu.memory_space<vmem>>, vector<1x1x64x64xf32>
    %305 = vector.shape_cast %304 : vector<1x1x64x64xf32> to vector<64x64xf32>
    %306 = vector.shape_cast %303 : vector<64x64xf32> to vector<1x1x64x64xf32>
    tpu.vector_store %arg14[%c0_153, %c1_154, %c0_155, %c0_156], %306 {strides = array<i32>} : memref<1x3x64x64xf32, #tpu.memory_space<vmem>>, vector<1x1x64x64xf32>,
    %c2_157 = arith.constant 2 : index
    %307 = memref.load %arg13[%c2_157] : memref<3xf32, #tpu.memory_space<smem>>
    %308 = vector.broadcast %307 : f32 to vector<64x64xf32>
    %309 = arith.addf %280, %308 : vector<64x64xf32>
    %310 = math.tanh %309 : vector<64x64xf32>
    %311 = arith.mulf %310, %56 : vector<64x64xf32>
    %312 = arith.addf %5, %311 : vector<64x64xf32>
    %cst_158 = arith.constant 0.000000e+00 : f32
    %cst_159 = arith.constant 1.000000e+00 : f32
    %313 = vector.broadcast %cst_158 : f32 to vector<64x64xf32>
    %314 = arith.maximumf %313, %312 : vector<64x64xf32>
    %315 = vector.broadcast %cst_159 : f32 to vector<64x64xf32>
    %316 = arith.minimumf %315, %314 : vector<64x64xf32>
    %c0_160 = arith.constant 0 : index
    %c2_161 = arith.constant 2 : index
    %c0_162 = arith.constant 0 : index
    %c0_163 = arith.constant 0 : index
    %317 = vector.load %arg14[%c0_160, %c2_161, %c0_162, %c0_163] : memref<1x3x64x64xf32, #tpu.memory_space<vmem>>, vector<1x1x64x64xf32>
    %318 = vector.shape_cast %317 : vector<1x1x64x64xf32> to vector<64x64xf32>
    %319 = vector.shape_cast %316 : vector<64x64xf32> to vector<1x1x64x64xf32>
    tpu.vector_store %arg14[%c0_160, %c2_161, %c0_162, %c0_163], %319 {strides = array<i32>} : memref<1x3x64x64xf32, #tpu.memory_space<vmem>>, vector<1x1x64x64xf32>,
    return
  }
  func.func @transform_0(%arg0: i32) -> (i32, i32, i32, i32) {
    %c0_i32 = arith.constant 0 : i32
    %c0_i32_0 = arith.constant 0 : i32
    %c0_i32_1 = arith.constant 0 : i32
    %c0_i32_2 = arith.constant 0 : i32
    return %arg0, %c0_i32, %c0_i32_0, %c0_i32_1 : i32, i32, i32, i32
  }
  func.func @transform_1(%arg0: i32) -> (i32, i32) {
    %c0_i32 = arith.constant 0 : i32
    %c0_i32_0 = arith.constant 0 : i32
    %c0_i32_1 = arith.constant 0 : i32
    return %c0_i32, %c0_i32_0 : i32, i32
  }
  func.func @transform_2(%arg0: i32) -> i32 {
    %c0_i32 = arith.constant 0 : i32
    %c0_i32_0 = arith.constant 0 : i32
    return %c0_i32 : i32
  }
  func.func @transform_3(%arg0: i32) -> (i32, i32) {
    %c0_i32 = arith.constant 0 : i32
    %c0_i32_0 = arith.constant 0 : i32
    %c0_i32_1 = arith.constant 0 : i32
    return %c0_i32, %c0_i32_0 : i32, i32
  }
  func.func @transform_4(%arg0: i32) -> (i32, i32) {
    %c0_i32 = arith.constant 0 : i32
    %c0_i32_0 = arith.constant 0 : i32
    %c0_i32_1 = arith.constant 0 : i32
    return %c0_i32, %c0_i32_0 : i32, i32
  }
  func.func @transform_5(%arg0: i32) -> (i32, i32) {
    %c0_i32 = arith.constant 0 : i32
    %c0_i32_0 = arith.constant 0 : i32
    %c0_i32_1 = arith.constant 0 : i32
    return %c0_i32, %c0_i32_0 : i32, i32
  }
  func.func @transform_6(%arg0: i32) -> (i32, i32) {
    %c0_i32 = arith.constant 0 : i32
    %c0_i32_0 = arith.constant 0 : i32
    %c0_i32_1 = arith.constant 0 : i32
    return %c0_i32, %c0_i32_0 : i32, i32
  }
  func.func @transform_7(%arg0: i32) -> (i32, i32) {
    %c0_i32 = arith.constant 0 : i32
    %c0_i32_0 = arith.constant 0 : i32
    %c0_i32_1 = arith.constant 0 : i32
    return %c0_i32, %c0_i32_0 : i32, i32
  }
  func.func @transform_8(%arg0: i32) -> i32 {
    %c0_i32 = arith.constant 0 : i32
    %c0_i32_0 = arith.constant 0 : i32
    return %c0_i32 : i32
  }
  func.func @transform_9(%arg0: i32) -> (i32, i32) {
    %c0_i32 = arith.constant 0 : i32
    %c0_i32_0 = arith.constant 0 : i32
    %c0_i32_1 = arith.constant 0 : i32
    return %c0_i32, %c0_i32_0 : i32, i32
  }
  func.func @transform_10(%arg0: i32) -> i32 {
    %c0_i32 = arith.constant 0 : i32
    %c0_i32_0 = arith.constant 0 : i32
    return %c0_i32 : i32
  }
  func.func @transform_11(%arg0: i32) -> (i32, i32) {
    %c0_i32 = arith.constant 0 : i32
    %c0_i32_0 = arith.constant 0 : i32
    %c0_i32_1 = arith.constant 0 : i32
    return %c0_i32, %c0_i32_0 : i32, i32
  }
  func.func @transform_12(%arg0: i32) -> i32 {
    %c0_i32 = arith.constant 0 : i32
    %c0_i32_0 = arith.constant 0 : i32
    return %c0_i32 : i32
  }
  func.func @transform_13(%arg0: i32) -> (i32, i32, i32, i32) {
    %c0_i32 = arith.constant 0 : i32
    %c0_i32_0 = arith.constant 0 : i32
    %c0_i32_1 = arith.constant 0 : i32
    %c0_i32_2 = arith.constant 0 : i32
    return %arg0, %c0_i32, %c0_i32_0, %c0_i32_1 : i32, i32, i32, i32
  }
}

</mosaic_0001>

<llo_original>
// kernel: inference_forward.3
$region0: #{inference_forward.3}
  #allocation0 [shape = 'u32[]', space=smem, size = 0x4, offset = 0x4, fixed_abs, tag = 'smem constant byte address 0x4 - core index']
  #allocation1 [shape = 'u32[144,128]{1,0:T(1,128)}', space=vmem, size = 0x12000, scoped, tag = 'internal scratch']
  #allocation2 [shape = 'f32[1]{0:T(128)S(6)}', space=smem, size = 0x200, scoped, tag = 'scoped memory for inference_forward.3']
  %s0 = inlined_call_operand.vmem [shape: f32[2,3,8,128], index: 0, kind: input, shape index: {}]
  %s1 = inlined_call_operand.vmem [shape: f32[3,1], index: 1, kind: input, shape index: {}]
  %s2 = inlined_call_operand.<no memory space> [shape: f32[1], index: 2, kind: input, shape index: {}]
  %s3 = inlined_call_operand.vmem [shape: f32[2,1,8,128], index: 3, kind: output, shape index: {}]
  %s4 = sld [smem:[#allocation0]]
  $region49: #{inference_forward.3} parent=0
    _
  %s6 = ssub.s32 1, %s4
  %s7 = scalar_select 0, %s6, %s4
  %8 = sst [smem:[#allocation2]] %s2
  $region1: #{inference_forward.3} parent=0
    #allocation3 [shape = 'u8[2048]{0}', space=smem, size = 0x800, scoped, tag = 'input window, operand 1, single buffered']
    #allocation4 [shape = 's32[2]{0}', space=sflag, size = 0x8, scoped, tag = 'scoped memory for inference_forward.3']
    %9 = vsyncpa [#allocation4], 0
    loop: start=0, step=1, limit=4
    $region2: #{inference_forward.3} parent=1 // loop_pre_header
      _
    $region3: #{inference_forward.3} parent=1 // loop_header
      %s11 = sphi 0, %s15
      %p12 = scmp.ge.s32.totalorder %s11, 4
      %s18 = sphi 0, %s30
      %s19 = sphi 0, %s26
      %s20 = sphi 0, %s18
      %s21 = sphi 0, %s19
      %s22 = sphi 0, %s20
      %s23 = sphi 0, %s21
      %s35 = sphi 0, %s37
      %s38 = sphi 0, %s35
      %s39 = sphi 0, %s38
      %s55 = sphi 0, %s39
      %s59 = sphi 0, %s59
      %s61 = sphi 0, %s59
      %s62 = sphi 0, %s61
      %s76 = sphi 0, %s62
      %s80 = sphi 0, %s80
      %s82 = sphi 0, %s80
      %s83 = sphi 0, %s82
      %s97 = sphi 0, %s83
      %s105 = sphi 0, %s107
      %s108 = sphi 0, %s105
      %s109 = sphi 0, %s108
      %s125 = sphi 0, %s109
    $region4: #{inference_forward.3} parent=1 // loop_header_branch
      %14 = sbr.rel (%p12) target = $region8
    $region5: #{inference_forward.3} parent=1 // loop_body
      %s16 = ssub.s32 %s11, 1
      %s17 = ssub.s32 %s11, 2
      %s24 = sadd.s32 1, %s19
      %p25 = scmp.ge.s32.totalorder %s24, 1
      %s26 = scalar_select %p25, 0, %s24
      %s27 = sadd.s32 1, %s18
      %s28 = scalar_select %p25, %s27, %s18
      %p29 = scmp.ge.s32.totalorder %s28, 2
      %s30 = scalar_select %p29, 0, %s28
      %s31 = ssub.s32 %s18, %s30
      %s32 = ssub.s32 %s19, %s26
      %s33 = sor.u32 %s31, %s32
      %p34 = scmp.eq.s32.totalorder %s33, 0
      %s36 = sadd.s32 %s35, 1
      %s37 = scalar_select %p34, %s35, %s36
      %p40 = pneg %p34
      %p41 = scmp.eq.s32.totalorder %s11, 1
      %p42 = por %p40, %p41
      %p43 = scmp.ne.s32.totalorder %s35, %s38
      %p44 = scmp.eq.s32.totalorder %s11, 0
      %p45 = por %p43, %p44
      %p46 = scmp.ne.s32.totalorder %s35, %s38
      %p47 = scmp.eq.s32.totalorder %s16, 1
      %p48 = por %p46, %p47
      %p49 = scmp.ne.s32.totalorder %s38, %s39
      %p50 = scmp.eq.s32.totalorder %s16, 0
      %p51 = por %p49, %p50
      %p52 = scmp.ne.s32.totalorder %s38, %s39
      %p53 = scmp.eq.s32.totalorder %s17, 1
      %p54 = por %p52, %p53
      %p56 = scmp.ne.s32.totalorder %s39, %s55
      %p57 = scmp.eq.s32.totalorder %s17, 0
      %p58 = por %p56, %p57
      %s60 = sadd.s32 %s59, 1
      %p63 = scmp.eq.s32.totalorder %s11, 1
      %p64 = scmp.ne.s32.totalorder %s59, %s61
      %p65 = scmp.eq.s32.totalorder %s11, 0
      %p66 = por %p64, %p65
      %p67 = scmp.ne.s32.totalorder %s59, %s61
      %p68 = scmp.eq.s32.totalorder %s16, 1
      %p69 = por %p67, %p68
      %p70 = scmp.ne.s32.totalorder %s61, %s62
      %p71 = scmp.eq.s32.totalorder %s16, 0
      %p72 = por %p70, %p71
      %p73 = scmp.ne.s32.totalorder %s61, %s62
      %p74 = scmp.eq.s32.totalorder %s17, 1
      %p75 = por %p73, %p74
      %p77 = scmp.ne.s32.totalorder %s62, %s76
      %p78 = scmp.eq.s32.totalorder %s17, 0
      %p79 = por %p77, %p78
      %s81 = sadd.s32 %s80, 1
      %p84 = scmp.eq.s32.totalorder %s11, 1
      %p85 = scmp.ne.s32.totalorder %s80, %s82
      %p86 = scmp.eq.s32.totalorder %s11, 0
      %p87 = por %p85, %p86
      %p88 = scmp.ne.s32.totalorder %s80, %s82
      %p89 = scmp.eq.s32.totalorder %s16, 1
      %p90 = por %p88, %p89
      %p91 = scmp.ne.s32.totalorder %s82, %s83
      %p92 = scmp.eq.s32.totalorder %s16, 0
      %p93 = por %p91, %p92
      %p94 = scmp.ne.s32.totalorder %s82, %s83
      %p95 = scmp.eq.s32.totalorder %s17, 1
      %p96 = por %p94, %p95
      %p98 = scmp.ne.s32.totalorder %s83, %s97
      %p99 = scmp.eq.s32.totalorder %s17, 0
      %p100 = por %p98, %p99
      %s101 = ssub.s32 %s18, %s30
      %s102 = ssub.s32 %s19, %s26
      %s103 = sor.u32 %s101, %s102
      %p104 = scmp.eq.s32.totalorder %s103, 0
      %s106 = sadd.s32 %s105, 1
      %s107 = scalar_select %p104, %s105, %s106
      %p110 = pneg %p104
      %p111 = scmp.eq.s32.totalorder %s11, 1
      %p112 = por %p110, %p111
      %p113 = scmp.ne.s32.totalorder %s105, %s108
      %p114 = scmp.eq.s32.totalorder %s11, 0
      %p115 = por %p113, %p114
      %p116 = scmp.ne.s32.totalorder %s105, %s108
      %p117 = scmp.eq.s32.totalorder %s16, 1
      %p118 = por %p116, %p117
      %p119 = scmp.ne.s32.totalorder %s108, %s109
      %p120 = scmp.eq.s32.totalorder %s16, 0
      %p121 = por %p119, %p120
      %p122 = scmp.ne.s32.totalorder %s108, %s109
      %p123 = scmp.eq.s32.totalorder %s17, 1
      %p124 = por %p122, %p123
      %p126 = scmp.ne.s32.totalorder %s109, %s125
      %p127 = scmp.eq.s32.totalorder %s17, 0
      %p128 = por %p126, %p127
      %p129 = scmp.le.s32.totalorder 1, %s11
      %p130 = scmp.lt.s32.totalorder %s11, 3
      %p131 = pnand %p129, %p130
      %p132 = pneg %p131
      // Predicated region
      $region9: #{inference_forward.3} parent=5 // pred_check
        _
      $region10: #{inference_forward.3} parent=5 // pred_check_branch
        %134 = sbr.rel (%p131) target = $region12
      $region11: #{inference_forward.3} parent=5 // pred_region
        %s135 = ssub.s32 %s11, 1
        // Predicated region
        $region13: #{inference_forward.3} parent=11 // pred_check
          %p136 = pneg %p72
        $region14: #{inference_forward.3} parent=11 // pred_check_branch
          %138 = sbr.rel (%p136) target = $region16
        $region15: #{inference_forward.3} parent=11 // pred_region
          %s140 = ssub.s32 64, 64
          %141 = vsyncadd [#allocation4], %s140
          %s143 = sshll.u32 %s1, 4
          %s144 = int_to_ptr.vmem [resolvable:$true] %s143
          %146 = dma.vmem_to_smem %s144, 64, [#allocation3], [#allocation4]
        $region16: #{inference_forward.3} parent=11 // pred_fallthru
          _
        // Predicated region
        $region17: #{inference_forward.3} parent=11 // pred_check
          %p147 = pneg %p93
        $region18: #{inference_forward.3} parent=11 // pred_check_branch
          %149 = sbr.rel (%p147) target = $region20
        $region19: #{inference_forward.3} parent=11 // pred_region
          _
        $region20: #{inference_forward.3} parent=11 // pred_fallthru
          _
      $region12: #{inference_forward.3} parent=5 // pred_fallthru
        _
      %p150 = scmp.lt.s32.totalorder %s11, 2
      // Predicated region
      $region21: #{inference_forward.3} parent=5 // pred_check
        %p151 = pneg %p150
      $region22: #{inference_forward.3} parent=5 // pred_check_branch
        %153 = sbr.rel (%p151) target = $region24
      $region23: #{inference_forward.3} parent=5 // pred_region
        // Predicated region
        $region25: #{inference_forward.3} parent=23 // pred_check
          %p154 = pneg %p45
        $region26: #{inference_forward.3} parent=23 // pred_check_branch
          %156 = sbr.rel (%p154) target = $region28
        $region27: #{inference_forward.3} parent=23 // pred_region
          %p157 = scmp.lt.s32.totalorder %s18, 1
          %s158 = scalar_select %p157, %s18, 1
          %p159 = scmp.lt.s32.totalorder %s19, 0
          %s160 = scalar_select %p159, %s19, 0
          %s161 = smul.addr %s158, 3
          %s162 = sadd.s32 %s160, %s161
          %s163 = smul.addr %s162, 8
          %s164 = scalar_lea.vmem %s0, %s163
        $region28: #{inference_forward.3} parent=23 // pred_fallthru
          _
      $region24: #{inference_forward.3} parent=5 // pred_fallthru
        _
      %p165 = scmp.le.s32.totalorder 1, %s11
      %p166 = scmp.lt.s32.totalorder %s11, 3
      %p167 = pnand %p165, %p166
      %p168 = pneg %p167
      // Predicated region
      $region29: #{inference_forward.3} parent=5 // pred_check
        _
      $region30: #{inference_forward.3} parent=5 // pred_check_branch
        %170 = sbr.rel (%p167) target = $region32
      $region31: #{inference_forward.3} parent=5 // pred_region
        %s171 = ssub.s32 %s11, 1
        // Predicated region
        $region33: #{inference_forward.3} parent=31 // pred_check
          %p172 = pneg %p72
        $region34: #{inference_forward.3} parent=31 // pred_check_branch
          %174 = sbr.rel (%p172) target = $region36
        $region35: #{inference_forward.3} parent=31 // pred_region
          %175 = dma.done [#allocation4], 64
        $region36: #{inference_forward.3} parent=31 // pred_fallthru
          _
        %176 = sfence
        %p177 = scmp.lt.s32.totalorder %s20, 1
        %s178 = scalar_select %p177, %s20, 1
        %p179 = scmp.lt.s32.totalorder %s21, 0
        %s180 = scalar_select %p179, %s21, 0
        %s181 = smul.addr %s178, 3
        %s182 = sadd.s32 %s180, %s181
        %s183 = smul.addr %s182, 8
        %s184 = scalar_lea.vmem %s0, %s183
        %p185 = pneg %p51
        %p186 = pneg %p48
        %p187 = pneg %p72
        %p188 = pneg %p69
        %p189 = pneg %p93
        %p190 = pneg %p90
        %p191 = pneg %p121
        %p192 = pneg %p118
        %p193 = scmp.lt.s32.totalorder %s20, 1
        %s194 = scalar_select %p193, %s20, 1
        %p195 = scmp.lt.s32.totalorder %s21, 0
        %s196 = scalar_select %p195, %s21, 0
        %s197 = sadd.s32 %s196, %s194
        %s198 = smul.addr %s197, 8
        %s199 = scalar_lea.vmem %s3, %s198
        %p200 = scmp.lt.s32.totalorder %s20, 1
        %s201 = scalar_select %p200, %s20, 1
        %p202 = scmp.lt.s32.totalorder %s21, 0
        %s203 = scalar_select %p202, %s21, 0
        %s204 = smul.addr %s201, 3
        %s205 = sadd.s32 %s203, %s204
        %s206 = smul.addr %s205, 8
        %s207 = scalar_lea.vmem %s0, %s206
        %p208 = scmp.lt.s32.totalorder %s20, 1
        %s209 = scalar_select %p208, %s20, 1
        %p210 = scmp.lt.s32.totalorder %s21, 0
        %s211 = scalar_select %p210, %s21, 0
        %s212 = sadd.s32 %s211, %s209
        %s213 = smul.addr %s212, 8
        %s214 = scalar_lea.vmem %s3, %s213
        %v215 = vld [vmem:[%s207] sm:$0xff]
        %s216 = sld [smem:[#allocation3]]
        %v217 = vstv %s216
        %v218 = vmul.f32 %v215, %v217
        %s219 = scalar_lea.vmem %s207, 8
        %v220 = vld [vmem:[%s219] sm:$0xff]
        %s221 = sld [smem:[#allocation3 + $0x80]]
        %v222 = vstv %s221
        %v223 = vmul.f32 %v220, %v222
        %v224 = vadd.f32 %v218, %v223
        %s225 = scalar_lea.vmem %s207, 16
        %v226 = vld [vmem:[%s225] sm:$0xff]
        %s227 = sld [smem:[#allocation3 + $0x100]]
        %v228 = vstv %s227
        %v229 = vmul.f32 %v226, %v228
        %v230 = vadd.f32 %v224, %v229
        %s231 = sld [smem:[#allocation2]]
        %v232 = vstv %s231
        %v233 = vadd.f32 %v230, %v232
        %v234 = vxor.u32 %v233, 2147483648
        %v235 = vmul.f32 %v234, 1.442695
        %v236 = vpow.pop %v235
        %v237 = vadd.f32 %v236, 1.0
        %v238 = vrcp.pop %v237
        %v239 = vmul.f32 1.0, %v238
        %240 = vst [vmem:[%s214] sm:$0xff] %v239
        %p241 = scmp.lt.s32.totalorder %s20, 1
        %s242 = scalar_select %p241, %s20, 1
        %p243 = scmp.lt.s32.totalorder %s21, 0
        %s244 = scalar_select %p243, %s21, 0
        %s245 = sadd.s32 %s244, %s242
        %s246 = smul.addr %s245, 8
        %s247 = scalar_lea.vmem %s3, %s246
        // Predicated region
        $region37: #{inference_forward.3} parent=31 // pred_check
          %p248 = pneg %p118
        $region38: #{inference_forward.3} parent=31 // pred_check_branch
          %250 = sbr.rel (%p248) target = $region40
        $region39: #{inference_forward.3} parent=31 // pred_region
          _
        $region40: #{inference_forward.3} parent=31 // pred_fallthru
          _
      $region32: #{inference_forward.3} parent=5 // pred_fallthru
        _
      %p251 = scmp.le.s32.totalorder 2, %s11
      // Predicated region
      $region41: #{inference_forward.3} parent=5 // pred_check
        %p252 = pneg %p251
      $region42: #{inference_forward.3} parent=5 // pred_check_branch
        %254 = sbr.rel (%p252) target = $region44
      $region43: #{inference_forward.3} parent=5 // pred_region
        %s255 = ssub.s32 %s11, 2
        // Predicated region
        $region45: #{inference_forward.3} parent=43 // pred_check
          %p256 = pneg %p124
        $region46: #{inference_forward.3} parent=43 // pred_check_branch
          %258 = sbr.rel (%p256) target = $region48
        $region47: #{inference_forward.3} parent=43 // pred_region
          %p259 = scmp.lt.s32.totalorder %s22, 1
          %s260 = scalar_select %p259, %s22, 1
          %p261 = scmp.lt.s32.totalorder %s23, 0
          %s262 = scalar_select %p261, %s23, 0
          %s263 = sadd.s32 %s262, %s260
          %s264 = smul.addr %s263, 8
          %s265 = scalar_lea.vmem %s3, %s264
        $region48: #{inference_forward.3} parent=43 // pred_fallthru
          _
      $region44: #{inference_forward.3} parent=5 // pred_fallthru
        _
    $region6: #{inference_forward.3} parent=1 // loop_footer
      %s15 = sadd.s32 1, %s11
    $region7: #{inference_forward.3} parent=1 // loop_footer_branch
      %10 = sbr.rel target = $region3
    $region8: #{inference_forward.3} parent=1 // loop_exit
      _
    %266 = vsyncpa [#allocation4], 1
    %s267 = scalar_lea.sflag [#allocation4], 1
    %268 = vsyncpa %s267, 1

// kernel: inference_forward.4
$region0: #{inference_forward.4}
  #allocation0 [shape = 'u32[]', space=smem, size = 0x4, offset = 0x4, fixed_abs, tag = 'smem constant byte address 0x4 - core index']
  #allocation1 [shape = 'u32[144,128]{1,0:T(1,128)}', space=vmem, size = 0x12000, scoped, tag = 'internal scratch']
  %s0 = inlined_call_operand.hbm [shape: f32[6,32,32], index: 0, kind: input, shape index: {}]
  %s1 = inlined_call_operand.vmem [shape: bf16[32,64], index: 1, kind: input, shape index: {}, may-alias: {1,2}]
  %s2 = inlined_call_operand.vmem [shape: bf16[32,64], index: 2, kind: input, shape index: {}, may-alias: {1,2}]
  %s3 = inlined_call_operand.vmem [shape: f32[6,64,64], index: 3, kind: output, shape index: {}]
  %s4 = sld [smem:[#allocation0]]
  $region49: #{inference_forward.4} parent=0
    _
  %s6 = ssub.s32 1, %s4
  %s7 = scalar_select 0, %s6, %s4
  $region1: #{inference_forward.4} parent=0
    #allocation2 [shape = 'u8[98304]{0}', space=vmem, size = 0x18000, scoped, tag = 'input window, operand 0']
    #allocation3 [shape = 's32[2]{0}', space=sflag, size = 0x8, scoped, tag = 'scoped memory for inference_forward.4']
    %8 = vsyncpa [#allocation3], 0
    %s9 = scalar_lea.sflag [#allocation3], 1
    %10 = vsyncpa %s9, 0
    loop: start=0, step=1, limit=4
    $region2: #{inference_forward.4} parent=1 // loop_pre_header
      _
    $region3: #{inference_forward.4} parent=1 // loop_header
      %s12 = sphi 0, %s16
      %p13 = scmp.ge.s32.totalorder %s12, 4
      %s22 = sphi 0, %s24
      %s25 = sphi 0, %s22
      %s26 = sphi 0, %s25
      %s42 = sphi 0, %s26
      %s46 = sphi 0, %s46
      %s48 = sphi 0, %s46
      %s49 = sphi 0, %s48
      %s63 = sphi 0, %s49
      %s67 = sphi 0, %s67
      %s69 = sphi 0, %s67
      %s70 = sphi 0, %s69
      %s84 = sphi 0, %s70
      %s90 = sphi 0, %s92
      %s93 = sphi 0, %s90
      %s94 = sphi 0, %s93
      %s110 = sphi 0, %s94
    $region4: #{inference_forward.4} parent=1 // loop_header_branch
      %15 = sbr.rel (%p13) target = $region8
    $region5: #{inference_forward.4} parent=1 // loop_body
      %s17 = ssub.s32 %s12, 1
      %s18 = ssub.s32 %s12, 2
      %s19 = sadd.s32 %s12, 1
      %s20 = ssub.s32 %s12, %s19
      %p21 = scmp.eq.s32.totalorder %s20, 0
      %s23 = sadd.s32 %s22, 1
      %s24 = scalar_select %p21, %s22, %s23
      %p27 = pneg %p21
      %p28 = scmp.eq.s32.totalorder %s12, 1
      %p29 = por %p27, %p28
      %p30 = scmp.ne.s32.totalorder %s22, %s25
      %p31 = scmp.eq.s32.totalorder %s12, 0
      %p32 = por %p30, %p31
      %p33 = scmp.ne.s32.totalorder %s22, %s25
      %p34 = scmp.eq.s32.totalorder %s17, 1
      %p35 = por %p33, %p34
      %p36 = scmp.ne.s32.totalorder %s25, %s26
      %p37 = scmp.eq.s32.totalorder %s17, 0
      %p38 = por %p36, %p37
      %p39 = scmp.ne.s32.totalorder %s25, %s26
      %p40 = scmp.eq.s32.totalorder %s18, 1
      %p41 = por %p39, %p40
      %p43 = scmp.ne.s32.totalorder %s26, %s42
      %p44 = scmp.eq.s32.totalorder %s18, 0
      %p45 = por %p43, %p44
      %s47 = sadd.s32 %s46, 1
      %p50 = scmp.eq.s32.totalorder %s12, 1
      %p51 = scmp.ne.s32.totalorder %s46, %s48
      %p52 = scmp.eq.s32.totalorder %s12, 0
      %p53 = por %p51, %p52
      %p54 = scmp.ne.s32.totalorder %s46, %s48
      %p55 = scmp.eq.s32.totalorder %s17, 1
      %p56 = por %p54, %p55
      %p57 = scmp.ne.s32.totalorder %s48, %s49
      %p58 = scmp.eq.s32.totalorder %s17, 0
      %p59 = por %p57, %p58
      %p60 = scmp.ne.s32.totalorder %s48, %s49
      %p61 = scmp.eq.s32.totalorder %s18, 1
      %p62 = por %p60, %p61
      %p64 = scmp.ne.s32.totalorder %s49, %s63
      %p65 = scmp.eq.s32.totalorder %s18, 0
      %p66 = por %p64, %p65
      %s68 = sadd.s32 %s67, 1
      %p71 = scmp.eq.s32.totalorder %s12, 1
      %p72 = scmp.ne.s32.totalorder %s67, %s69
      %p73 = scmp.eq.s32.totalorder %s12, 0
      %p74 = por %p72, %p73
      %p75 = scmp.ne.s32.totalorder %s67, %s69
      %p76 = scmp.eq.s32.totalorder %s17, 1
      %p77 = por %p75, %p76
      %p78 = scmp.ne.s32.totalorder %s69, %s70
      %p79 = scmp.eq.s32.totalorder %s17, 0
      %p80 = por %p78, %p79
      %p81 = scmp.ne.s32.totalorder %s69, %s70
      %p82 = scmp.eq.s32.totalorder %s18, 1
      %p83 = por %p81, %p82
      %p85 = scmp.ne.s32.totalorder %s70, %s84
      %p86 = scmp.eq.s32.totalorder %s18, 0
      %p87 = por %p85, %p86
      %s88 = ssub.s32 %s12, %s19
      %p89 = scmp.eq.s32.totalorder %s88, 0
      %s91 = sadd.s32 %s90, 1
      %s92 = scalar_select %p89, %s90, %s91
      %p95 = pneg %p89
      %p96 = scmp.eq.s32.totalorder %s12, 1
      %p97 = por %p95, %p96
      %p98 = scmp.ne.s32.totalorder %s90, %s93
      %p99 = scmp.eq.s32.totalorder %s12, 0
      %p100 = por %p98, %p99
      %p101 = scmp.ne.s32.totalorder %s90, %s93
      %p102 = scmp.eq.s32.totalorder %s17, 1
      %p103 = por %p101, %p102
      %p104 = scmp.ne.s32.totalorder %s93, %s94
      %p105 = scmp.eq.s32.totalorder %s17, 0
      %p106 = por %p104, %p105
      %p107 = scmp.ne.s32.totalorder %s93, %s94
      %p108 = scmp.eq.s32.totalorder %s18, 1
      %p109 = por %p107, %p108
      %p111 = scmp.ne.s32.totalorder %s94, %s110
      %p112 = scmp.eq.s32.totalorder %s18, 0
      %p113 = por %p111, %p112
      %p114 = scmp.le.s32.totalorder 1, %s12
      %p115 = scmp.lt.s32.totalorder %s12, 3
      %p116 = pnand %p114, %p115
      %p117 = pneg %p116
      // Predicated region
      $region9: #{inference_forward.4} parent=5 // pred_check
        _
      $region10: #{inference_forward.4} parent=5 // pred_check_branch
        %119 = sbr.rel (%p116) target = $region12
      $region11: #{inference_forward.4} parent=5 // pred_region
        %s120 = ssub.s32 %s12, 1
        // Predicated region
        $region13: #{inference_forward.4} parent=11 // pred_check
          %p121 = pneg %p59
        $region14: #{inference_forward.4} parent=11 // pred_check_branch
          %123 = sbr.rel (%p121) target = $region16
        $region15: #{inference_forward.4} parent=11 // pred_region
          _
        $region16: #{inference_forward.4} parent=11 // pred_fallthru
          _
        // Predicated region
        $region17: #{inference_forward.4} parent=11 // pred_check
          %p124 = pneg %p80
        $region18: #{inference_forward.4} parent=11 // pred_check_branch
          %126 = sbr.rel (%p124) target = $region20
        $region19: #{inference_forward.4} parent=11 // pred_region
          _
        $region20: #{inference_forward.4} parent=11 // pred_fallthru
          _
      $region12: #{inference_forward.4} parent=5 // pred_fallthru
        _
      %p127 = scmp.lt.s32.totalorder %s12, 2
      // Predicated region
      $region21: #{inference_forward.4} parent=5 // pred_check
        %p128 = pneg %p127
      $region22: #{inference_forward.4} parent=5 // pred_check_branch
        %130 = sbr.rel (%p128) target = $region24
      $region23: #{inference_forward.4} parent=5 // pred_region
        // Predicated region
        $region25: #{inference_forward.4} parent=23 // pred_check
          %p131 = pneg %p32
        $region26: #{inference_forward.4} parent=23 // pred_check_branch
          %133 = sbr.rel (%p131) target = $region28
        $region27: #{inference_forward.4} parent=23 // pred_region
          %s134 = sand.u32 %s22, 1
          %s135 = scalar_lea.sflag [#allocation3], %s134
          %s136 = sand.u32 %s22, 1
          %s137 = smul.addr %s136, 96
          %s138 = scalar_lea.vmem [#allocation2], %s137
          %s139 = smul.u32 3, %s12
          %s141 = ssub.s32 1536, 1536
          %142 = vsyncadd %s135, %s141
          %s143 = smul.addr %s139, 4
          %s144 = smul.addr %s143, 128
          %s145 = scalar_lea.hbm %s0, %s144
          %s146 = sshll.u32 %s138, 4
          %s147 = int_to_ptr.vmem [resolvable:$true] %s146
          %152 = dma.hbm_to_vmem [thread:$0]  %s145, 1536, %s147, %s135, 128, 128, 8
        $region28: #{inference_forward.4} parent=23 // pred_fallthru
          _
      $region24: #{inference_forward.4} parent=5 // pred_fallthru
        _
      %p153 = scmp.le.s32.totalorder 1, %s12
      %p154 = scmp.lt.s32.totalorder %s12, 3
      %p155 = pnand %p153, %p154
      %p156 = pneg %p155
      // Predicated region
      $region29: #{inference_forward.4} parent=5 // pred_check
        _
      $region30: #{inference_forward.4} parent=5 // pred_check_branch
        %158 = sbr.rel (%p155) target = $region32
      $region31: #{inference_forward.4} parent=5 // pred_region
        %s159 = ssub.s32 %s12, 1
        %s160 = sand.u32 %s25, 1
        %s161 = scalar_lea.sflag [#allocation3], %s160
        %s162 = sand.u32 %s25, 1
        %s163 = smul.addr %s162, 96
        %s164 = scalar_lea.vmem [#allocation2], %s163
        // Predicated region
        $region33: #{inference_forward.4} parent=31 // pred_check
          %p165 = pneg %p38
        $region34: #{inference_forward.4} parent=31 // pred_check_branch
          %167 = sbr.rel (%p165) target = $region36
        $region35: #{inference_forward.4} parent=31 // pred_region
          %168 = dma.done %s161, 1536
        $region36: #{inference_forward.4} parent=31 // pred_fallthru
          _
        %s169 = sand.u32 %s25, 1
        %s170 = scalar_lea.sflag [#allocation3], %s169
        %s171 = sand.u32 %s25, 1
        %s172 = smul.addr %s171, 96
        %s173 = scalar_lea.vmem [#allocation2], %s172
        %p174 = pneg %p38
        %p175 = pneg %p35
        %p176 = pneg %p59
        %p177 = pneg %p56
        %p178 = pneg %p80
        %p179 = pneg %p77
        %p180 = pneg %p106
        %p181 = pneg %p103
        %s182 = smul.u32 3, %s17
        %p183 = scmp.lt.s32.totalorder %s182, 5
        %s184 = scalar_select %p183, %s182, 5
        %s185 = smul.addr %s184, 8
        %s186 = smul.addr %s185, 8
        %s187 = scalar_lea.vmem %s3, %s186
        %s188 = smul.u32 3, %s17
        %s189 = smul.u32 3, %s17
        %p190 = scmp.lt.s32.totalorder %s189, 5
        %s191 = scalar_select %p190, %s189, 5
        %s192 = smul.addr %s191, 8
        %s193 = smul.addr %s192, 8
        %s194 = scalar_lea.vmem %s3, %s193
        %s195 = smul.u32 3, %s17
        %v197 = vld [vmem:[%s164] sm:$0xff]
        %v198 = vld [vmem:[%s164 + $0x8] sm:$0xff]
        %v199 = vld [vmem:[%s164 + $0x10] sm:$0xff]
        %v200 = vld [vmem:[%s164 + $0x18] sm:$0xff]
        %v201 = vld [vmem:[%s164 + $0x20] sm:$0xff]
        %v202 = vld [vmem:[%s164 + $0x28] sm:$0xff]
        %v203 = vld [vmem:[%s164 + $0x30] sm:$0xff]
        %v204 = vld [vmem:[%s164 + $0x38] sm:$0xff]
        %v205 = vld [vmem:[%s164 + $0x40] sm:$0xff]
        %v206 = vld [vmem:[%s164 + $0x48] sm:$0xff]
        %v207 = vld [vmem:[%s164 + $0x50] sm:$0xff]
        %v208 = vld [vmem:[%s164 + $0x58] sm:$0xff]
        %v209 = vpack.c.bf16 %v198, %v197
        %v210 = vpack.c.bf16 %v200, %v199
        %v211 = vpack.c.bf16 %v202, %v201
        %v212 = vpack.c.bf16 %v204, %v203
        %v213 = vpack.c.bf16 %v206, %v205
        %v214 = vpack.c.bf16 %v208, %v207
        %v215 = vld [vmem:[%s2] sm:$0xf]
        %v216 = vld [vmem:[%s2 + $0x4] sm:$0xf]
        %v217 = vld [vmem:[%s2 + $0x8] sm:$0xf]
        %v218 = vld [vmem:[%s2 + $0xc] sm:$0xf]
        %v223 = vunpack.c.l.b16 %v215
        %v224 = vunpack.c.l.b16 %v216
        %v225 = vunpack.c.l.b16 %v217
        %v226 = vunpack.c.l.b16 %v218
        %v227 = vpack.c.b16 %v224, %v223
        %v228 = vpack.c.b16 %v226, %v225
        %vm231 = vcmask 261120
        %v233 = vsel %vm231, %v209, 0
        %v236 = vsel %vm231, %v210, 0
        %v239 = vsel %vm231, %v211, 0
        %v242 = vsel %vm231, %v212, 0
        %v245 = vsel %vm231, %v213, 0
        %v248 = vsel %vm231, %v214, 0
        %250 = vmatprep.subr.bf16.mxu0 0
        %251 = vmatpush1.bf16.msra.mxu0 0
        %252 = vmatprep.subr.bf16.mxu0 0
        %253 = vmatpush1.bf16.msra.mxu0 0
        %254 = vmatprep.subr.bf16.mxu0 0
        %255 = vmatpush1.bf16.msra.mxu0 0
        %256 = vmatprep.subr.bf16.mxu0 0
        %257 = vmatpush1.bf16.msra.mxu0 0
        %258 = vmatprep.subr.bf16.mxu0 0
        %259 = vmatpush1.bf16.msra.mxu0 0
        %260 = vmatprep.subr.bf16.mxu0 0
        %261 = vmatpush1.bf16.msra.mxu0 0
        %262 = vmatprep.subr.bf16.mxu0 0
        %263 = vmatpush1.bf16.msra.mxu0 %v228
        %264 = vmatprep.subr.bf16.mxu0 0
        %265 = vmatpush1.bf16.msra.mxu0 %v227
        %266 = vmatprep.subr.bf16.mxu0 0
        %267 = vmatpush2.bf16.msra.mxu0 0
        %268 = vmatprep.subr.bf16.mxu0 0
        %269 = vmatpush2.bf16.msra.mxu0 0
        %270 = vmatprep.subr.bf16.mxu0 0
        %271 = vmatpush2.bf16.msra.mxu0 0
        %272 = vmatprep.subr.bf16.mxu0 0
        %273 = vmatpush2.bf16.msra.mxu0 0
        %274 = vmatprep.subr.bf16.mxu0 0
        %275 = vmatpush2.bf16.msra.mxu0 0
        %276 = vmatprep.subr.bf16.mxu0 0
        %277 = vmatpush2.bf16.msra.mxu0 0
        %278 = vmatprep.subr.bf16.mxu0 0
        %279 = vmatpush2.bf16.msra.mxu0 0
        %280 = vmatprep.subr.bf16.mxu0 0
        %281 = vmatpush2.bf16.msra.mxu0 0
        %282 = vmatprep.mubr.bf16.mxu0 0
        %283 = vmatmul.mubr.bf16.gmra.mxu0 %v233
        %v284 = vpop.f32.mrf.mxu0
        %v285 = vadd.f32 0.0, %v284
        %v286 = vpop.f32.mrf.mxu0
        %v287 = vpop.f32.mrf.mxu0
        %v288 = vadd.f32 0.0, %v287
        %v289 = vpop.f32.mrf.mxu0
        %290 = vmatprep.mubr.bf16.mxu0 0
        %291 = vmatmul.mubr.bf16.gmra.mxu0 %v236
        %v292 = vpop.f32.mrf.mxu0
        %v293 = vadd.f32 0.0, %v292
        %v294 = vpop.f32.mrf.mxu0
        %v295 = vpop.f32.mrf.mxu0
        %v296 = vadd.f32 0.0, %v295
        %v297 = vpop.f32.mrf.mxu0
        %298 = vmatprep.mubr.bf16.mxu0 0
        %299 = vmatmul.mubr.bf16.gmra.mxu0 %v239
        %v300 = vpop.f32.mrf.mxu0
        %v301 = vadd.f32 0.0, %v300
        %v302 = vpop.f32.mrf.mxu0
        %v303 = vpop.f32.mrf.mxu0
        %v304 = vadd.f32 0.0, %v303
        %v305 = vpop.f32.mrf.mxu0
        %306 = vmatprep.mubr.bf16.mxu0 0
        %307 = vmatmul.mubr.bf16.gmra.mxu0 %v242
        %v308 = vpop.f32.mrf.mxu0
        %v309 = vadd.f32 0.0, %v308
        %v310 = vpop.f32.mrf.mxu0
        %v311 = vpop.f32.mrf.mxu0
        %v312 = vadd.f32 0.0, %v311
        %v313 = vpop.f32.mrf.mxu0
        %314 = vmatprep.mubr.bf16.mxu0 0
        %315 = vmatmul.mubr.bf16.gmra.mxu0 %v245
        %v316 = vpop.f32.mrf.mxu0
        %v317 = vadd.f32 0.0, %v316
        %v318 = vpop.f32.mrf.mxu0
        %v319 = vpop.f32.mrf.mxu0
        %v320 = vadd.f32 0.0, %v319
        %v321 = vpop.f32.mrf.mxu0
        %322 = vmatprep.mubr.bf16.mxu0 0
        %323 = vmatmul.mubr.bf16.gmra.mxu0 %v248
        %v324 = vpop.f32.mrf.mxu0
        %v325 = vadd.f32 0.0, %v324
        %v326 = vpop.f32.mrf.mxu0
        %v327 = vpop.f32.mrf.mxu0
        %v328 = vadd.f32 0.0, %v327
        %v329 = vpop.f32.mrf.mxu0
        %330 = vdwg.mxu0
        %331 = vxpose.xlu0.b32.start [1/16] %v285, 128
        %332 = vxpose.xlu0.b32.cont [2/16] %v288, 128
        %333 = vxpose.xlu0.b32.cont [3/16] %v293, 128
        %334 = vxpose.xlu0.b32.cont [4/16] %v296, 128
        %335 = vxpose.xlu0.b32.cont [5/16] 0.0, 128
        %336 = vxpose.xlu0.b32.cont [6/16] 0.0, 128
        %337 = vxpose.xlu0.b32.cont [7/16] 0.0, 128
        %338 = vxpose.xlu0.b32.cont [8/16] 0.0, 128
        %339 = vxpose.xlu0.b32.cont [9/16] 0.0, 128
        %340 = vxpose.xlu0.b32.cont [10/16] 0.0, 128
        %341 = vxpose.xlu0.b32.cont [11/16] 0.0, 128
        %342 = vxpose.xlu0.b32.cont [12/16] 0.0, 128
        %343 = vxpose.xlu0.b32.cont [13/16] 0.0, 128
        %344 = vxpose.xlu0.b32.cont [14/16] 0.0, 128
        %345 = vxpose.xlu0.b32.cont [15/16] 0.0, 128
        %346 = vxpose.xlu0.b32.end [16/16] 0.0, 128
        %v347 = vpop.trf.xlu0
        %v348 = vpop.trf.xlu0
        %v349 = vpop.trf.xlu0
        %v350 = vpop.trf.xlu0
        %v351 = vpop.trf.xlu0
        %v352 = vpop.trf.xlu0
        %v353 = vpop.trf.xlu0
        %v354 = vpop.trf.xlu0
        %v355 = vpop.trf.xlu0
        %v356 = vpop.trf.xlu0
        %v357 = vpop.trf.xlu0
        %v358 = vpop.trf.xlu0
        %v359 = vpop.trf.xlu0
        %v360 = vpop.trf.xlu0
        %v361 = vpop.trf.xlu0
        %v362 = vpop.trf.xlu0
        %363 = vxpose.xlu0.b32.start [1/16] %v301, 128
        %364 = vxpose.xlu0.b32.cont [2/16] %v304, 128
        %365 = vxpose.xlu0.b32.cont [3/16] %v309, 128
        %366 = vxpose.xlu0.b32.cont [4/16] %v312, 128
        %367 = vxpose.xlu0.b32.cont [5/16] 0.0, 128
        %368 = vxpose.xlu0.b32.cont [6/16] 0.0, 128
        %369 = vxpose.xlu0.b32.cont [7/16] 0.0, 128
        %370 = vxpose.xlu0.b32.cont [8/16] 0.0, 128
        %371 = vxpose.xlu0.b32.cont [9/16] 0.0, 128
        %372 = vxpose.xlu0.b32.cont [10/16] 0.0, 128
        %373 = vxpose.xlu0.b32.cont [11/16] 0.0, 128
        %374 = vxpose.xlu0.b32.cont [12/16] 0.0, 128
        %375 = vxpose.xlu0.b32.cont [13/16] 0.0, 128
        %376 = vxpose.xlu0.b32.cont [14/16] 0.0, 128
        %377 = vxpose.xlu0.b32.cont [15/16] 0.0, 128
        %378 = vxpose.xlu0.b32.end [16/16] 0.0, 128
        %v379 = vpop.trf.xlu0
        %v380 = vpop.trf.xlu0
        %v381 = vpop.trf.xlu0
        %v382 = vpop.trf.xlu0
        %v383 = vpop.trf.xlu0
        %v384 = vpop.trf.xlu0
        %v385 = vpop.trf.xlu0
        %v386 = vpop.trf.xlu0
        %v387 = vpop.trf.xlu0
        %v388 = vpop.trf.xlu0
        %v389 = vpop.trf.xlu0
        %v390 = vpop.trf.xlu0
        %v391 = vpop.trf.xlu0
        %v392 = vpop.trf.xlu0
        %v393 = vpop.trf.xlu0
        %v394 = vpop.trf.xlu0
        %395 = vxpose.xlu0.b32.start [1/16] %v317, 128
        %396 = vxpose.xlu0.b32.cont [2/16] %v320, 128
        %397 = vxpose.xlu0.b32.cont [3/16] %v325, 128
        %398 = vxpose.xlu0.b32.cont [4/16] %v328, 128
        %399 = vxpose.xlu0.b32.cont [5/16] 0.0, 128
        %400 = vxpose.xlu0.b32.cont [6/16] 0.0, 128
        %401 = vxpose.xlu0.b32.cont [7/16] 0.0, 128
        %402 = vxpose.xlu0.b32.cont [8/16] 0.0, 128
        %403 = vxpose.xlu0.b32.cont [9/16] 0.0, 128
        %404 = vxpose.xlu0.b32.cont [10/16] 0.0, 128
        %405 = vxpose.xlu0.b32.cont [11/16] 0.0, 128
        %406 = vxpose.xlu0.b32.cont [12/16] 0.0, 128
        %407 = vxpose.xlu0.b32.cont [13/16] 0.0, 128
        %408 = vxpose.xlu0.b32.cont [14/16] 0.0, 128
        %409 = vxpose.xlu0.b32.cont [15/16] 0.0, 128
        %410 = vxpose.xlu0.b32.end [16/16] 0.0, 128
        %v411 = vpop.trf.xlu0
        %v412 = vpop.trf.xlu0
        %v413 = vpop.trf.xlu0
        %v414 = vpop.trf.xlu0
        %v415 = vpop.trf.xlu0
        %v416 = vpop.trf.xlu0
        %v417 = vpop.trf.xlu0
        %v418 = vpop.trf.xlu0
        %v419 = vpop.trf.xlu0
        %v420 = vpop.trf.xlu0
        %v421 = vpop.trf.xlu0
        %v422 = vpop.trf.xlu0
        %v423 = vpop.trf.xlu0
        %v424 = vpop.trf.xlu0
        %v425 = vpop.trf.xlu0
        %v426 = vpop.trf.xlu0
        %v427 = vpack.c.bf16 %v348, %v347
        %v428 = vpack.c.bf16 %v350, %v349
        %v429 = vpack.c.bf16 %v352, %v351
        %v430 = vpack.c.bf16 %v354, %v353
        %v431 = vpack.c.bf16 %v380, %v379
        %v432 = vpack.c.bf16 %v382, %v381
        %v433 = vpack.c.bf16 %v384, %v383
        %v434 = vpack.c.bf16 %v386, %v385
        %v435 = vpack.c.bf16 %v412, %v411
        %v436 = vpack.c.bf16 %v414, %v413
        %v437 = vpack.c.bf16 %v416, %v415
        %v438 = vpack.c.bf16 %v418, %v417
        %v439 = vld [vmem:[%s1] sm:$0xf]
        %v440 = vld [vmem:[%s1 + $0x4] sm:$0xf]
        %v441 = vld [vmem:[%s1 + $0x8] sm:$0xf]
        %v442 = vld [vmem:[%s1 + $0xc] sm:$0xf]
        %v447 = vunpack.c.l.b16 %v439
        %v448 = vunpack.c.l.b16 %v440
        %v449 = vunpack.c.l.b16 %v441
        %v450 = vunpack.c.l.b16 %v442
        %v451 = vpack.c.b16 %v448, %v447
        %v452 = vpack.c.b16 %v450, %v449
        %v456 = vsel %vm231, %v427, 0
        %v459 = vsel %vm231, %v428, 0
        %v462 = vsel %vm231, %v429, 0
        %v465 = vsel %vm231, %v430, 0
        %v468 = vsel %vm231, %v431, 0
        %v471 = vsel %vm231, %v432, 0
        %v474 = vsel %vm231, %v433, 0
        %v477 = vsel %vm231, %v434, 0
        %v480 = vsel %vm231, %v435, 0
        %v483 = vsel %vm231, %v436, 0
        %v486 = vsel %vm231, %v437, 0
        %v489 = vsel %vm231, %v438, 0
        %491 = vmatprep.subr.bf16.mxu0 0
        %492 = vmatpush1.bf16.msra.mxu0 0
        %493 = vmatprep.subr.bf16.mxu0 0
        %494 = vmatpush1.bf16.msra.mxu0 0
        %495 = vmatprep.subr.bf16.mxu0 0
        %496 = vmatpush1.bf16.msra.mxu0 0
        %497 = vmatprep.subr.bf16.mxu0 0
        %498 = vmatpush1.bf16.msra.mxu0 0
        %499 = vmatprep.subr.bf16.mxu0 0
        %500 = vmatpush1.bf16.msra.mxu0 0
        %501 = vmatprep.subr.bf16.mxu0 0
        %502 = vmatpush1.bf16.msra.mxu0 0
        %503 = vmatprep.subr.bf16.mxu0 0
        %504 = vmatpush1.bf16.msra.mxu0 %v452
        %505 = vmatprep.subr.bf16.mxu0 0
        %506 = vmatpush1.bf16.msra.mxu0 %v451
        %507 = vmatprep.subr.bf16.mxu0 0
        %508 = vmatpush2.bf16.msra.mxu0 0
        %509 = vmatprep.subr.bf16.mxu0 0
        %510 = vmatpush2.bf16.msra.mxu0 0
        %511 = vmatprep.subr.bf16.mxu0 0
        %512 = vmatpush2.bf16.msra.mxu0 0
        %513 = vmatprep.subr.bf16.mxu0 0
        %514 = vmatpush2.bf16.msra.mxu0 0
        %515 = vmatprep.subr.bf16.mxu0 0
        %516 = vmatpush2.bf16.msra.mxu0 0
        %517 = vmatprep.subr.bf16.mxu0 0
        %518 = vmatpush2.bf16.msra.mxu0 0
        %519 = vmatprep.subr.bf16.mxu0 0
        %520 = vmatpush2.bf16.msra.mxu0 0
        %521 = vmatprep.subr.bf16.mxu0 0
        %522 = vmatpush2.bf16.msra.mxu0 0
        %523 = vmatprep.mubr.bf16.mxu0 0
        %524 = vmatmul.mubr.bf16.gmra.mxu0 %v456
        %v525 = vpop.f32.mrf.mxu0
        %v526 = vadd.f32 0.0, %v525
        %v527 = vpop.f32.mrf.mxu0
        %v528 = vpop.f32.mrf.mxu0
        %v529 = vadd.f32 0.0, %v528
        %v530 = vpop.f32.mrf.mxu0
        %531 = vmatprep.mubr.bf16.mxu0 0
        %532 = vmatmul.mubr.bf16.gmra.mxu0 %v459
        %v533 = vpop.f32.mrf.mxu0
        %v534 = vadd.f32 0.0, %v533
        %v535 = vpop.f32.mrf.mxu0
        %v536 = vpop.f32.mrf.mxu0
        %v537 = vadd.f32 0.0, %v536
        %v538 = vpop.f32.mrf.mxu0
        %539 = vmatprep.mubr.bf16.mxu0 0
        %540 = vmatmul.mubr.bf16.gmra.mxu0 %v462
        %v541 = vpop.f32.mrf.mxu0
        %v542 = vadd.f32 0.0, %v541
        %v543 = vpop.f32.mrf.mxu0
        %v544 = vpop.f32.mrf.mxu0
        %v545 = vadd.f32 0.0, %v544
        %v546 = vpop.f32.mrf.mxu0
        %547 = vmatprep.mubr.bf16.mxu0 0
        %548 = vmatmul.mubr.bf16.gmra.mxu0 %v465
        %v549 = vpop.f32.mrf.mxu0
        %v550 = vadd.f32 0.0, %v549
        %v551 = vpop.f32.mrf.mxu0
        %v552 = vpop.f32.mrf.mxu0
        %v553 = vadd.f32 0.0, %v552
        %v554 = vpop.f32.mrf.mxu0
        %555 = vmatprep.mubr.bf16.mxu0 0
        %556 = vmatmul.mubr.bf16.gmra.mxu0 %v468
        %v557 = vpop.f32.mrf.mxu0
        %v558 = vadd.f32 0.0, %v557
        %v559 = vpop.f32.mrf.mxu0
        %v560 = vpop.f32.mrf.mxu0
        %v561 = vadd.f32 0.0, %v560
        %v562 = vpop.f32.mrf.mxu0
        %563 = vmatprep.mubr.bf16.mxu0 0
        %564 = vmatmul.mubr.bf16.gmra.mxu0 %v471
        %v565 = vpop.f32.mrf.mxu0
        %v566 = vadd.f32 0.0, %v565
        %v567 = vpop.f32.mrf.mxu0
        %v568 = vpop.f32.mrf.mxu0
        %v569 = vadd.f32 0.0, %v568
        %v570 = vpop.f32.mrf.mxu0
        %571 = vmatprep.mubr.bf16.mxu0 0
        %572 = vmatmul.mubr.bf16.gmra.mxu0 %v474
        %v573 = vpop.f32.mrf.mxu0
        %v574 = vadd.f32 0.0, %v573
        %v575 = vpop.f32.mrf.mxu0
        %v576 = vpop.f32.mrf.mxu0
        %v577 = vadd.f32 0.0, %v576
        %v578 = vpop.f32.mrf.mxu0
        %579 = vmatprep.mubr.bf16.mxu0 0
        %580 = vmatmul.mubr.bf16.gmra.mxu0 %v477
        %v581 = vpop.f32.mrf.mxu0
        %v582 = vadd.f32 0.0, %v581
        %v583 = vpop.f32.mrf.mxu0
        %v584 = vpop.f32.mrf.mxu0
        %v585 = vadd.f32 0.0, %v584
        %v586 = vpop.f32.mrf.mxu0
        %587 = vmatprep.mubr.bf16.mxu0 0
        %588 = vmatmul.mubr.bf16.gmra.mxu0 %v480
        %v589 = vpop.f32.mrf.mxu0
        %v590 = vadd.f32 0.0, %v589
        %v591 = vpop.f32.mrf.mxu0
        %v592 = vpop.f32.mrf.mxu0
        %v593 = vadd.f32 0.0, %v592
        %v594 = vpop.f32.mrf.mxu0
        %595 = vmatprep.mubr.bf16.mxu0 0
        %596 = vmatmul.mubr.bf16.gmra.mxu0 %v483
        %v597 = vpop.f32.mrf.mxu0
        %v598 = vadd.f32 0.0, %v597
        %v599 = vpop.f32.mrf.mxu0
        %v600 = vpop.f32.mrf.mxu0
        %v601 = vadd.f32 0.0, %v600
        %v602 = vpop.f32.mrf.mxu0
        %603 = vmatprep.mubr.bf16.mxu0 0
        %604 = vmatmul.mubr.bf16.gmra.mxu0 %v486
        %v605 = vpop.f32.mrf.mxu0
        %v606 = vadd.f32 0.0, %v605
        %v607 = vpop.f32.mrf.mxu0
        %v608 = vpop.f32.mrf.mxu0
        %v609 = vadd.f32 0.0, %v608
        %v610 = vpop.f32.mrf.mxu0
        %611 = vmatprep.mubr.bf16.mxu0 0
        %612 = vmatmul.mubr.bf16.gmra.mxu0 %v489
        %v613 = vpop.f32.mrf.mxu0
        %v614 = vadd.f32 0.0, %v613
        %v615 = vpop.f32.mrf.mxu0
        %v616 = vpop.f32.mrf.mxu0
        %v617 = vadd.f32 0.0, %v616
        %v618 = vpop.f32.mrf.mxu0
        %619 = vdwg.mxu0
        %620 = vxpose.xlu0.b32.start [1/16] %v526, 128
        %621 = vxpose.xlu0.b32.cont [2/16] %v529, 128
        %622 = vxpose.xlu0.b32.cont [3/16] %v534, 128
        %623 = vxpose.xlu0.b32.cont [4/16] %v537, 128
        %624 = vxpose.xlu0.b32.cont [5/16] %v542, 128
        %625 = vxpose.xlu0.b32.cont [6/16] %v545, 128
        %626 = vxpose.xlu0.b32.cont [7/16] %v550, 128
        %627 = vxpose.xlu0.b32.cont [8/16] %v553, 128
        %628 = vxpose.xlu0.b32.cont [9/16] 0.0, 128
        %629 = vxpose.xlu0.b32.cont [10/16] 0.0, 128
        %630 = vxpose.xlu0.b32.cont [11/16] 0.0, 128
        %631 = vxpose.xlu0.b32.cont [12/16] 0.0, 128
        %632 = vxpose.xlu0.b32.cont [13/16] 0.0, 128
        %633 = vxpose.xlu0.b32.cont [14/16] 0.0, 128
        %634 = vxpose.xlu0.b32.cont [15/16] 0.0, 128
        %635 = vxpose.xlu0.b32.end [16/16] 0.0, 128
        %v636 = vpop.trf.xlu0
        %v637 = vpop.trf.xlu0
        %v638 = vpop.trf.xlu0
        %v639 = vpop.trf.xlu0
        %v640 = vpop.trf.xlu0
        %v641 = vpop.trf.xlu0
        %v642 = vpop.trf.xlu0
        %v643 = vpop.trf.xlu0
        %v644 = vpop.trf.xlu0
        %v645 = vpop.trf.xlu0
        %v646 = vpop.trf.xlu0
        %v647 = vpop.trf.xlu0
        %v648 = vpop.trf.xlu0
        %v649 = vpop.trf.xlu0
        %v650 = vpop.trf.xlu0
        %v651 = vpop.trf.xlu0
        %652 = vxpose.xlu0.b32.start [1/16] %v558, 128
        %653 = vxpose.xlu0.b32.cont [2/16] %v561, 128
        %654 = vxpose.xlu0.b32.cont [3/16] %v566, 128
        %655 = vxpose.xlu0.b32.cont [4/16] %v569, 128
        %656 = vxpose.xlu0.b32.cont [5/16] %v574, 128
        %657 = vxpose.xlu0.b32.cont [6/16] %v577, 128
        %658 = vxpose.xlu0.b32.cont [7/16] %v582, 128
        %659 = vxpose.xlu0.b32.cont [8/16] %v585, 128
        %660 = vxpose.xlu0.b32.cont [9/16] 0.0, 128
        %661 = vxpose.xlu0.b32.cont [10/16] 0.0, 128
        %662 = vxpose.xlu0.b32.cont [11/16] 0.0, 128
        %663 = vxpose.xlu0.b32.cont [12/16] 0.0, 128
        %664 = vxpose.xlu0.b32.cont [13/16] 0.0, 128
        %665 = vxpose.xlu0.b32.cont [14/16] 0.0, 128
        %666 = vxpose.xlu0.b32.cont [15/16] 0.0, 128
        %667 = vxpose.xlu0.b32.end [16/16] 0.0, 128
        %v668 = vpop.trf.xlu0
        %v669 = vpop.trf.xlu0
        %v670 = vpop.trf.xlu0
        %v671 = vpop.trf.xlu0
        %v672 = vpop.trf.xlu0
        %v673 = vpop.trf.xlu0
        %v674 = vpop.trf.xlu0
        %v675 = vpop.trf.xlu0
        %v676 = vpop.trf.xlu0
        %v677 = vpop.trf.xlu0
        %v678 = vpop.trf.xlu0
        %v679 = vpop.trf.xlu0
        %v680 = vpop.trf.xlu0
        %v681 = vpop.trf.xlu0
        %v682 = vpop.trf.xlu0
        %v683 = vpop.trf.xlu0
        %684 = vxpose.xlu0.b32.start [1/16] %v590, 128
        %685 = vxpose.xlu0.b32.cont [2/16] %v593, 128
        %686 = vxpose.xlu0.b32.cont [3/16] %v598, 128
        %687 = vxpose.xlu0.b32.cont [4/16] %v601, 128
        %688 = vxpose.xlu0.b32.cont [5/16] %v606, 128
        %689 = vxpose.xlu0.b32.cont [6/16] %v609, 128
        %690 = vxpose.xlu0.b32.cont [7/16] %v614, 128
        %691 = vxpose.xlu0.b32.cont [8/16] %v617, 128
        %692 = vxpose.xlu0.b32.cont [9/16] 0.0, 128
        %693 = vxpose.xlu0.b32.cont [10/16] 0.0, 128
        %694 = vxpose.xlu0.b32.cont [11/16] 0.0, 128
        %695 = vxpose.xlu0.b32.cont [12/16] 0.0, 128
        %696 = vxpose.xlu0.b32.cont [13/16] 0.0, 128
        %697 = vxpose.xlu0.b32.cont [14/16] 0.0, 128
        %698 = vxpose.xlu0.b32.cont [15/16] 0.0, 128
        %699 = vxpose.xlu0.b32.end [16/16] 0.0, 128
        %v700 = vpop.trf.xlu0
        %v701 = vpop.trf.xlu0
        %v702 = vpop.trf.xlu0
        %v703 = vpop.trf.xlu0
        %v704 = vpop.trf.xlu0
        %v705 = vpop.trf.xlu0
        %v706 = vpop.trf.xlu0
        %v707 = vpop.trf.xlu0
        %v708 = vpop.trf.xlu0
        %v709 = vpop.trf.xlu0
        %v710 = vpop.trf.xlu0
        %v711 = vpop.trf.xlu0
        %v712 = vpop.trf.xlu0
        %v713 = vpop.trf.xlu0
        %v714 = vpop.trf.xlu0
        %v715 = vpop.trf.xlu0
        %vm716 = vcmask 523264
        %717 = vst.msk [vmem:[%s194] sm:$0xff] %vm716, %v636
        %718 = vst.msk [vmem:[%s194 + $0x8] sm:$0xff] %vm716, %v637
        %719 = vst.msk [vmem:[%s194 + $0x10] sm:$0xff] %vm716, %v638
        %720 = vst.msk [vmem:[%s194 + $0x18] sm:$0xff] %vm716, %v639
        %721 = vst.msk [vmem:[%s194 + $0x20] sm:$0xff] %vm716, %v640
        %722 = vst.msk [vmem:[%s194 + $0x28] sm:$0xff] %vm716, %v641
        %723 = vst.msk [vmem:[%s194 + $0x30] sm:$0xff] %vm716, %v642
        %724 = vst.msk [vmem:[%s194 + $0x38] sm:$0xff] %vm716, %v643
        %725 = vst.msk [vmem:[%s194 + $0x40] sm:$0xff] %vm716, %v668
        %726 = vst.msk [vmem:[%s194 + $0x48] sm:$0xff] %vm716, %v669
        %727 = vst.msk [vmem:[%s194 + $0x50] sm:$0xff] %vm716, %v670
        %728 = vst.msk [vmem:[%s194 + $0x58] sm:$0xff] %vm716, %v671
        %729 = vst.msk [vmem:[%s194 + $0x60] sm:$0xff] %vm716, %v672
        %730 = vst.msk [vmem:[%s194 + $0x68] sm:$0xff] %vm716, %v673
        %731 = vst.msk [vmem:[%s194 + $0x70] sm:$0xff] %vm716, %v674
        %732 = vst.msk [vmem:[%s194 + $0x78] sm:$0xff] %vm716, %v675
        %733 = vst.msk [vmem:[%s194 + $0x80] sm:$0xff] %vm716, %v700
        %734 = vst.msk [vmem:[%s194 + $0x88] sm:$0xff] %vm716, %v701
        %735 = vst.msk [vmem:[%s194 + $0x90] sm:$0xff] %vm716, %v702
        %736 = vst.msk [vmem:[%s194 + $0x98] sm:$0xff] %vm716, %v703
        %737 = vst.msk [vmem:[%s194 + $0xa0] sm:$0xff] %vm716, %v704
        %738 = vst.msk [vmem:[%s194 + $0xa8] sm:$0xff] %vm716, %v705
        %739 = vst.msk [vmem:[%s194 + $0xb0] sm:$0xff] %vm716, %v706
        %740 = vst.msk [vmem:[%s194 + $0xb8] sm:$0xff] %vm716, %v707
        %s741 = smul.u32 3, %s17
        %p742 = scmp.lt.s32.totalorder %s741, 5
        %s743 = scalar_select %p742, %s741, 5
        %s744 = smul.addr %s743, 8
        %s745 = smul.addr %s744, 8
        %s746 = scalar_lea.vmem %s3, %s745
        // Predicated region
        $region37: #{inference_forward.4} parent=31 // pred_check
          %p747 = pneg %p103
        $region38: #{inference_forward.4} parent=31 // pred_check_branch
          %749 = sbr.rel (%p747) target = $region40
        $region39: #{inference_forward.4} parent=31 // pred_region
          %s750 = smul.u32 3, %s17
        $region40: #{inference_forward.4} parent=31 // pred_fallthru
          _
      $region32: #{inference_forward.4} parent=5 // pred_fallthru
        _
      %p751 = scmp.le.s32.totalorder 2, %s12
      // Predicated region
      $region41: #{inference_forward.4} parent=5 // pred_check
        %p752 = pneg %p751
      $region42: #{inference_forward.4} parent=5 // pred_check_branch
        %754 = sbr.rel (%p752) target = $region44
      $region43: #{inference_forward.4} parent=5 // pred_region
        %s755 = ssub.s32 %s12, 2
        // Predicated region
        $region45: #{inference_forward.4} parent=43 // pred_check
          %p756 = pneg %p109
        $region46: #{inference_forward.4} parent=43 // pred_check_branch
          %758 = sbr.rel (%p756) target = $region48
        $region47: #{inference_forward.4} parent=43 // pred_region
          %s759 = smul.u32 3, %s18
          %p760 = scmp.lt.s32.totalorder %s759, 5
          %s761 = scalar_select %p760, %s759, 5
          %s762 = smul.addr %s761, 8
          %s763 = smul.addr %s762, 8
          %s764 = scalar_lea.vmem %s3, %s763
        $region48: #{inference_forward.4} parent=43 // pred_fallthru
          _
      $region44: #{inference_forward.4} parent=5 // pred_fallthru
        _
    $region6: #{inference_forward.4} parent=1 // loop_footer
      %s16 = sadd.s32 1, %s12
    $region7: #{inference_forward.4} parent=1 // loop_footer_branch
      %11 = sbr.rel target = $region3
    $region8: #{inference_forward.4} parent=1 // loop_exit
      _
    %765 = vsyncpa [#allocation3], 1
    %s766 = scalar_lea.sflag [#allocation3], 1
    %767 = vsyncpa %s766, 1

// kernel: inference_forward.5
$region0: #{inference_forward.5}
  #allocation0 [shape = 'u32[]', space=smem, size = 0x4, offset = 0x4, fixed_abs, tag = 'smem constant byte address 0x4 - core index']
  #allocation1 [shape = 'u32[144,128]{1,0:T(1,128)}', space=vmem, size = 0x12000, scoped, tag = 'internal scratch']
  #allocation2 [shape = 'f32[1]{0:T(128)S(6)}', space=smem, size = 0x200, scoped, tag = 'scoped memory for inference_forward.5']
  #allocation3 [shape = 'f32[1]{0:T(128)S(6)}', space=smem, size = 0x200, scoped, tag = 'scoped memory for inference_forward.5']
  %s0 = inlined_call_operand.vmem [shape: f32[2,3,64,64], index: 0, kind: input, shape index: {}]
  %s1 = inlined_call_operand.vmem [shape: f32[3,1], index: 1, kind: input, shape index: {}]
  %s2 = inlined_call_operand.<no memory space> [shape: f32[1], index: 2, kind: input, shape index: {}]
  %s3 = inlined_call_operand.vmem [shape: bf16[32,64], index: 3, kind: input, shape index: {}]
  %s4 = inlined_call_operand.vmem [shape: bf16[64,32], index: 4, kind: input, shape index: {}]
  %s5 = inlined_call_operand.vmem [shape: bf16[64,32], index: 5, kind: input, shape index: {}]
  %s6 = inlined_call_operand.vmem [shape: bf16[32,64], index: 6, kind: input, shape index: {}]
  %s7 = inlined_call_operand.vmem [shape: f32[3,1], index: 7, kind: input, shape index: {}]
  %s8 = inlined_call_operand.<no memory space> [shape: f32[1], index: 8, kind: input, shape index: {}]
  %s9 = inlined_call_operand.vmem [shape: f32[3,8], index: 9, kind: input, shape index: {}]
  %s10 = inlined_call_operand.vmem [shape: f32[8], index: 10, kind: input, shape index: {}]
  %s11 = inlined_call_operand.vmem [shape: f32[8,3], index: 11, kind: input, shape index: {}]
  %s12 = inlined_call_operand.vmem [shape: f32[3], index: 12, kind: input, shape index: {}]
  %s13 = inlined_call_operand.hbm [shape: f32[2,3,64,64], index: 13, kind: output, shape index: {}]
  %s14 = sld [smem:[#allocation0]]
  $region109: #{inference_forward.5} parent=0
    _
  %s16 = ssub.s32 1, %s14
  %s17 = scalar_select 0, %s16, %s14
  %18 = sst [smem:[#allocation2]] %s2
  %19 = sst [smem:[#allocation3]] %s8
  $region1: #{inference_forward.5} parent=0
    #allocation4 [shape = 'u8[2048]{0}', space=smem, size = 0x800, scoped, tag = 'input window, operand 1, single buffered']
    #allocation5 [shape = 's32[2]{0}', space=sflag, size = 0x8, scoped, tag = 'scoped memory for inference_forward.5']
    #allocation6 [shape = 's32[2]{0}', space=sflag, size = 0x8, scoped, tag = 'scoped memory for inference_forward.5']
    #allocation7 [shape = 'u8[2048]{0}', space=smem, size = 0x800, scoped, tag = 'input window, operand 7, single buffered']
    #allocation8 [shape = 's32[1]{0}', space=sflag, size = 0x4, scoped, tag = 'scoped memory for inference_forward.5']
    #allocation9 [shape = 'u8[2048]{0}', space=smem, size = 0x800, scoped, tag = 'input window, operand 9, single buffered']
    #allocation10 [shape = 'u8[512]{0}', space=smem, size = 0x200, scoped, tag = 'input window, operand 10, single buffered']
    #allocation11 [shape = 's32[1]{0}', space=sflag, size = 0x4, scoped, tag = 'scoped memory for inference_forward.5']
    #allocation12 [shape = 'u8[4096]{0}', space=smem, size = 0x1000, scoped, tag = 'input window, operand 11, single buffered']
    #allocation13 [shape = 'u8[512]{0}', space=smem, size = 0x200, scoped, tag = 'input window, operand 12, single buffered']
    #allocation14 [shape = 's32[1]{0}', space=sflag, size = 0x4, scoped, tag = 'scoped memory for inference_forward.5']
    #allocation15 [shape = 'u8[196608]{0}', space=vmem, size = 0x30000, scoped, tag = 'output window, operand 0']
    %20 = vsyncpa [#allocation6], 0
    %21 = vsyncpa [#allocation8], 0
    %22 = vsyncpa [#allocation11], 0
    %23 = vsyncpa [#allocation14], 0
    %24 = vsyncpa [#allocation5], 0
    %s25 = scalar_lea.sflag [#allocation5], 1
    %26 = vsyncpa %s25, 0
    loop: start=0, step=1, limit=4
    $region2: #{inference_forward.5} parent=1 // loop_pre_header
      _
    $region3: #{inference_forward.5} parent=1 // loop_header
      %s28 = sphi 0, %s32
      %p29 = scmp.ge.s32.totalorder %s28, 4
      %s38 = sphi 0, %s40
      %s41 = sphi 0, %s38
      %s42 = sphi 0, %s41
      %s58 = sphi 0, %s42
      %s62 = sphi 0, %s62
      %s64 = sphi 0, %s62
      %s65 = sphi 0, %s64
      %s79 = sphi 0, %s65
      %s83 = sphi 0, %s83
      %s85 = sphi 0, %s83
      %s86 = sphi 0, %s85
      %s100 = sphi 0, %s86
      %s104 = sphi 0, %s104
      %s106 = sphi 0, %s104
      %s107 = sphi 0, %s106
      %s121 = sphi 0, %s107
      %s125 = sphi 0, %s125
      %s127 = sphi 0, %s125
      %s128 = sphi 0, %s127
      %s142 = sphi 0, %s128
      %s146 = sphi 0, %s146
      %s148 = sphi 0, %s146
      %s149 = sphi 0, %s148
      %s163 = sphi 0, %s149
      %s167 = sphi 0, %s167
      %s169 = sphi 0, %s167
      %s170 = sphi 0, %s169
      %s184 = sphi 0, %s170
      %s188 = sphi 0, %s188
      %s190 = sphi 0, %s188
      %s191 = sphi 0, %s190
      %s205 = sphi 0, %s191
      %s209 = sphi 0, %s209
      %s211 = sphi 0, %s209
      %s212 = sphi 0, %s211
      %s226 = sphi 0, %s212
      %s230 = sphi 0, %s230
      %s232 = sphi 0, %s230
      %s233 = sphi 0, %s232
      %s247 = sphi 0, %s233
      %s251 = sphi 0, %s251
      %s253 = sphi 0, %s251
      %s254 = sphi 0, %s253
      %s268 = sphi 0, %s254
      %s272 = sphi 0, %s272
      %s274 = sphi 0, %s272
      %s275 = sphi 0, %s274
      %s289 = sphi 0, %s275
      %s293 = sphi 0, %s293
      %s295 = sphi 0, %s293
      %s296 = sphi 0, %s295
      %s310 = sphi 0, %s296
      %s316 = sphi 0, %s318
      %s319 = sphi 0, %s316
      %s320 = sphi 0, %s319
      %s336 = sphi 0, %s320
    $region4: #{inference_forward.5} parent=1 // loop_header_branch
      %31 = sbr.rel (%p29) target = $region8
    $region5: #{inference_forward.5} parent=1 // loop_body
      %s33 = ssub.s32 %s28, 1
      %s34 = ssub.s32 %s28, 2
      %s35 = sadd.s32 %s28, 1
      %s36 = ssub.s32 %s28, %s35
      %p37 = scmp.eq.s32.totalorder %s36, 0
      %s39 = sadd.s32 %s38, 1
      %s40 = scalar_select %p37, %s38, %s39
      %p43 = pneg %p37
      %p44 = scmp.eq.s32.totalorder %s28, 1
      %p45 = por %p43, %p44
      %p46 = scmp.ne.s32.totalorder %s38, %s41
      %p47 = scmp.eq.s32.totalorder %s28, 0
      %p48 = por %p46, %p47
      %p49 = scmp.ne.s32.totalorder %s38, %s41
      %p50 = scmp.eq.s32.totalorder %s33, 1
      %p51 = por %p49, %p50
      %p52 = scmp.ne.s32.totalorder %s41, %s42
      %p53 = scmp.eq.s32.totalorder %s33, 0
      %p54 = por %p52, %p53
      %p55 = scmp.ne.s32.totalorder %s41, %s42
      %p56 = scmp.eq.s32.totalorder %s34, 1
      %p57 = por %p55, %p56
      %p59 = scmp.ne.s32.totalorder %s42, %s58
      %p60 = scmp.eq.s32.totalorder %s34, 0
      %p61 = por %p59, %p60
      %s63 = sadd.s32 %s62, 1
      %p66 = scmp.eq.s32.totalorder %s28, 1
      %p67 = scmp.ne.s32.totalorder %s62, %s64
      %p68 = scmp.eq.s32.totalorder %s28, 0
      %p69 = por %p67, %p68
      %p70 = scmp.ne.s32.totalorder %s62, %s64
      %p71 = scmp.eq.s32.totalorder %s33, 1
      %p72 = por %p70, %p71
      %p73 = scmp.ne.s32.totalorder %s64, %s65
      %p74 = scmp.eq.s32.totalorder %s33, 0
      %p75 = por %p73, %p74
      %p76 = scmp.ne.s32.totalorder %s64, %s65
      %p77 = scmp.eq.s32.totalorder %s34, 1
      %p78 = por %p76, %p77
      %p80 = scmp.ne.s32.totalorder %s65, %s79
      %p81 = scmp.eq.s32.totalorder %s34, 0
      %p82 = por %p80, %p81
      %s84 = sadd.s32 %s83, 1
      %p87 = scmp.eq.s32.totalorder %s28, 1
      %p88 = scmp.ne.s32.totalorder %s83, %s85
      %p89 = scmp.eq.s32.totalorder %s28, 0
      %p90 = por %p88, %p89
      %p91 = scmp.ne.s32.totalorder %s83, %s85
      %p92 = scmp.eq.s32.totalorder %s33, 1
      %p93 = por %p91, %p92
      %p94 = scmp.ne.s32.totalorder %s85, %s86
      %p95 = scmp.eq.s32.totalorder %s33, 0
      %p96 = por %p94, %p95
      %p97 = scmp.ne.s32.totalorder %s85, %s86
      %p98 = scmp.eq.s32.totalorder %s34, 1
      %p99 = por %p97, %p98
      %p101 = scmp.ne.s32.totalorder %s86, %s100
      %p102 = scmp.eq.s32.totalorder %s34, 0
      %p103 = por %p101, %p102
      %s105 = sadd.s32 %s104, 1
      %p108 = scmp.eq.s32.totalorder %s28, 1
      %p109 = scmp.ne.s32.totalorder %s104, %s106
      %p110 = scmp.eq.s32.totalorder %s28, 0
      %p111 = por %p109, %p110
      %p112 = scmp.ne.s32.totalorder %s104, %s106
      %p113 = scmp.eq.s32.totalorder %s33, 1
      %p114 = por %p112, %p113
      %p115 = scmp.ne.s32.totalorder %s106, %s107
      %p116 = scmp.eq.s32.totalorder %s33, 0
      %p117 = por %p115, %p116
      %p118 = scmp.ne.s32.totalorder %s106, %s107
      %p119 = scmp.eq.s32.totalorder %s34, 1
      %p120 = por %p118, %p119
      %p122 = scmp.ne.s32.totalorder %s107, %s121
      %p123 = scmp.eq.s32.totalorder %s34, 0
      %p124 = por %p122, %p123
      %s126 = sadd.s32 %s125, 1
      %p129 = scmp.eq.s32.totalorder %s28, 1
      %p130 = scmp.ne.s32.totalorder %s125, %s127
      %p131 = scmp.eq.s32.totalorder %s28, 0
      %p132 = por %p130, %p131
      %p133 = scmp.ne.s32.totalorder %s125, %s127
      %p134 = scmp.eq.s32.totalorder %s33, 1
      %p135 = por %p133, %p134
      %p136 = scmp.ne.s32.totalorder %s127, %s128
      %p137 = scmp.eq.s32.totalorder %s33, 0
      %p138 = por %p136, %p137
      %p139 = scmp.ne.s32.totalorder %s127, %s128
      %p140 = scmp.eq.s32.totalorder %s34, 1
      %p141 = por %p139, %p140
      %p143 = scmp.ne.s32.totalorder %s128, %s142
      %p144 = scmp.eq.s32.totalorder %s34, 0
      %p145 = por %p143, %p144
      %s147 = sadd.s32 %s146, 1
      %p150 = scmp.eq.s32.totalorder %s28, 1
      %p151 = scmp.ne.s32.totalorder %s146, %s148
      %p152 = scmp.eq.s32.totalorder %s28, 0
      %p153 = por %p151, %p152
      %p154 = scmp.ne.s32.totalorder %s146, %s148
      %p155 = scmp.eq.s32.totalorder %s33, 1
      %p156 = por %p154, %p155
      %p157 = scmp.ne.s32.totalorder %s148, %s149
      %p158 = scmp.eq.s32.totalorder %s33, 0
      %p159 = por %p157, %p158
      %p160 = scmp.ne.s32.totalorder %s148, %s149
      %p161 = scmp.eq.s32.totalorder %s34, 1
      %p162 = por %p160, %p161
      %p164 = scmp.ne.s32.totalorder %s149, %s163
      %p165 = scmp.eq.s32.totalorder %s34, 0
      %p166 = por %p164, %p165
      %s168 = sadd.s32 %s167, 1
      %p171 = scmp.eq.s32.totalorder %s28, 1
      %p172 = scmp.ne.s32.totalorder %s167, %s169
      %p173 = scmp.eq.s32.totalorder %s28, 0
      %p174 = por %p172, %p173
      %p175 = scmp.ne.s32.totalorder %s167, %s169
      %p176 = scmp.eq.s32.totalorder %s33, 1
      %p177 = por %p175, %p176
      %p178 = scmp.ne.s32.totalorder %s169, %s170
      %p179 = scmp.eq.s32.totalorder %s33, 0
      %p180 = por %p178, %p179
      %p181 = scmp.ne.s32.totalorder %s169, %s170
      %p182 = scmp.eq.s32.totalorder %s34, 1
      %p183 = por %p181, %p182
      %p185 = scmp.ne.s32.totalorder %s170, %s184
      %p186 = scmp.eq.s32.totalorder %s34, 0
      %p187 = por %p185, %p186
      %s189 = sadd.s32 %s188, 1
      %p192 = scmp.eq.s32.totalorder %s28, 1
      %p193 = scmp.ne.s32.totalorder %s188, %s190
      %p194 = scmp.eq.s32.totalorder %s28, 0
      %p195 = por %p193, %p194
      %p196 = scmp.ne.s32.totalorder %s188, %s190
      %p197 = scmp.eq.s32.totalorder %s33, 1
      %p198 = por %p196, %p197
      %p199 = scmp.ne.s32.totalorder %s190, %s191
      %p200 = scmp.eq.s32.totalorder %s33, 0
      %p201 = por %p199, %p200
      %p202 = scmp.ne.s32.totalorder %s190, %s191
      %p203 = scmp.eq.s32.totalorder %s34, 1
      %p204 = por %p202, %p203
      %p206 = scmp.ne.s32.totalorder %s191, %s205
      %p207 = scmp.eq.s32.totalorder %s34, 0
      %p208 = por %p206, %p207
      %s210 = sadd.s32 %s209, 1
      %p213 = scmp.eq.s32.totalorder %s28, 1
      %p214 = scmp.ne.s32.totalorder %s209, %s211
      %p215 = scmp.eq.s32.totalorder %s28, 0
      %p216 = por %p214, %p215
      %p217 = scmp.ne.s32.totalorder %s209, %s211
      %p218 = scmp.eq.s32.totalorder %s33, 1
      %p219 = por %p217, %p218
      %p220 = scmp.ne.s32.totalorder %s211, %s212
      %p221 = scmp.eq.s32.totalorder %s33, 0
      %p222 = por %p220, %p221
      %p223 = scmp.ne.s32.totalorder %s211, %s212
      %p224 = scmp.eq.s32.totalorder %s34, 1
      %p225 = por %p223, %p224
      %p227 = scmp.ne.s32.totalorder %s212, %s226
      %p228 = scmp.eq.s32.totalorder %s34, 0
      %p229 = por %p227, %p228
      %s231 = sadd.s32 %s230, 1
      %p234 = scmp.eq.s32.totalorder %s28, 1
      %p235 = scmp.ne.s32.totalorder %s230, %s232
      %p236 = scmp.eq.s32.totalorder %s28, 0
      %p237 = por %p235, %p236
      %p238 = scmp.ne.s32.totalorder %s230, %s232
      %p239 = scmp.eq.s32.totalorder %s33, 1
      %p240 = por %p238, %p239
      %p241 = scmp.ne.s32.totalorder %s232, %s233
      %p242 = scmp.eq.s32.totalorder %s33, 0
      %p243 = por %p241, %p242
      %p244 = scmp.ne.s32.totalorder %s232, %s233
      %p245 = scmp.eq.s32.totalorder %s34, 1
      %p246 = por %p244, %p245
      %p248 = scmp.ne.s32.totalorder %s233, %s247
      %p249 = scmp.eq.s32.totalorder %s34, 0
      %p250 = por %p248, %p249
      %s252 = sadd.s32 %s251, 1
      %p255 = scmp.eq.s32.totalorder %s28, 1
      %p256 = scmp.ne.s32.totalorder %s251, %s253
      %p257 = scmp.eq.s32.totalorder %s28, 0
      %p258 = por %p256, %p257
      %p259 = scmp.ne.s32.totalorder %s251, %s253
      %p260 = scmp.eq.s32.totalorder %s33, 1
      %p261 = por %p259, %p260
      %p262 = scmp.ne.s32.totalorder %s253, %s254
      %p263 = scmp.eq.s32.totalorder %s33, 0
      %p264 = por %p262, %p263
      %p265 = scmp.ne.s32.totalorder %s253, %s254
      %p266 = scmp.eq.s32.totalorder %s34, 1
      %p267 = por %p265, %p266
      %p269 = scmp.ne.s32.totalorder %s254, %s268
      %p270 = scmp.eq.s32.totalorder %s34, 0
      %p271 = por %p269, %p270
      %s273 = sadd.s32 %s272, 1
      %p276 = scmp.eq.s32.totalorder %s28, 1
      %p277 = scmp.ne.s32.totalorder %s272, %s274
      %p278 = scmp.eq.s32.totalorder %s28, 0
      %p279 = por %p277, %p278
      %p280 = scmp.ne.s32.totalorder %s272, %s274
      %p281 = scmp.eq.s32.totalorder %s33, 1
      %p282 = por %p280, %p281
      %p283 = scmp.ne.s32.totalorder %s274, %s275
      %p284 = scmp.eq.s32.totalorder %s33, 0
      %p285 = por %p283, %p284
      %p286 = scmp.ne.s32.totalorder %s274, %s275
      %p287 = scmp.eq.s32.totalorder %s34, 1
      %p288 = por %p286, %p287
      %p290 = scmp.ne.s32.totalorder %s275, %s289
      %p291 = scmp.eq.s32.totalorder %s34, 0
      %p292 = por %p290, %p291
      %s294 = sadd.s32 %s293, 1
      %p297 = scmp.eq.s32.totalorder %s28, 1
      %p298 = scmp.ne.s32.totalorder %s293, %s295
      %p299 = scmp.eq.s32.totalorder %s28, 0
      %p300 = por %p298, %p299
      %p301 = scmp.ne.s32.totalorder %s293, %s295
      %p302 = scmp.eq.s32.totalorder %s33, 1
      %p303 = por %p301, %p302
      %p304 = scmp.ne.s32.totalorder %s295, %s296
      %p305 = scmp.eq.s32.totalorder %s33, 0
      %p306 = por %p304, %p305
      %p307 = scmp.ne.s32.totalorder %s295, %s296
      %p308 = scmp.eq.s32.totalorder %s34, 1
      %p309 = por %p307, %p308
      %p311 = scmp.ne.s32.totalorder %s296, %s310
      %p312 = scmp.eq.s32.totalorder %s34, 0
      %p313 = por %p311, %p312
      %s314 = ssub.s32 %s28, %s35
      %p315 = scmp.eq.s32.totalorder %s314, 0
      %s317 = sadd.s32 %s316, 1
      %s318 = scalar_select %p315, %s316, %s317
      %p321 = pneg %p315
      %p322 = scmp.eq.s32.totalorder %s28, 1
      %p323 = por %p321, %p322
      %p324 = scmp.ne.s32.totalorder %s316, %s319
      %p325 = scmp.eq.s32.totalorder %s28, 0
      %p326 = por %p324, %p325
      %p327 = scmp.ne.s32.totalorder %s316, %s319
      %p328 = scmp.eq.s32.totalorder %s33, 1
      %p329 = por %p327, %p328
      %p330 = scmp.ne.s32.totalorder %s319, %s320
      %p331 = scmp.eq.s32.totalorder %s33, 0
      %p332 = por %p330, %p331
      %p333 = scmp.ne.s32.totalorder %s319, %s320
      %p334 = scmp.eq.s32.totalorder %s34, 1
      %p335 = por %p333, %p334
      %p337 = scmp.ne.s32.totalorder %s320, %s336
      %p338 = scmp.eq.s32.totalorder %s34, 0
      %p339 = por %p337, %p338
      %p340 = scmp.le.s32.totalorder 1, %s28
      %p341 = scmp.lt.s32.totalorder %s28, 3
      %p342 = pnand %p340, %p341
      %p343 = pneg %p342
      // Predicated region
      $region9: #{inference_forward.5} parent=5 // pred_check
        _
      $region10: #{inference_forward.5} parent=5 // pred_check_branch
        %345 = sbr.rel (%p342) target = $region12
      $region11: #{inference_forward.5} parent=5 // pred_region
        %s346 = ssub.s32 %s28, 1
        // Predicated region
        $region13: #{inference_forward.5} parent=11 // pred_check
          %p347 = pneg %p75
        $region14: #{inference_forward.5} parent=11 // pred_check_branch
          %349 = sbr.rel (%p347) target = $region16
        $region15: #{inference_forward.5} parent=11 // pred_region
          %s351 = ssub.s32 64, 64
          %352 = vsyncadd [#allocation6], %s351
          %s354 = sshll.u32 %s1, 4
          %s355 = int_to_ptr.vmem [resolvable:$true] %s354
          %357 = dma.vmem_to_smem %s355, 64, [#allocation4], [#allocation6]
        $region16: #{inference_forward.5} parent=11 // pred_fallthru
          _
        // Predicated region
        $region17: #{inference_forward.5} parent=11 // pred_check
          %p358 = pneg %p96
        $region18: #{inference_forward.5} parent=11 // pred_check_branch
          %360 = sbr.rel (%p358) target = $region20
        $region19: #{inference_forward.5} parent=11 // pred_region
          _
        $region20: #{inference_forward.5} parent=11 // pred_fallthru
          _
        // Predicated region
        $region21: #{inference_forward.5} parent=11 // pred_check
          %p361 = pneg %p117
        $region22: #{inference_forward.5} parent=11 // pred_check_branch
          %363 = sbr.rel (%p361) target = $region24
        $region23: #{inference_forward.5} parent=11 // pred_region
          _
        $region24: #{inference_forward.5} parent=11 // pred_fallthru
          _
        // Predicated region
        $region25: #{inference_forward.5} parent=11 // pred_check
          %p364 = pneg %p138
        $region26: #{inference_forward.5} parent=11 // pred_check_branch
          %366 = sbr.rel (%p364) target = $region28
        $region27: #{inference_forward.5} parent=11 // pred_region
          _
        $region28: #{inference_forward.5} parent=11 // pred_fallthru
          _
        // Predicated region
        $region29: #{inference_forward.5} parent=11 // pred_check
          %p367 = pneg %p159
        $region30: #{inference_forward.5} parent=11 // pred_check_branch
          %369 = sbr.rel (%p367) target = $region32
        $region31: #{inference_forward.5} parent=11 // pred_region
          _
        $region32: #{inference_forward.5} parent=11 // pred_fallthru
          _
        // Predicated region
        $region33: #{inference_forward.5} parent=11 // pred_check
          %p370 = pneg %p180
        $region34: #{inference_forward.5} parent=11 // pred_check_branch
          %372 = sbr.rel (%p370) target = $region36
        $region35: #{inference_forward.5} parent=11 // pred_region
          _
        $region36: #{inference_forward.5} parent=11 // pred_fallthru
          _
        // Predicated region
        $region37: #{inference_forward.5} parent=11 // pred_check
          %p373 = pneg %p201
        $region38: #{inference_forward.5} parent=11 // pred_check_branch
          %375 = sbr.rel (%p373) target = $region40
        $region39: #{inference_forward.5} parent=11 // pred_region
          %s377 = ssub.s32 64, 64
          %378 = vsyncadd [#allocation8], %s377
          %s380 = sshll.u32 %s7, 4
          %s381 = int_to_ptr.vmem [resolvable:$true] %s380
          %383 = dma.vmem_to_smem %s381, 64, [#allocation7], [#allocation8]
        $region40: #{inference_forward.5} parent=11 // pred_fallthru
          _
        // Predicated region
        $region41: #{inference_forward.5} parent=11 // pred_check
          %p384 = pneg %p222
        $region42: #{inference_forward.5} parent=11 // pred_check_branch
          %386 = sbr.rel (%p384) target = $region44
        $region43: #{inference_forward.5} parent=11 // pred_region
          _
        $region44: #{inference_forward.5} parent=11 // pred_fallthru
          _
        // Predicated region
        $region45: #{inference_forward.5} parent=11 // pred_check
          %p387 = pneg %p243
        $region46: #{inference_forward.5} parent=11 // pred_check_branch
          %389 = sbr.rel (%p387) target = $region48
        $region47: #{inference_forward.5} parent=11 // pred_region
          %s391 = ssub.s32 64, 64
          %392 = vsyncadd [#allocation8], %s391
          %s394 = sshll.u32 %s9, 4
          %s395 = int_to_ptr.vmem [resolvable:$true] %s394
          %397 = dma.vmem_to_smem %s395, 64, [#allocation9], [#allocation8]
        $region48: #{inference_forward.5} parent=11 // pred_fallthru
          _
        // Predicated region
        $region49: #{inference_forward.5} parent=11 // pred_check
          %p398 = pneg %p264
        $region50: #{inference_forward.5} parent=11 // pred_check_branch
          %400 = sbr.rel (%p398) target = $region52
        $region51: #{inference_forward.5} parent=11 // pred_region
          %s402 = ssub.s32 16, 16
          %403 = vsyncadd [#allocation11], %s402
          %s405 = sshll.u32 %s10, 4
          %s406 = int_to_ptr.vmem [resolvable:$true] %s405
          %408 = dma.vmem_to_smem %s406, 16, [#allocation10], [#allocation11]
        $region52: #{inference_forward.5} parent=11 // pred_fallthru
          _
        // Predicated region
        $region53: #{inference_forward.5} parent=11 // pred_check
          %p409 = pneg %p285
        $region54: #{inference_forward.5} parent=11 // pred_check_branch
          %411 = sbr.rel (%p409) target = $region56
        $region55: #{inference_forward.5} parent=11 // pred_region
          %s413 = ssub.s32 128, 128
          %414 = vsyncadd [#allocation11], %s413
          %s416 = sshll.u32 %s11, 4
          %s417 = int_to_ptr.vmem [resolvable:$true] %s416
          %419 = dma.vmem_to_smem %s417, 128, [#allocation12], [#allocation11]
        $region56: #{inference_forward.5} parent=11 // pred_fallthru
          _
        // Predicated region
        $region57: #{inference_forward.5} parent=11 // pred_check
          %p420 = pneg %p306
        $region58: #{inference_forward.5} parent=11 // pred_check_branch
          %422 = sbr.rel (%p420) target = $region60
        $region59: #{inference_forward.5} parent=11 // pred_region
          %s424 = ssub.s32 16, 16
          %425 = vsyncadd [#allocation14], %s424
          %s427 = sshll.u32 %s12, 4
          %s428 = int_to_ptr.vmem [resolvable:$true] %s427
          %430 = dma.vmem_to_smem %s428, 16, [#allocation13], [#allocation14]
        $region60: #{inference_forward.5} parent=11 // pred_fallthru
          _
      $region12: #{inference_forward.5} parent=5 // pred_fallthru
        _
      %p431 = scmp.lt.s32.totalorder %s28, 2
      // Predicated region
      $region61: #{inference_forward.5} parent=5 // pred_check
        %p432 = pneg %p431
      $region62: #{inference_forward.5} parent=5 // pred_check_branch
        %434 = sbr.rel (%p432) target = $region64
      $region63: #{inference_forward.5} parent=5 // pred_region
        // Predicated region
        $region65: #{inference_forward.5} parent=63 // pred_check
          %p435 = pneg %p48
        $region66: #{inference_forward.5} parent=63 // pred_check_branch
          %437 = sbr.rel (%p435) target = $region68
        $region67: #{inference_forward.5} parent=63 // pred_region
          %p438 = scmp.lt.s32.totalorder %s28, 1
          %s439 = scalar_select %p438, %s28, 1
          %s440 = smul.addr %s439, 24
          %s441 = smul.addr %s440, 8
          %s442 = scalar_lea.vmem %s0, %s441
        $region68: #{inference_forward.5} parent=63 // pred_fallthru
          _
      $region64: #{inference_forward.5} parent=5 // pred_fallthru
        _
      %p443 = scmp.le.s32.totalorder 1, %s28
      %p444 = scmp.lt.s32.totalorder %s28, 3
      %p445 = pnand %p443, %p444
      %p446 = pneg %p445
      // Predicated region
      $region69: #{inference_forward.5} parent=5 // pred_check
        _
      $region70: #{inference_forward.5} parent=5 // pred_check_branch
        %448 = sbr.rel (%p445) target = $region72
      $region71: #{inference_forward.5} parent=5 // pred_region
        %s449 = ssub.s32 %s28, 1
        // Predicated region
        $region73: #{inference_forward.5} parent=71 // pred_check
          %p450 = pneg %p75
        $region74: #{inference_forward.5} parent=71 // pred_check_branch
          %452 = sbr.rel (%p450) target = $region76
        $region75: #{inference_forward.5} parent=71 // pred_region
          %453 = dma.done [#allocation6], 64
        $region76: #{inference_forward.5} parent=71 // pred_fallthru
          _
        // Predicated region
        $region77: #{inference_forward.5} parent=71 // pred_check
          %p454 = pneg %p201
        $region78: #{inference_forward.5} parent=71 // pred_check_branch
          %456 = sbr.rel (%p454) target = $region80
        $region79: #{inference_forward.5} parent=71 // pred_region
          %457 = dma.done [#allocation8], 64
        $region80: #{inference_forward.5} parent=71 // pred_fallthru
          _
        // Predicated region
        $region81: #{inference_forward.5} parent=71 // pred_check
          %p458 = pneg %p243
        $region82: #{inference_forward.5} parent=71 // pred_check_branch
          %460 = sbr.rel (%p458) target = $region84
        $region83: #{inference_forward.5} parent=71 // pred_region
          %461 = dma.done [#allocation8], 64
        $region84: #{inference_forward.5} parent=71 // pred_fallthru
          _
        // Predicated region
        $region85: #{inference_forward.5} parent=71 // pred_check
          %p462 = pneg %p264
        $region86: #{inference_forward.5} parent=71 // pred_check_branch
          %464 = sbr.rel (%p462) target = $region88
        $region87: #{inference_forward.5} parent=71 // pred_region
          %465 = dma.done [#allocation11], 16
        $region88: #{inference_forward.5} parent=71 // pred_fallthru
          _
        // Predicated region
        $region89: #{inference_forward.5} parent=71 // pred_check
          %p466 = pneg %p285
        $region90: #{inference_forward.5} parent=71 // pred_check_branch
          %468 = sbr.rel (%p466) target = $region92
        $region91: #{inference_forward.5} parent=71 // pred_region
          %469 = dma.done [#allocation11], 128
        $region92: #{inference_forward.5} parent=71 // pred_fallthru
          _
        // Predicated region
        $region93: #{inference_forward.5} parent=71 // pred_check
          %p470 = pneg %p306
        $region94: #{inference_forward.5} parent=71 // pred_check_branch
          %472 = sbr.rel (%p470) target = $region96
        $region95: #{inference_forward.5} parent=71 // pred_region
          %473 = dma.done [#allocation14], 16
        $region96: #{inference_forward.5} parent=71 // pred_fallthru
          _
        %474 = sfence
        %p475 = scmp.lt.s32.totalorder %s33, 1
        %s476 = scalar_select %p475, %s33, 1
        %s477 = smul.addr %s476, 24
        %s478 = smul.addr %s477, 8
        %s479 = scalar_lea.vmem %s0, %s478
        %p480 = pneg %p54
        %p481 = pneg %p51
        %p482 = pneg %p75
        %p483 = pneg %p72
        %p484 = pneg %p96
        %p485 = pneg %p93
        %p486 = pneg %p117
        %p487 = pneg %p114
        %p488 = pneg %p138
        %p489 = pneg %p135
        %p490 = pneg %p159
        %p491 = pneg %p156
        %p492 = pneg %p180
        %p493 = pneg %p177
        %p494 = pneg %p201
        %p495 = pneg %p198
        %p496 = pneg %p222
        %p497 = pneg %p219
        %p498 = pneg %p243
        %p499 = pneg %p240
        %p500 = pneg %p264
        %p501 = pneg %p261
        %p502 = pneg %p285
        %p503 = pneg %p282
        %p504 = pneg %p306
        %p505 = pneg %p303
        %p506 = pneg %p332
        %p507 = pneg %p329
        %s508 = sand.u32 %s319, 1
        %s509 = scalar_lea.sflag [#allocation5], %s508
        %s510 = sand.u32 %s319, 1
        %s511 = smul.addr %s510, 192
        %s512 = scalar_lea.vmem [#allocation15], %s511
        %p513 = scmp.lt.s32.totalorder %s33, 1
        %s514 = scalar_select %p513, %s33, 1
        %s515 = smul.addr %s514, 24
        %s516 = smul.addr %s515, 8
        %s517 = scalar_lea.vmem %s0, %s516
        %v519 = vld [vmem:[%s517] sm:$0xff]
        %v520 = vld [vmem:[%s517 + $0x8] sm:$0xff]
        %v521 = vld [vmem:[%s517 + $0x10] sm:$0xff]
        %v522 = vld [vmem:[%s517 + $0x18] sm:$0xff]
        %v523 = vld [vmem:[%s517 + $0x20] sm:$0xff]
        %v524 = vld [vmem:[%s517 + $0x28] sm:$0xff]
        %v525 = vld [vmem:[%s517 + $0x30] sm:$0xff]
        %v526 = vld [vmem:[%s517 + $0x38] sm:$0xff]
        %s527 = scalar_lea.vmem %s517, 64
        %v528 = vld [vmem:[%s527] sm:$0xff]
        %v529 = vld [vmem:[%s527 + $0x8] sm:$0xff]
        %v530 = vld [vmem:[%s527 + $0x10] sm:$0xff]
        %v531 = vld [vmem:[%s527 + $0x18] sm:$0xff]
        %v532 = vld [vmem:[%s527 + $0x20] sm:$0xff]
        %v533 = vld [vmem:[%s527 + $0x28] sm:$0xff]
        %v534 = vld [vmem:[%s527 + $0x30] sm:$0xff]
        %v535 = vld [vmem:[%s527 + $0x38] sm:$0xff]
        %s536 = scalar_lea.vmem %s517, 128
        %v537 = vld [vmem:[%s536] sm:$0xff]
        %v538 = vld [vmem:[%s536 + $0x8] sm:$0xff]
        %v539 = vld [vmem:[%s536 + $0x10] sm:$0xff]
        %v540 = vld [vmem:[%s536 + $0x18] sm:$0xff]
        %v541 = vld [vmem:[%s536 + $0x20] sm:$0xff]
        %v542 = vld [vmem:[%s536 + $0x28] sm:$0xff]
        %v543 = vld [vmem:[%s536 + $0x30] sm:$0xff]
        %v544 = vld [vmem:[%s536 + $0x38] sm:$0xff]
        %s545 = sld [smem:[#allocation4]]
        %v546 = vstv %s545
        %v547 = vmul.f32 %v519, %v546
        %v548 = vmul.f32 %v520, %v546
        %v549 = vmul.f32 %v521, %v546
        %v550 = vmul.f32 %v522, %v546
        %v551 = vmul.f32 %v523, %v546
        %v552 = vmul.f32 %v524, %v546
        %v553 = vmul.f32 %v525, %v546
        %v554 = vmul.f32 %v526, %v546
        %s555 = sld [smem:[#allocation4 + $0x80]]
        %v556 = vstv %s555
        %v557 = vmul.f32 %v528, %v556
        %v558 = vmul.f32 %v529, %v556
        %v559 = vmul.f32 %v530, %v556
        %v560 = vmul.f32 %v531, %v556
        %v561 = vmul.f32 %v532, %v556
        %v562 = vmul.f32 %v533, %v556
        %v563 = vmul.f32 %v534, %v556
        %v564 = vmul.f32 %v535, %v556
        %v565 = vadd.f32 %v547, %v557
        %v566 = vadd.f32 %v548, %v558
        %v567 = vadd.f32 %v549, %v559
        %v568 = vadd.f32 %v550, %v560
        %v569 = vadd.f32 %v551, %v561
        %v570 = vadd.f32 %v552, %v562
        %v571 = vadd.f32 %v553, %v563
        %v572 = vadd.f32 %v554, %v564
        %s573 = sld [smem:[#allocation4 + $0x100]]
        %v574 = vstv %s573
        %v575 = vmul.f32 %v537, %v574
        %v576 = vmul.f32 %v538, %v574
        %v577 = vmul.f32 %v539, %v574
        %v578 = vmul.f32 %v540, %v574
        %v579 = vmul.f32 %v541, %v574
        %v580 = vmul.f32 %v542, %v574
        %v581 = vmul.f32 %v543, %v574
        %v582 = vmul.f32 %v544, %v574
        %v583 = vadd.f32 %v565, %v575
        %v584 = vadd.f32 %v566, %v576
        %v585 = vadd.f32 %v567, %v577
        %v586 = vadd.f32 %v568, %v578
        %v587 = vadd.f32 %v569, %v579
        %v588 = vadd.f32 %v570, %v580
        %v589 = vadd.f32 %v571, %v581
        %v590 = vadd.f32 %v572, %v582
        %s591 = sld [smem:[#allocation2]]
        %v592 = vstv %s591
        %v593 = vadd.f32 %v583, %v592
        %v594 = vadd.f32 %v584, %v592
        %v595 = vadd.f32 %v585, %v592
        %v596 = vadd.f32 %v586, %v592
        %v597 = vadd.f32 %v587, %v592
        %v598 = vadd.f32 %v588, %v592
        %v599 = vadd.f32 %v589, %v592
        %v600 = vadd.f32 %v590, %v592
        %v601 = vld [vmem:[%s3] sm:$0xf]
        %v602 = vld [vmem:[%s3 + $0x4] sm:$0xf]
        %v603 = vld [vmem:[%s3 + $0x8] sm:$0xf]
        %v604 = vld [vmem:[%s3 + $0xc] sm:$0xf]
        %v605 = vld [vmem:[%s4] sm:$0xf]
        %v606 = vld [vmem:[%s4 + $0x4] sm:$0xf]
        %v607 = vld [vmem:[%s4 + $0x8] sm:$0xf]
        %v608 = vld [vmem:[%s4 + $0xc] sm:$0xf]
        %v609 = vld [vmem:[%s4 + $0x10] sm:$0xf]
        %v610 = vld [vmem:[%s4 + $0x14] sm:$0xf]
        %v611 = vld [vmem:[%s4 + $0x18] sm:$0xf]
        %v612 = vld [vmem:[%s4 + $0x1c] sm:$0xf]
        %v613 = vpack.c.bf16 %v594, %v593
        %v614 = vpack.c.bf16 %v596, %v595
        %v615 = vpack.c.bf16 %v598, %v597
        %v616 = vpack.c.bf16 %v600, %v599
        %v625 = vunpack.c.l.b16 %v605
        %v626 = vunpack.c.l.b16 %v606
        %v627 = vunpack.c.l.b16 %v607
        %v628 = vunpack.c.l.b16 %v608
        %v629 = vunpack.c.l.b16 %v609
        %v630 = vunpack.c.l.b16 %v610
        %v631 = vunpack.c.l.b16 %v611
        %v632 = vunpack.c.l.b16 %v612
        %v633 = vpack.c.b16 %v626, %v625
        %v634 = vpack.c.b16 %v628, %v627
        %v635 = vpack.c.b16 %v630, %v629
        %v636 = vpack.c.b16 %v632, %v631
        %vm641 = vcmask 523264
        %v643 = vsel %vm641, %v613, 0
        %v646 = vsel %vm641, %v614, 0
        %v649 = vsel %vm641, %v615, 0
        %v652 = vsel %vm641, %v616, 0
        %654 = vmatprep.subr.bf16.mxu0 0
        %655 = vmatpush1.bf16.msra.mxu0 0
        %656 = vmatprep.subr.bf16.mxu0 0
        %657 = vmatpush1.bf16.msra.mxu0 0
        %658 = vmatprep.subr.bf16.mxu0 0
        %659 = vmatpush1.bf16.msra.mxu0 0
        %660 = vmatprep.subr.bf16.mxu0 0
        %661 = vmatpush1.bf16.msra.mxu0 0
        %662 = vmatprep.subr.bf16.mxu0 0
        %663 = vmatpush1.bf16.msra.mxu0 %v636
        %664 = vmatprep.subr.bf16.mxu0 0
        %665 = vmatpush1.bf16.msra.mxu0 %v635
        %666 = vmatprep.subr.bf16.mxu0 0
        %667 = vmatpush1.bf16.msra.mxu0 %v634
        %668 = vmatprep.subr.bf16.mxu0 0
        %669 = vmatpush1.bf16.msra.mxu0 %v633
        %670 = vmatprep.subr.bf16.mxu0 0
        %671 = vmatpush2.bf16.msra.mxu0 0
        %672 = vmatprep.subr.bf16.mxu0 0
        %673 = vmatpush2.bf16.msra.mxu0 0
        %674 = vmatprep.subr.bf16.mxu0 0
        %675 = vmatpush2.bf16.msra.mxu0 0
        %676 = vmatprep.subr.bf16.mxu0 0
        %677 = vmatpush2.bf16.msra.mxu0 0
        %678 = vmatprep.subr.bf16.mxu0 0
        %679 = vmatpush2.bf16.msra.mxu0 0
        %680 = vmatprep.subr.bf16.mxu0 0
        %681 = vmatpush2.bf16.msra.mxu0 0
        %682 = vmatprep.subr.bf16.mxu0 0
        %683 = vmatpush2.bf16.msra.mxu0 0
        %684 = vmatprep.subr.bf16.mxu0 0
        %685 = vmatpush2.bf16.msra.mxu0 0
        %686 = vmatprep.mubr.bf16.mxu0 0
        %687 = vmatmul.mubr.bf16.gmra.mxu0 %v643
        %v688 = vpop.f32.mrf.mxu0
        %v689 = vadd.f32 0.0, %v688
        %v690 = vpop.f32.mrf.mxu0
        %v691 = vpop.f32.mrf.mxu0
        %v692 = vadd.f32 0.0, %v691
        %v693 = vpop.f32.mrf.mxu0
        %694 = vmatprep.mubr.bf16.mxu0 0
        %695 = vmatmul.mubr.bf16.gmra.mxu0 %v646
        %v696 = vpop.f32.mrf.mxu0
        %v697 = vadd.f32 0.0, %v696
        %v698 = vpop.f32.mrf.mxu0
        %v699 = vpop.f32.mrf.mxu0
        %v700 = vadd.f32 0.0, %v699
        %v701 = vpop.f32.mrf.mxu0
        %702 = vmatprep.mubr.bf16.mxu0 0
        %703 = vmatmul.mubr.bf16.gmra.mxu0 %v649
        %v704 = vpop.f32.mrf.mxu0
        %v705 = vadd.f32 0.0, %v704
        %v706 = vpop.f32.mrf.mxu0
        %v707 = vpop.f32.mrf.mxu0
        %v708 = vadd.f32 0.0, %v707
        %v709 = vpop.f32.mrf.mxu0
        %710 = vmatprep.mubr.bf16.mxu0 0
        %711 = vmatmul.mubr.bf16.gmra.mxu0 %v652
        %v712 = vpop.f32.mrf.mxu0
        %v713 = vadd.f32 0.0, %v712
        %v714 = vpop.f32.mrf.mxu0
        %v715 = vpop.f32.mrf.mxu0
        %v716 = vadd.f32 0.0, %v715
        %v717 = vpop.f32.mrf.mxu0
        %718 = vdwg.mxu0
        %v719 = vpack.c.bf16 %v692, %v689
        %v720 = vpack.c.bf16 %v700, %v697
        %v721 = vpack.c.bf16 %v708, %v705
        %v722 = vpack.c.bf16 %v716, %v713
        %v727 = vunpack.c.l.b16 %v601
        %v728 = vunpack.c.l.b16 %v602
        %v729 = vunpack.c.l.b16 %v603
        %v730 = vunpack.c.l.b16 %v604
        %v731 = vpack.c.b16 %v728, %v727
        %v732 = vpack.c.b16 %v730, %v729
        %v734 = vsel %vm641, %v731, 0
        %v737 = vsel %vm641, %v732, 0
        %739 = vmatprep.subr.bf16.mxu0 0
        %740 = vmatpush1.bf16.msra.mxu0 0
        %741 = vmatprep.subr.bf16.mxu0 0
        %742 = vmatpush1.bf16.msra.mxu0 0
        %743 = vmatprep.subr.bf16.mxu0 0
        %744 = vmatpush1.bf16.msra.mxu0 0
        %745 = vmatprep.subr.bf16.mxu0 0
        %746 = vmatpush1.bf16.msra.mxu0 0
        %747 = vmatprep.subr.bf16.mxu0 0
        %748 = vmatpush1.bf16.msra.mxu0 %v722
        %749 = vmatprep.subr.bf16.mxu0 0
        %750 = vmatpush1.bf16.msra.mxu0 %v721
        %751 = vmatprep.subr.bf16.mxu0 0
        %752 = vmatpush1.bf16.msra.mxu0 %v720
        %753 = vmatprep.subr.bf16.mxu0 0
        %754 = vmatpush1.bf16.msra.mxu0 %v719
        %755 = vmatprep.subr.bf16.mxu0 0
        %756 = vmatpush2.bf16.msra.mxu0 0
        %757 = vmatprep.subr.bf16.mxu0 0
        %758 = vmatpush2.bf16.msra.mxu0 0
        %759 = vmatprep.subr.bf16.mxu0 0
        %760 = vmatpush2.bf16.msra.mxu0 0
        %761 = vmatprep.subr.bf16.mxu0 0
        %762 = vmatpush2.bf16.msra.mxu0 0
        %763 = vmatprep.subr.bf16.mxu0 0
        %764 = vmatpush2.bf16.msra.mxu0 0
        %765 = vmatprep.subr.bf16.mxu0 0
        %766 = vmatpush2.bf16.msra.mxu0 0
        %767 = vmatprep.subr.bf16.mxu0 0
        %768 = vmatpush2.bf16.msra.mxu0 0
        %769 = vmatprep.subr.bf16.mxu0 0
        %770 = vmatpush2.bf16.msra.mxu0 0
        %771 = vmatprep.mubr.bf16.mxu0 0
        %772 = vmatmul.mubr.bf16.gmra.mxu0 %v734
        %v773 = vpop.f32.mrf.mxu0
        %v774 = vadd.f32 0.0, %v773
        %v775 = vpop.f32.mrf.mxu0
        %v776 = vpop.f32.mrf.mxu0
        %v777 = vadd.f32 0.0, %v776
        %v778 = vpop.f32.mrf.mxu0
        %779 = vmatprep.mubr.bf16.mxu0 0
        %780 = vmatmul.mubr.bf16.gmra.mxu0 %v737
        %v781 = vpop.f32.mrf.mxu0
        %v782 = vadd.f32 0.0, %v781
        %v783 = vpop.f32.mrf.mxu0
        %v784 = vpop.f32.mrf.mxu0
        %v785 = vadd.f32 0.0, %v784
        %v786 = vpop.f32.mrf.mxu0
        %787 = vdwg.mxu0
        %v788 = vxor.u32 %v774, 2147483648
        %v789 = vxor.u32 %v777, 2147483648
        %v790 = vxor.u32 %v782, 2147483648
        %v791 = vxor.u32 %v785, 2147483648
        %v792 = vmul.f32 %v788, 1.442695
        %v793 = vpow.pop %v792
        %v794 = vmul.f32 %v789, 1.442695
        %v795 = vpow.pop %v794
        %v796 = vmul.f32 %v790, 1.442695
        %v797 = vpow.pop %v796
        %v798 = vmul.f32 %v791, 1.442695
        %v799 = vpow.pop %v798
        %v800 = vadd.f32 %v793, 1.0
        %v801 = vadd.f32 %v795, 1.0
        %v802 = vadd.f32 %v797, 1.0
        %v803 = vadd.f32 %v799, 1.0
        %v804 = vrcp.pop %v800
        %v805 = vmul.f32 1.0, %v804
        %v806 = vrcp.pop %v801
        %v807 = vmul.f32 1.0, %v806
        %v808 = vrcp.pop %v802
        %v809 = vmul.f32 1.0, %v808
        %v810 = vrcp.pop %v803
        %v811 = vmul.f32 1.0, %v810
        %v812 = vld [vmem:[%s5] sm:$0xf]
        %v813 = vld [vmem:[%s5 + $0x4] sm:$0xf]
        %v814 = vld [vmem:[%s5 + $0x8] sm:$0xf]
        %v815 = vld [vmem:[%s5 + $0xc] sm:$0xf]
        %v816 = vld [vmem:[%s5 + $0x10] sm:$0xf]
        %v817 = vld [vmem:[%s5 + $0x14] sm:$0xf]
        %v818 = vld [vmem:[%s5 + $0x18] sm:$0xf]
        %v819 = vld [vmem:[%s5 + $0x1c] sm:$0xf]
        %v820 = vld [vmem:[%s6] sm:$0xf]
        %v821 = vld [vmem:[%s6 + $0x4] sm:$0xf]
        %v822 = vld [vmem:[%s6 + $0x8] sm:$0xf]
        %v823 = vld [vmem:[%s6 + $0xc] sm:$0xf]
        %v824 = vpack.c.bf16 %v807, %v805
        %v825 = vpack.c.bf16 %v811, %v809
        %v830 = vunpack.c.l.b16 %v820
        %v831 = vunpack.c.l.b16 %v821
        %v832 = vunpack.c.l.b16 %v822
        %v833 = vunpack.c.l.b16 %v823
        %v834 = vpack.c.b16 %v831, %v830
        %v835 = vpack.c.b16 %v833, %v832
        %vm838 = vcmask 261120
        %v840 = vsel %vm838, %v824, 0
        %v843 = vsel %vm838, %v825, 0
        %845 = vmatprep.subr.bf16.mxu0 0
        %846 = vmatpush1.bf16.msra.mxu0 0
        %847 = vmatprep.subr.bf16.mxu0 0
        %848 = vmatpush1.bf16.msra.mxu0 0
        %849 = vmatprep.subr.bf16.mxu0 0
        %850 = vmatpush1.bf16.msra.mxu0 0
        %851 = vmatprep.subr.bf16.mxu0 0
        %852 = vmatpush1.bf16.msra.mxu0 0
        %853 = vmatprep.subr.bf16.mxu0 0
        %854 = vmatpush1.bf16.msra.mxu0 0
        %855 = vmatprep.subr.bf16.mxu0 0
        %856 = vmatpush1.bf16.msra.mxu0 0
        %857 = vmatprep.subr.bf16.mxu0 0
        %858 = vmatpush1.bf16.msra.mxu0 %v835
        %859 = vmatprep.subr.bf16.mxu0 0
        %860 = vmatpush1.bf16.msra.mxu0 %v834
        %861 = vmatprep.subr.bf16.mxu0 0
        %862 = vmatpush2.bf16.msra.mxu0 0
        %863 = vmatprep.subr.bf16.mxu0 0
        %864 = vmatpush2.bf16.msra.mxu0 0
        %865 = vmatprep.subr.bf16.mxu0 0
        %866 = vmatpush2.bf16.msra.mxu0 0
        %867 = vmatprep.subr.bf16.mxu0 0
        %868 = vmatpush2.bf16.msra.mxu0 0
        %869 = vmatprep.subr.bf16.mxu0 0
        %870 = vmatpush2.bf16.msra.mxu0 0
        %871 = vmatprep.subr.bf16.mxu0 0
        %872 = vmatpush2.bf16.msra.mxu0 0
        %873 = vmatprep.subr.bf16.mxu0 0
        %874 = vmatpush2.bf16.msra.mxu0 0
        %875 = vmatprep.subr.bf16.mxu0 0
        %876 = vmatpush2.bf16.msra.mxu0 0
        %877 = vmatprep.mubr.bf16.mxu0 0
        %878 = vmatmul.mubr.bf16.gmra.mxu0 %v840
        %v879 = vpop.f32.mrf.mxu0
        %v880 = vadd.f32 0.0, %v879
        %v881 = vpop.f32.mrf.mxu0
        %v882 = vpop.f32.mrf.mxu0
        %v883 = vadd.f32 0.0, %v882
        %v884 = vpop.f32.mrf.mxu0
        %885 = vmatprep.mubr.bf16.mxu0 0
        %886 = vmatmul.mubr.bf16.gmra.mxu0 %v843
        %v887 = vpop.f32.mrf.mxu0
        %v888 = vadd.f32 0.0, %v887
        %v889 = vpop.f32.mrf.mxu0
        %v890 = vpop.f32.mrf.mxu0
        %v891 = vadd.f32 0.0, %v890
        %v892 = vpop.f32.mrf.mxu0
        %893 = vdwg.mxu0
        %v894 = vpack.c.bf16 %v883, %v880
        %v895 = vpack.c.bf16 %v891, %v888
        %v904 = vunpack.c.l.b16 %v812
        %v905 = vunpack.c.l.b16 %v813
        %v906 = vunpack.c.l.b16 %v814
        %v907 = vunpack.c.l.b16 %v815
        %v908 = vunpack.c.l.b16 %v816
        %v909 = vunpack.c.l.b16 %v817
        %v910 = vunpack.c.l.b16 %v818
        %v911 = vunpack.c.l.b16 %v819
        %v912 = vpack.c.b16 %v905, %v904
        %v913 = vpack.c.b16 %v907, %v906
        %v914 = vpack.c.b16 %v909, %v908
        %v915 = vpack.c.b16 %v911, %v910
        %v917 = vsel %vm838, %v912, 0
        %v920 = vsel %vm838, %v913, 0
        %v923 = vsel %vm838, %v914, 0
        %v926 = vsel %vm838, %v915, 0
        %928 = vmatprep.subr.bf16.mxu0 0
        %929 = vmatpush1.bf16.msra.mxu0 0
        %930 = vmatprep.subr.bf16.mxu0 0
        %931 = vmatpush1.bf16.msra.mxu0 0
        %932 = vmatprep.subr.bf16.mxu0 0
        %933 = vmatpush1.bf16.msra.mxu0 0
        %934 = vmatprep.subr.bf16.mxu0 0
        %935 = vmatpush1.bf16.msra.mxu0 0
        %936 = vmatprep.subr.bf16.mxu0 0
        %937 = vmatpush1.bf16.msra.mxu0 0
        %938 = vmatprep.subr.bf16.mxu0 0
        %939 = vmatpush1.bf16.msra.mxu0 0
        %940 = vmatprep.subr.bf16.mxu0 0
        %941 = vmatpush1.bf16.msra.mxu0 %v895
        %942 = vmatprep.subr.bf16.mxu0 0
        %943 = vmatpush1.bf16.msra.mxu0 %v894
        %944 = vmatprep.subr.bf16.mxu0 0
        %945 = vmatpush2.bf16.msra.mxu0 0
        %946 = vmatprep.subr.bf16.mxu0 0
        %947 = vmatpush2.bf16.msra.mxu0 0
        %948 = vmatprep.subr.bf16.mxu0 0
        %949 = vmatpush2.bf16.msra.mxu0 0
        %950 = vmatprep.subr.bf16.mxu0 0
        %951 = vmatpush2.bf16.msra.mxu0 0
        %952 = vmatprep.subr.bf16.mxu0 0
        %953 = vmatpush2.bf16.msra.mxu0 0
        %954 = vmatprep.subr.bf16.mxu0 0
        %955 = vmatpush2.bf16.msra.mxu0 0
        %956 = vmatprep.subr.bf16.mxu0 0
        %957 = vmatpush2.bf16.msra.mxu0 0
        %958 = vmatprep.subr.bf16.mxu0 0
        %959 = vmatpush2.bf16.msra.mxu0 0
        %960 = vmatprep.mubr.bf16.mxu0 0
        %961 = vmatmul.mubr.bf16.gmra.mxu0 %v917
        %v962 = vpop.f32.mrf.mxu0
        %v963 = vadd.f32 0.0, %v962
        %v964 = vpop.f32.mrf.mxu0
        %v965 = vpop.f32.mrf.mxu0
        %v966 = vadd.f32 0.0, %v965
        %v967 = vpop.f32.mrf.mxu0
        %968 = vmatprep.mubr.bf16.mxu0 0
        %969 = vmatmul.mubr.bf16.gmra.mxu0 %v920
        %v970 = vpop.f32.mrf.mxu0
        %v971 = vadd.f32 0.0, %v970
        %v972 = vpop.f32.mrf.mxu0
        %v973 = vpop.f32.mrf.mxu0
        %v974 = vadd.f32 0.0, %v973
        %v975 = vpop.f32.mrf.mxu0
        %976 = vmatprep.mubr.bf16.mxu0 0
        %977 = vmatmul.mubr.bf16.gmra.mxu0 %v923
        %v978 = vpop.f32.mrf.mxu0
        %v979 = vadd.f32 0.0, %v978
        %v980 = vpop.f32.mrf.mxu0
        %v981 = vpop.f32.mrf.mxu0
        %v982 = vadd.f32 0.0, %v981
        %v983 = vpop.f32.mrf.mxu0
        %984 = vmatprep.mubr.bf16.mxu0 0
        %985 = vmatmul.mubr.bf16.gmra.mxu0 %v926
        %v986 = vpop.f32.mrf.mxu0
        %v987 = vadd.f32 0.0, %v986
        %v988 = vpop.f32.mrf.mxu0
        %v989 = vpop.f32.mrf.mxu0
        %v990 = vadd.f32 0.0, %v989
        %v991 = vpop.f32.mrf.mxu0
        %992 = vdwg.mxu0
        %s993 = sld [smem:[#allocation7]]
        %v994 = vstv %s993
        %v995 = vmul.f32 %v519, %v994
        %v996 = vmul.f32 %v520, %v994
        %v997 = vmul.f32 %v521, %v994
        %v998 = vmul.f32 %v522, %v994
        %v999 = vmul.f32 %v523, %v994
        %v1000 = vmul.f32 %v524, %v994
        %v1001 = vmul.f32 %v525, %v994
        %v1002 = vmul.f32 %v526, %v994
        %s1003 = sld [smem:[#allocation7 + $0x80]]
        %v1004 = vstv %s1003
        %v1005 = vmul.f32 %v528, %v1004
        %v1006 = vmul.f32 %v529, %v1004
        %v1007 = vmul.f32 %v530, %v1004
        %v1008 = vmul.f32 %v531, %v1004
        %v1009 = vmul.f32 %v532, %v1004
        %v1010 = vmul.f32 %v533, %v1004
        %v1011 = vmul.f32 %v534, %v1004
        %v1012 = vmul.f32 %v535, %v1004
        %v1013 = vadd.f32 %v995, %v1005
        %v1014 = vadd.f32 %v996, %v1006
        %v1015 = vadd.f32 %v997, %v1007
        %v1016 = vadd.f32 %v998, %v1008
        %v1017 = vadd.f32 %v999, %v1009
        %v1018 = vadd.f32 %v1000, %v1010
        %v1019 = vadd.f32 %v1001, %v1011
        %v1020 = vadd.f32 %v1002, %v1012
        %s1021 = sld [smem:[#allocation7 + $0x100]]
        %v1022 = vstv %s1021
        %v1023 = vmul.f32 %v537, %v1022
        %v1024 = vmul.f32 %v538, %v1022
        %v1025 = vmul.f32 %v539, %v1022
        %v1026 = vmul.f32 %v540, %v1022
        %v1027 = vmul.f32 %v541, %v1022
        %v1028 = vmul.f32 %v542, %v1022
        %v1029 = vmul.f32 %v543, %v1022
        %v1030 = vmul.f32 %v544, %v1022
        %v1031 = vadd.f32 %v1013, %v1023
        %v1032 = vadd.f32 %v1014, %v1024
        %v1033 = vadd.f32 %v1015, %v1025
        %v1034 = vadd.f32 %v1016, %v1026
        %v1035 = vadd.f32 %v1017, %v1027
        %v1036 = vadd.f32 %v1018, %v1028
        %v1037 = vadd.f32 %v1019, %v1029
        %v1038 = vadd.f32 %v1020, %v1030
        %s1039 = sld [smem:[#allocation3]]
        %v1040 = vstv %s1039
        %v1041 = vadd.f32 %v1031, %v1040
        %v1042 = vadd.f32 %v1032, %v1040
        %v1043 = vadd.f32 %v1033, %v1040
        %v1044 = vadd.f32 %v1034, %v1040
        %v1045 = vadd.f32 %v1035, %v1040
        %v1046 = vadd.f32 %v1036, %v1040
        %v1047 = vadd.f32 %v1037, %v1040
        %v1048 = vadd.f32 %v1038, %v1040
        %v1049 = vxor.u32 %v1041, 2147483648
        %v1050 = vxor.u32 %v1042, 2147483648
        %v1051 = vxor.u32 %v1043, 2147483648
        %v1052 = vxor.u32 %v1044, 2147483648
        %v1053 = vxor.u32 %v1045, 2147483648
        %v1054 = vxor.u32 %v1046, 2147483648
        %v1055 = vxor.u32 %v1047, 2147483648
        %v1056 = vxor.u32 %v1048, 2147483648
        %v1057 = vmul.f32 %v1049, 1.442695
        %v1058 = vpow.pop %v1057
        %v1059 = vmul.f32 %v1050, 1.442695
        %v1060 = vpow.pop %v1059
        %v1061 = vmul.f32 %v1051, 1.442695
        %v1062 = vpow.pop %v1061
        %v1063 = vmul.f32 %v1052, 1.442695
        %v1064 = vpow.pop %v1063
        %v1065 = vmul.f32 %v1053, 1.442695
        %v1066 = vpow.pop %v1065
        %v1067 = vmul.f32 %v1054, 1.442695
        %v1068 = vpow.pop %v1067
        %v1069 = vmul.f32 %v1055, 1.442695
        %v1070 = vpow.pop %v1069
        %v1071 = vmul.f32 %v1056, 1.442695
        %v1072 = vpow.pop %v1071
        %v1073 = vadd.f32 %v1058, 1.0
        %v1074 = vadd.f32 %v1060, 1.0
        %v1075 = vadd.f32 %v1062, 1.0
        %v1076 = vadd.f32 %v1064, 1.0
        %v1077 = vadd.f32 %v1066, 1.0
        %v1078 = vadd.f32 %v1068, 1.0
        %v1079 = vadd.f32 %v1070, 1.0
        %v1080 = vadd.f32 %v1072, 1.0
        %v1081 = vrcp.pop %v1073
        %v1082 = vmul.f32 1.0, %v1081
        %v1083 = vrcp.pop %v1074
        %v1084 = vmul.f32 1.0, %v1083
        %v1085 = vrcp.pop %v1075
        %v1086 = vmul.f32 1.0, %v1085
        %v1087 = vrcp.pop %v1076
        %v1088 = vmul.f32 1.0, %v1087
        %v1089 = vrcp.pop %v1077
        %v1090 = vmul.f32 1.0, %v1089
        %v1091 = vrcp.pop %v1078
        %v1092 = vmul.f32 1.0, %v1091
        %v1093 = vrcp.pop %v1079
        %v1094 = vmul.f32 1.0, %v1093
        %v1095 = vrcp.pop %v1080
        %v1096 = vmul.f32 1.0, %v1095
        %v1097 = vmul.f32 %v963, %v1082
        %v1098 = vmul.f32 %v966, %v1084
        %v1099 = vmul.f32 %v971, %v1086
        %v1100 = vmul.f32 %v974, %v1088
        %v1101 = vmul.f32 %v979, %v1090
        %v1102 = vmul.f32 %v982, %v1092
        %v1103 = vmul.f32 %v987, %v1094
        %v1104 = vmul.f32 %v990, %v1096
        %v1105 = vmul.f32 %v519, %v963
        %v1106 = vmul.f32 %v520, %v966
        %v1107 = vmul.f32 %v521, %v971
        %v1108 = vmul.f32 %v522, %v974
        %v1109 = vmul.f32 %v523, %v979
        %v1110 = vmul.f32 %v524, %v982
        %v1111 = vmul.f32 %v525, %v987
        %v1112 = vmul.f32 %v526, %v990
        %v1113 = vmul.f32 %v528, %v963
        %v1114 = vmul.f32 %v529, %v966
        %v1115 = vmul.f32 %v530, %v971
        %v1116 = vmul.f32 %v531, %v974
        %v1117 = vmul.f32 %v532, %v979
        %v1118 = vmul.f32 %v533, %v982
        %v1119 = vmul.f32 %v534, %v987
        %v1120 = vmul.f32 %v535, %v990
        %v1121 = vmul.f32 %v537, %v963
        %v1122 = vmul.f32 %v538, %v966
        %v1123 = vmul.f32 %v539, %v971
        %v1124 = vmul.f32 %v540, %v974
        %v1125 = vmul.f32 %v541, %v979
        %v1126 = vmul.f32 %v542, %v982
        %v1127 = vmul.f32 %v543, %v987
        %v1128 = vmul.f32 %v544, %v990
        %s1129 = sld [smem:[#allocation9]]
        %v1130 = vstv %s1129
        %v1131 = vmul.f32 %v1105, %v1130
        %v1132 = vmul.f32 %v1106, %v1130
        %v1133 = vmul.f32 %v1107, %v1130
        %v1134 = vmul.f32 %v1108, %v1130
        %v1135 = vmul.f32 %v1109, %v1130
        %v1136 = vmul.f32 %v1110, %v1130
        %v1137 = vmul.f32 %v1111, %v1130
        %v1138 = vmul.f32 %v1112, %v1130
        %s1139 = sld [smem:[#allocation9 + $0x80]]
        %v1140 = vstv %s1139
        %v1141 = vmul.f32 %v1113, %v1140
        %v1142 = vmul.f32 %v1114, %v1140
        %v1143 = vmul.f32 %v1115, %v1140
        %v1144 = vmul.f32 %v1116, %v1140
        %v1145 = vmul.f32 %v1117, %v1140
        %v1146 = vmul.f32 %v1118, %v1140
        %v1147 = vmul.f32 %v1119, %v1140
        %v1148 = vmul.f32 %v1120, %v1140
        %v1149 = vadd.f32 %v1131, %v1141
        %v1150 = vadd.f32 %v1132, %v1142
        %v1151 = vadd.f32 %v1133, %v1143
        %v1152 = vadd.f32 %v1134, %v1144
        %v1153 = vadd.f32 %v1135, %v1145
        %v1154 = vadd.f32 %v1136, %v1146
        %v1155 = vadd.f32 %v1137, %v1147
        %v1156 = vadd.f32 %v1138, %v1148
        %s1157 = sld [smem:[#allocation9 + $0x100]]
        %v1158 = vstv %s1157
        %v1159 = vmul.f32 %v1121, %v1158
        %v1160 = vmul.f32 %v1122, %v1158
        %v1161 = vmul.f32 %v1123, %v1158
        %v1162 = vmul.f32 %v1124, %v1158
        %v1163 = vmul.f32 %v1125, %v1158
        %v1164 = vmul.f32 %v1126, %v1158
        %v1165 = vmul.f32 %v1127, %v1158
        %v1166 = vmul.f32 %v1128, %v1158
        %v1167 = vadd.f32 %v1149, %v1159
        %v1168 = vadd.f32 %v1150, %v1160
        %v1169 = vadd.f32 %v1151, %v1161
        %v1170 = vadd.f32 %v1152, %v1162
        %v1171 = vadd.f32 %v1153, %v1163
        %v1172 = vadd.f32 %v1154, %v1164
        %v1173 = vadd.f32 %v1155, %v1165
        %v1174 = vadd.f32 %v1156, %v1166
        %s1175 = sld [smem:[#allocation10]]
        %v1176 = vstv %s1175
        %v1177 = vadd.f32 %v1167, %v1176
        %v1178 = vadd.f32 %v1168, %v1176
        %v1179 = vadd.f32 %v1169, %v1176
        %v1180 = vadd.f32 %v1170, %v1176
        %v1181 = vadd.f32 %v1171, %v1176
        %v1182 = vadd.f32 %v1172, %v1176
        %v1183 = vadd.f32 %v1173, %v1176
        %v1184 = vadd.f32 %v1174, %v1176
        %v1185 = vmax.f32 %v1177, 0.0
        %v1186 = vmax.f32 %v1178, 0.0
        %v1187 = vmax.f32 %v1179, 0.0
        %v1188 = vmax.f32 %v1180, 0.0
        %v1189 = vmax.f32 %v1181, 0.0
        %v1190 = vmax.f32 %v1182, 0.0
        %v1191 = vmax.f32 %v1183, 0.0
        %v1192 = vmax.f32 %v1184, 0.0
        %s1193 = sld [smem:[#allocation12]]
        %v1194 = vstv %s1193
        %v1195 = vmul.f32 %v1185, %v1194
        %v1196 = vmul.f32 %v1186, %v1194
        %v1197 = vmul.f32 %v1187, %v1194
        %v1198 = vmul.f32 %v1188, %v1194
        %v1199 = vmul.f32 %v1189, %v1194
        %v1200 = vmul.f32 %v1190, %v1194
        %v1201 = vmul.f32 %v1191, %v1194
        %v1202 = vmul.f32 %v1192, %v1194
        %s1203 = sld [smem:[#allocation12 + $0x1]]
        %v1204 = vstv %s1203
        %v1205 = vmul.f32 %v1185, %v1204
        %v1206 = vmul.f32 %v1186, %v1204
        %v1207 = vmul.f32 %v1187, %v1204
        %v1208 = vmul.f32 %v1188, %v1204
        %v1209 = vmul.f32 %v1189, %v1204
        %v1210 = vmul.f32 %v1190, %v1204
        %v1211 = vmul.f32 %v1191, %v1204
        %v1212 = vmul.f32 %v1192, %v1204
        %s1213 = sld [smem:[#allocation12 + $0x2]]
        %v1214 = vstv %s1213
        %v1215 = vmul.f32 %v1185, %v1214
        %v1216 = vmul.f32 %v1186, %v1214
        %v1217 = vmul.f32 %v1187, %v1214
        %v1218 = vmul.f32 %v1188, %v1214
        %v1219 = vmul.f32 %v1189, %v1214
        %v1220 = vmul.f32 %v1190, %v1214
        %v1221 = vmul.f32 %v1191, %v1214
        %v1222 = vmul.f32 %v1192, %v1214
        %s1223 = sld [smem:[#allocation9 + $0x1]]
        %v1224 = vstv %s1223
        %v1225 = vmul.f32 %v1105, %v1224
        %v1226 = vmul.f32 %v1106, %v1224
        %v1227 = vmul.f32 %v1107, %v1224
        %v1228 = vmul.f32 %v1108, %v1224
        %v1229 = vmul.f32 %v1109, %v1224
        %v1230 = vmul.f32 %v1110, %v1224
        %v1231 = vmul.f32 %v1111, %v1224
        %v1232 = vmul.f32 %v1112, %v1224
        %s1233 = sld [smem:[#allocation9 + $0x81]]
        %v1234 = vstv %s1233
        %v1235 = vmul.f32 %v1113, %v1234
        %v1236 = vmul.f32 %v1114, %v1234
        %v1237 = vmul.f32 %v1115, %v1234
        %v1238 = vmul.f32 %v1116, %v1234
        %v1239 = vmul.f32 %v1117, %v1234
        %v1240 = vmul.f32 %v1118, %v1234
        %v1241 = vmul.f32 %v1119, %v1234
        %v1242 = vmul.f32 %v1120, %v1234
        %v1243 = vadd.f32 %v1225, %v1235
        %v1244 = vadd.f32 %v1226, %v1236
        %v1245 = vadd.f32 %v1227, %v1237
        %v1246 = vadd.f32 %v1228, %v1238
        %v1247 = vadd.f32 %v1229, %v1239
        %v1248 = vadd.f32 %v1230, %v1240
        %v1249 = vadd.f32 %v1231, %v1241
        %v1250 = vadd.f32 %v1232, %v1242
        %s1251 = sld [smem:[#allocation9 + $0x101]]
        %v1252 = vstv %s1251
        %v1253 = vmul.f32 %v1121, %v1252
        %v1254 = vmul.f32 %v1122, %v1252
        %v1255 = vmul.f32 %v1123, %v1252
        %v1256 = vmul.f32 %v1124, %v1252
        %v1257 = vmul.f32 %v1125, %v1252
        %v1258 = vmul.f32 %v1126, %v1252
        %v1259 = vmul.f32 %v1127, %v1252
        %v1260 = vmul.f32 %v1128, %v1252
        %v1261 = vadd.f32 %v1243, %v1253
        %v1262 = vadd.f32 %v1244, %v1254
        %v1263 = vadd.f32 %v1245, %v1255
        %v1264 = vadd.f32 %v1246, %v1256
        %v1265 = vadd.f32 %v1247, %v1257
        %v1266 = vadd.f32 %v1248, %v1258
        %v1267 = vadd.f32 %v1249, %v1259
        %v1268 = vadd.f32 %v1250, %v1260
        %s1269 = sld [smem:[#allocation10 + $0x1]]
        %v1270 = vstv %s1269
        %v1271 = vadd.f32 %v1261, %v1270
        %v1272 = vadd.f32 %v1262, %v1270
        %v1273 = vadd.f32 %v1263, %v1270
        %v1274 = vadd.f32 %v1264, %v1270
        %v1275 = vadd.f32 %v1265, %v1270
        %v1276 = vadd.f32 %v1266, %v1270
        %v1277 = vadd.f32 %v1267, %v1270
        %v1278 = vadd.f32 %v1268, %v1270
        %v1279 = vmax.f32 %v1271, 0.0
        %v1280 = vmax.f32 %v1272, 0.0
        %v1281 = vmax.f32 %v1273, 0.0
        %v1282 = vmax.f32 %v1274, 0.0
        %v1283 = vmax.f32 %v1275, 0.0
        %v1284 = vmax.f32 %v1276, 0.0
        %v1285 = vmax.f32 %v1277, 0.0
        %v1286 = vmax.f32 %v1278, 0.0
        %s1287 = sld [smem:[#allocation12 + $0x80]]
        %v1288 = vstv %s1287
        %v1289 = vmul.f32 %v1279, %v1288
        %v1290 = vmul.f32 %v1280, %v1288
        %v1291 = vmul.f32 %v1281, %v1288
        %v1292 = vmul.f32 %v1282, %v1288
        %v1293 = vmul.f32 %v1283, %v1288
        %v1294 = vmul.f32 %v1284, %v1288
        %v1295 = vmul.f32 %v1285, %v1288
        %v1296 = vmul.f32 %v1286, %v1288
        %v1297 = vadd.f32 %v1195, %v1289
        %v1298 = vadd.f32 %v1196, %v1290
        %v1299 = vadd.f32 %v1197, %v1291
        %v1300 = vadd.f32 %v1198, %v1292
        %v1301 = vadd.f32 %v1199, %v1293
        %v1302 = vadd.f32 %v1200, %v1294
        %v1303 = vadd.f32 %v1201, %v1295
        %v1304 = vadd.f32 %v1202, %v1296
        %s1305 = sld [smem:[#allocation12 + $0x81]]
        %v1306 = vstv %s1305
        %v1307 = vmul.f32 %v1279, %v1306
        %v1308 = vmul.f32 %v1280, %v1306
        %v1309 = vmul.f32 %v1281, %v1306
        %v1310 = vmul.f32 %v1282, %v1306
        %v1311 = vmul.f32 %v1283, %v1306
        %v1312 = vmul.f32 %v1284, %v1306
        %v1313 = vmul.f32 %v1285, %v1306
        %v1314 = vmul.f32 %v1286, %v1306
        %v1315 = vadd.f32 %v1205, %v1307
        %v1316 = vadd.f32 %v1206, %v1308
        %v1317 = vadd.f32 %v1207, %v1309
        %v1318 = vadd.f32 %v1208, %v1310
        %v1319 = vadd.f32 %v1209, %v1311
        %v1320 = vadd.f32 %v1210, %v1312
        %v1321 = vadd.f32 %v1211, %v1313
        %v1322 = vadd.f32 %v1212, %v1314
        %s1323 = sld [smem:[#allocation12 + $0x82]]
        %v1324 = vstv %s1323
        %v1325 = vmul.f32 %v1279, %v1324
        %v1326 = vmul.f32 %v1280, %v1324
        %v1327 = vmul.f32 %v1281, %v1324
        %v1328 = vmul.f32 %v1282, %v1324
        %v1329 = vmul.f32 %v1283, %v1324
        %v1330 = vmul.f32 %v1284, %v1324
        %v1331 = vmul.f32 %v1285, %v1324
        %v1332 = vmul.f32 %v1286, %v1324
        %v1333 = vadd.f32 %v1215, %v1325
        %v1334 = vadd.f32 %v1216, %v1326
        %v1335 = vadd.f32 %v1217, %v1327
        %v1336 = vadd.f32 %v1218, %v1328
        %v1337 = vadd.f32 %v1219, %v1329
        %v1338 = vadd.f32 %v1220, %v1330
        %v1339 = vadd.f32 %v1221, %v1331
        %v1340 = vadd.f32 %v1222, %v1332
        %s1341 = sld [smem:[#allocation9 + $0x2]]
        %v1342 = vstv %s1341
        %v1343 = vmul.f32 %v1105, %v1342
        %v1344 = vmul.f32 %v1106, %v1342
        %v1345 = vmul.f32 %v1107, %v1342
        %v1346 = vmul.f32 %v1108, %v1342
        %v1347 = vmul.f32 %v1109, %v1342
        %v1348 = vmul.f32 %v1110, %v1342
        %v1349 = vmul.f32 %v1111, %v1342
        %v1350 = vmul.f32 %v1112, %v1342
        %s1351 = sld [smem:[#allocation9 + $0x82]]
        %v1352 = vstv %s1351
        %v1353 = vmul.f32 %v1113, %v1352
        %v1354 = vmul.f32 %v1114, %v1352
        %v1355 = vmul.f32 %v1115, %v1352
        %v1356 = vmul.f32 %v1116, %v1352
        %v1357 = vmul.f32 %v1117, %v1352
        %v1358 = vmul.f32 %v1118, %v1352
        %v1359 = vmul.f32 %v1119, %v1352
        %v1360 = vmul.f32 %v1120, %v1352
        %v1361 = vadd.f32 %v1343, %v1353
        %v1362 = vadd.f32 %v1344, %v1354
        %v1363 = vadd.f32 %v1345, %v1355
        %v1364 = vadd.f32 %v1346, %v1356
        %v1365 = vadd.f32 %v1347, %v1357
        %v1366 = vadd.f32 %v1348, %v1358
        %v1367 = vadd.f32 %v1349, %v1359
        %v1368 = vadd.f32 %v1350, %v1360
        %s1369 = sld [smem:[#allocation9 + $0x102]]
        %v1370 = vstv %s1369
        %v1371 = vmul.f32 %v1121, %v1370
        %v1372 = vmul.f32 %v1122, %v1370
        %v1373 = vmul.f32 %v1123, %v1370
        %v1374 = vmul.f32 %v1124, %v1370
        %v1375 = vmul.f32 %v1125, %v1370
        %v1376 = vmul.f32 %v1126, %v1370
        %v1377 = vmul.f32 %v1127, %v1370
        %v1378 = vmul.f32 %v1128, %v1370
        %v1379 = vadd.f32 %v1361, %v1371
        %v1380 = vadd.f32 %v1362, %v1372
        %v1381 = vadd.f32 %v1363, %v1373
        %v1382 = vadd.f32 %v1364, %v1374
        %v1383 = vadd.f32 %v1365, %v1375
        %v1384 = vadd.f32 %v1366, %v1376
        %v1385 = vadd.f32 %v1367, %v1377
        %v1386 = vadd.f32 %v1368, %v1378
        %s1387 = sld [smem:[#allocation10 + $0x2]]
        %v1388 = vstv %s1387
        %v1389 = vadd.f32 %v1379, %v1388
        %v1390 = vadd.f32 %v1380, %v1388
        %v1391 = vadd.f32 %v1381, %v1388
        %v1392 = vadd.f32 %v1382, %v1388
        %v1393 = vadd.f32 %v1383, %v1388
        %v1394 = vadd.f32 %v1384, %v1388
        %v1395 = vadd.f32 %v1385, %v1388
        %v1396 = vadd.f32 %v1386, %v1388
        %v1397 = vmax.f32 %v1389, 0.0
        %v1398 = vmax.f32 %v1390, 0.0
        %v1399 = vmax.f32 %v1391, 0.0
        %v1400 = vmax.f32 %v1392, 0.0
        %v1401 = vmax.f32 %v1393, 0.0
        %v1402 = vmax.f32 %v1394, 0.0
        %v1403 = vmax.f32 %v1395, 0.0
        %v1404 = vmax.f32 %v1396, 0.0
        %s1405 = sld [smem:[#allocation12 + $0x100]]
        %v1406 = vstv %s1405
        %v1407 = vmul.f32 %v1397, %v1406
        %v1408 = vmul.f32 %v1398, %v1406
        %v1409 = vmul.f32 %v1399, %v1406
        %v1410 = vmul.f32 %v1400, %v1406
        %v1411 = vmul.f32 %v1401, %v1406
        %v1412 = vmul.f32 %v1402, %v1406
        %v1413 = vmul.f32 %v1403, %v1406
        %v1414 = vmul.f32 %v1404, %v1406
        %v1415 = vadd.f32 %v1297, %v1407
        %v1416 = vadd.f32 %v1298, %v1408
        %v1417 = vadd.f32 %v1299, %v1409
        %v1418 = vadd.f32 %v1300, %v1410
        %v1419 = vadd.f32 %v1301, %v1411
        %v1420 = vadd.f32 %v1302, %v1412
        %v1421 = vadd.f32 %v1303, %v1413
        %v1422 = vadd.f32 %v1304, %v1414
        %s1423 = sld [smem:[#allocation12 + $0x101]]
        %v1424 = vstv %s1423
        %v1425 = vmul.f32 %v1397, %v1424
        %v1426 = vmul.f32 %v1398, %v1424
        %v1427 = vmul.f32 %v1399, %v1424
        %v1428 = vmul.f32 %v1400, %v1424
        %v1429 = vmul.f32 %v1401, %v1424
        %v1430 = vmul.f32 %v1402, %v1424
        %v1431 = vmul.f32 %v1403, %v1424
        %v1432 = vmul.f32 %v1404, %v1424
        %v1433 = vadd.f32 %v1315, %v1425
        %v1434 = vadd.f32 %v1316, %v1426
        %v1435 = vadd.f32 %v1317, %v1427
        %v1436 = vadd.f32 %v1318, %v1428
        %v1437 = vadd.f32 %v1319, %v1429
        %v1438 = vadd.f32 %v1320, %v1430
        %v1439 = vadd.f32 %v1321, %v1431
        %v1440 = vadd.f32 %v1322, %v1432
        %s1441 = sld [smem:[#allocation12 + $0x102]]
        %v1442 = vstv %s1441
        %v1443 = vmul.f32 %v1397, %v1442
        %v1444 = vmul.f32 %v1398, %v1442
        %v1445 = vmul.f32 %v1399, %v1442
        %v1446 = vmul.f32 %v1400, %v1442
        %v1447 = vmul.f32 %v1401, %v1442
        %v1448 = vmul.f32 %v1402, %v1442
        %v1449 = vmul.f32 %v1403, %v1442
        %v1450 = vmul.f32 %v1404, %v1442
        %v1451 = vadd.f32 %v1333, %v1443
        %v1452 = vadd.f32 %v1334, %v1444
        %v1453 = vadd.f32 %v1335, %v1445
        %v1454 = vadd.f32 %v1336, %v1446
        %v1455 = vadd.f32 %v1337, %v1447
        %v1456 = vadd.f32 %v1338, %v1448
        %v1457 = vadd.f32 %v1339, %v1449
        %v1458 = vadd.f32 %v1340, %v1450
        %s1459 = sld [smem:[#allocation9 + $0x3]]
        %v1460 = vstv %s1459
        %v1461 = vmul.f32 %v1105, %v1460
        %v1462 = vmul.f32 %v1106, %v1460
        %v1463 = vmul.f32 %v1107, %v1460
        %v1464 = vmul.f32 %v1108, %v1460
        %v1465 = vmul.f32 %v1109, %v1460
        %v1466 = vmul.f32 %v1110, %v1460
        %v1467 = vmul.f32 %v1111, %v1460
        %v1468 = vmul.f32 %v1112, %v1460
        %s1469 = sld [smem:[#allocation9 + $0x83]]
        %v1470 = vstv %s1469
        %v1471 = vmul.f32 %v1113, %v1470
        %v1472 = vmul.f32 %v1114, %v1470
        %v1473 = vmul.f32 %v1115, %v1470
        %v1474 = vmul.f32 %v1116, %v1470
        %v1475 = vmul.f32 %v1117, %v1470
        %v1476 = vmul.f32 %v1118, %v1470
        %v1477 = vmul.f32 %v1119, %v1470
        %v1478 = vmul.f32 %v1120, %v1470
        %v1479 = vadd.f32 %v1461, %v1471
        %v1480 = vadd.f32 %v1462, %v1472
        %v1481 = vadd.f32 %v1463, %v1473
        %v1482 = vadd.f32 %v1464, %v1474
        %v1483 = vadd.f32 %v1465, %v1475
        %v1484 = vadd.f32 %v1466, %v1476
        %v1485 = vadd.f32 %v1467, %v1477
        %v1486 = vadd.f32 %v1468, %v1478
        %s1487 = sld [smem:[#allocation9 + $0x103]]
        %v1488 = vstv %s1487
        %v1489 = vmul.f32 %v1121, %v1488
        %v1490 = vmul.f32 %v1122, %v1488
        %v1491 = vmul.f32 %v1123, %v1488
        %v1492 = vmul.f32 %v1124, %v1488
        %v1493 = vmul.f32 %v1125, %v1488
        %v1494 = vmul.f32 %v1126, %v1488
        %v1495 = vmul.f32 %v1127, %v1488
        %v1496 = vmul.f32 %v1128, %v1488
        %v1497 = vadd.f32 %v1479, %v1489
        %v1498 = vadd.f32 %v1480, %v1490
        %v1499 = vadd.f32 %v1481, %v1491
        %v1500 = vadd.f32 %v1482, %v1492
        %v1501 = vadd.f32 %v1483, %v1493
        %v1502 = vadd.f32 %v1484, %v1494
        %v1503 = vadd.f32 %v1485, %v1495
        %v1504 = vadd.f32 %v1486, %v1496
        %s1505 = sld [smem:[#allocation10 + $0x3]]
        %v1506 = vstv %s1505
        %v1507 = vadd.f32 %v1497, %v1506
        %v1508 = vadd.f32 %v1498, %v1506
        %v1509 = vadd.f32 %v1499, %v1506
        %v1510 = vadd.f32 %v1500, %v1506
        %v1511 = vadd.f32 %v1501, %v1506
        %v1512 = vadd.f32 %v1502, %v1506
        %v1513 = vadd.f32 %v1503, %v1506
        %v1514 = vadd.f32 %v1504, %v1506
        %v1515 = vmax.f32 %v1507, 0.0
        %v1516 = vmax.f32 %v1508, 0.0
        %v1517 = vmax.f32 %v1509, 0.0
        %v1518 = vmax.f32 %v1510, 0.0
        %v1519 = vmax.f32 %v1511, 0.0
        %v1520 = vmax.f32 %v1512, 0.0
        %v1521 = vmax.f32 %v1513, 0.0
        %v1522 = vmax.f32 %v1514, 0.0
        %s1523 = sld [smem:[#allocation12 + $0x180]]
        %v1524 = vstv %s1523
        %v1525 = vmul.f32 %v1515, %v1524
        %v1526 = vmul.f32 %v1516, %v1524
        %v1527 = vmul.f32 %v1517, %v1524
        %v1528 = vmul.f32 %v1518, %v1524
        %v1529 = vmul.f32 %v1519, %v1524
        %v1530 = vmul.f32 %v1520, %v1524
        %v1531 = vmul.f32 %v1521, %v1524
        %v1532 = vmul.f32 %v1522, %v1524
        %v1533 = vadd.f32 %v1415, %v1525
        %v1534 = vadd.f32 %v1416, %v1526
        %v1535 = vadd.f32 %v1417, %v1527
        %v1536 = vadd.f32 %v1418, %v1528
        %v1537 = vadd.f32 %v1419, %v1529
        %v1538 = vadd.f32 %v1420, %v1530
        %v1539 = vadd.f32 %v1421, %v1531
        %v1540 = vadd.f32 %v1422, %v1532
        %s1541 = sld [smem:[#allocation12 + $0x181]]
        %v1542 = vstv %s1541
        %v1543 = vmul.f32 %v1515, %v1542
        %v1544 = vmul.f32 %v1516, %v1542
        %v1545 = vmul.f32 %v1517, %v1542
        %v1546 = vmul.f32 %v1518, %v1542
        %v1547 = vmul.f32 %v1519, %v1542
        %v1548 = vmul.f32 %v1520, %v1542
        %v1549 = vmul.f32 %v1521, %v1542
        %v1550 = vmul.f32 %v1522, %v1542
        %v1551 = vadd.f32 %v1433, %v1543
        %v1552 = vadd.f32 %v1434, %v1544
        %v1553 = vadd.f32 %v1435, %v1545
        %v1554 = vadd.f32 %v1436, %v1546
        %v1555 = vadd.f32 %v1437, %v1547
        %v1556 = vadd.f32 %v1438, %v1548
        %v1557 = vadd.f32 %v1439, %v1549
        %v1558 = vadd.f32 %v1440, %v1550
        %s1559 = sld [smem:[#allocation12 + $0x182]]
        %v1560 = vstv %s1559
        %v1561 = vmul.f32 %v1515, %v1560
        %v1562 = vmul.f32 %v1516, %v1560
        %v1563 = vmul.f32 %v1517, %v1560
        %v1564 = vmul.f32 %v1518, %v1560
        %v1565 = vmul.f32 %v1519, %v1560
        %v1566 = vmul.f32 %v1520, %v1560
        %v1567 = vmul.f32 %v1521, %v1560
        %v1568 = vmul.f32 %v1522, %v1560
        %v1569 = vadd.f32 %v1451, %v1561
        %v1570 = vadd.f32 %v1452, %v1562
        %v1571 = vadd.f32 %v1453, %v1563
        %v1572 = vadd.f32 %v1454, %v1564
        %v1573 = vadd.f32 %v1455, %v1565
        %v1574 = vadd.f32 %v1456, %v1566
        %v1575 = vadd.f32 %v1457, %v1567
        %v1576 = vadd.f32 %v1458, %v1568
        %s1577 = sld [smem:[#allocation9 + $0x4]]
        %v1578 = vstv %s1577
        %v1579 = vmul.f32 %v1105, %v1578
        %v1580 = vmul.f32 %v1106, %v1578
        %v1581 = vmul.f32 %v1107, %v1578
        %v1582 = vmul.f32 %v1108, %v1578
        %v1583 = vmul.f32 %v1109, %v1578
        %v1584 = vmul.f32 %v1110, %v1578
        %v1585 = vmul.f32 %v1111, %v1578
        %v1586 = vmul.f32 %v1112, %v1578
        %s1587 = sld [smem:[#allocation9 + $0x84]]
        %v1588 = vstv %s1587
        %v1589 = vmul.f32 %v1113, %v1588
        %v1590 = vmul.f32 %v1114, %v1588
        %v1591 = vmul.f32 %v1115, %v1588
        %v1592 = vmul.f32 %v1116, %v1588
        %v1593 = vmul.f32 %v1117, %v1588
        %v1594 = vmul.f32 %v1118, %v1588
        %v1595 = vmul.f32 %v1119, %v1588
        %v1596 = vmul.f32 %v1120, %v1588
        %v1597 = vadd.f32 %v1579, %v1589
        %v1598 = vadd.f32 %v1580, %v1590
        %v1599 = vadd.f32 %v1581, %v1591
        %v1600 = vadd.f32 %v1582, %v1592
        %v1601 = vadd.f32 %v1583, %v1593
        %v1602 = vadd.f32 %v1584, %v1594
        %v1603 = vadd.f32 %v1585, %v1595
        %v1604 = vadd.f32 %v1586, %v1596
        %s1605 = sld [smem:[#allocation9 + $0x104]]
        %v1606 = vstv %s1605
        %v1607 = vmul.f32 %v1121, %v1606
        %v1608 = vmul.f32 %v1122, %v1606
        %v1609 = vmul.f32 %v1123, %v1606
        %v1610 = vmul.f32 %v1124, %v1606
        %v1611 = vmul.f32 %v1125, %v1606
        %v1612 = vmul.f32 %v1126, %v1606
        %v1613 = vmul.f32 %v1127, %v1606
        %v1614 = vmul.f32 %v1128, %v1606
        %v1615 = vadd.f32 %v1597, %v1607
        %v1616 = vadd.f32 %v1598, %v1608
        %v1617 = vadd.f32 %v1599, %v1609
        %v1618 = vadd.f32 %v1600, %v1610
        %v1619 = vadd.f32 %v1601, %v1611
        %v1620 = vadd.f32 %v1602, %v1612
        %v1621 = vadd.f32 %v1603, %v1613
        %v1622 = vadd.f32 %v1604, %v1614
        %s1623 = sld [smem:[#allocation10 + $0x4]]
        %v1624 = vstv %s1623
        %v1625 = vadd.f32 %v1615, %v1624
        %v1626 = vadd.f32 %v1616, %v1624
        %v1627 = vadd.f32 %v1617, %v1624
        %v1628 = vadd.f32 %v1618, %v1624
        %v1629 = vadd.f32 %v1619, %v1624
        %v1630 = vadd.f32 %v1620, %v1624
        %v1631 = vadd.f32 %v1621, %v1624
        %v1632 = vadd.f32 %v1622, %v1624
        %v1633 = vmax.f32 %v1625, 0.0
        %v1634 = vmax.f32 %v1626, 0.0
        %v1635 = vmax.f32 %v1627, 0.0
        %v1636 = vmax.f32 %v1628, 0.0
        %v1637 = vmax.f32 %v1629, 0.0
        %v1638 = vmax.f32 %v1630, 0.0
        %v1639 = vmax.f32 %v1631, 0.0
        %v1640 = vmax.f32 %v1632, 0.0
        %s1641 = sld [smem:[#allocation12 + $0x200]]
        %v1642 = vstv %s1641
        %v1643 = vmul.f32 %v1633, %v1642
        %v1644 = vmul.f32 %v1634, %v1642
        %v1645 = vmul.f32 %v1635, %v1642
        %v1646 = vmul.f32 %v1636, %v1642
        %v1647 = vmul.f32 %v1637, %v1642
        %v1648 = vmul.f32 %v1638, %v1642
        %v1649 = vmul.f32 %v1639, %v1642
        %v1650 = vmul.f32 %v1640, %v1642
        %v1651 = vadd.f32 %v1533, %v1643
        %v1652 = vadd.f32 %v1534, %v1644
        %v1653 = vadd.f32 %v1535, %v1645
        %v1654 = vadd.f32 %v1536, %v1646
        %v1655 = vadd.f32 %v1537, %v1647
        %v1656 = vadd.f32 %v1538, %v1648
        %v1657 = vadd.f32 %v1539, %v1649
        %v1658 = vadd.f32 %v1540, %v1650
        %s1659 = sld [smem:[#allocation12 + $0x201]]
        %v1660 = vstv %s1659
        %v1661 = vmul.f32 %v1633, %v1660
        %v1662 = vmul.f32 %v1634, %v1660
        %v1663 = vmul.f32 %v1635, %v1660
        %v1664 = vmul.f32 %v1636, %v1660
        %v1665 = vmul.f32 %v1637, %v1660
        %v1666 = vmul.f32 %v1638, %v1660
        %v1667 = vmul.f32 %v1639, %v1660
        %v1668 = vmul.f32 %v1640, %v1660
        %v1669 = vadd.f32 %v1551, %v1661
        %v1670 = vadd.f32 %v1552, %v1662
        %v1671 = vadd.f32 %v1553, %v1663
        %v1672 = vadd.f32 %v1554, %v1664
        %v1673 = vadd.f32 %v1555, %v1665
        %v1674 = vadd.f32 %v1556, %v1666
        %v1675 = vadd.f32 %v1557, %v1667
        %v1676 = vadd.f32 %v1558, %v1668
        %s1677 = sld [smem:[#allocation12 + $0x202]]
        %v1678 = vstv %s1677
        %v1679 = vmul.f32 %v1633, %v1678
        %v1680 = vmul.f32 %v1634, %v1678
        %v1681 = vmul.f32 %v1635, %v1678
        %v1682 = vmul.f32 %v1636, %v1678
        %v1683 = vmul.f32 %v1637, %v1678
        %v1684 = vmul.f32 %v1638, %v1678
        %v1685 = vmul.f32 %v1639, %v1678
        %v1686 = vmul.f32 %v1640, %v1678
        %v1687 = vadd.f32 %v1569, %v1679
        %v1688 = vadd.f32 %v1570, %v1680
        %v1689 = vadd.f32 %v1571, %v1681
        %v1690 = vadd.f32 %v1572, %v1682
        %v1691 = vadd.f32 %v1573, %v1683
        %v1692 = vadd.f32 %v1574, %v1684
        %v1693 = vadd.f32 %v1575, %v1685
        %v1694 = vadd.f32 %v1576, %v1686
        %s1695 = sld [smem:[#allocation9 + $0x5]]
        %v1696 = vstv %s1695
        %v1697 = vmul.f32 %v1105, %v1696
        %v1698 = vmul.f32 %v1106, %v1696
        %v1699 = vmul.f32 %v1107, %v1696
        %v1700 = vmul.f32 %v1108, %v1696
        %v1701 = vmul.f32 %v1109, %v1696
        %v1702 = vmul.f32 %v1110, %v1696
        %v1703 = vmul.f32 %v1111, %v1696
        %v1704 = vmul.f32 %v1112, %v1696
        %s1705 = sld [smem:[#allocation9 + $0x85]]
        %v1706 = vstv %s1705
        %v1707 = vmul.f32 %v1113, %v1706
        %v1708 = vmul.f32 %v1114, %v1706
        %v1709 = vmul.f32 %v1115, %v1706
        %v1710 = vmul.f32 %v1116, %v1706
        %v1711 = vmul.f32 %v1117, %v1706
        %v1712 = vmul.f32 %v1118, %v1706
        %v1713 = vmul.f32 %v1119, %v1706
        %v1714 = vmul.f32 %v1120, %v1706
        %v1715 = vadd.f32 %v1697, %v1707
        %v1716 = vadd.f32 %v1698, %v1708
        %v1717 = vadd.f32 %v1699, %v1709
        %v1718 = vadd.f32 %v1700, %v1710
        %v1719 = vadd.f32 %v1701, %v1711
        %v1720 = vadd.f32 %v1702, %v1712
        %v1721 = vadd.f32 %v1703, %v1713
        %v1722 = vadd.f32 %v1704, %v1714
        %s1723 = sld [smem:[#allocation9 + $0x105]]
        %v1724 = vstv %s1723
        %v1725 = vmul.f32 %v1121, %v1724
        %v1726 = vmul.f32 %v1122, %v1724
        %v1727 = vmul.f32 %v1123, %v1724
        %v1728 = vmul.f32 %v1124, %v1724
        %v1729 = vmul.f32 %v1125, %v1724
        %v1730 = vmul.f32 %v1126, %v1724
        %v1731 = vmul.f32 %v1127, %v1724
        %v1732 = vmul.f32 %v1128, %v1724
        %v1733 = vadd.f32 %v1715, %v1725
        %v1734 = vadd.f32 %v1716, %v1726
        %v1735 = vadd.f32 %v1717, %v1727
        %v1736 = vadd.f32 %v1718, %v1728
        %v1737 = vadd.f32 %v1719, %v1729
        %v1738 = vadd.f32 %v1720, %v1730
        %v1739 = vadd.f32 %v1721, %v1731
        %v1740 = vadd.f32 %v1722, %v1732
        %s1741 = sld [smem:[#allocation10 + $0x5]]
        %v1742 = vstv %s1741
        %v1743 = vadd.f32 %v1733, %v1742
        %v1744 = vadd.f32 %v1734, %v1742
        %v1745 = vadd.f32 %v1735, %v1742
        %v1746 = vadd.f32 %v1736, %v1742
        %v1747 = vadd.f32 %v1737, %v1742
        %v1748 = vadd.f32 %v1738, %v1742
        %v1749 = vadd.f32 %v1739, %v1742
        %v1750 = vadd.f32 %v1740, %v1742
        %v1751 = vmax.f32 %v1743, 0.0
        %v1752 = vmax.f32 %v1744, 0.0
        %v1753 = vmax.f32 %v1745, 0.0
        %v1754 = vmax.f32 %v1746, 0.0
        %v1755 = vmax.f32 %v1747, 0.0
        %v1756 = vmax.f32 %v1748, 0.0
        %v1757 = vmax.f32 %v1749, 0.0
        %v1758 = vmax.f32 %v1750, 0.0
        %s1759 = sld [smem:[#allocation12 + $0x280]]
        %v1760 = vstv %s1759
        %v1761 = vmul.f32 %v1751, %v1760
        %v1762 = vmul.f32 %v1752, %v1760
        %v1763 = vmul.f32 %v1753, %v1760
        %v1764 = vmul.f32 %v1754, %v1760
        %v1765 = vmul.f32 %v1755, %v1760
        %v1766 = vmul.f32 %v1756, %v1760
        %v1767 = vmul.f32 %v1757, %v1760
        %v1768 = vmul.f32 %v1758, %v1760
        %v1769 = vadd.f32 %v1651, %v1761
        %v1770 = vadd.f32 %v1652, %v1762
        %v1771 = vadd.f32 %v1653, %v1763
        %v1772 = vadd.f32 %v1654, %v1764
        %v1773 = vadd.f32 %v1655, %v1765
        %v1774 = vadd.f32 %v1656, %v1766
        %v1775 = vadd.f32 %v1657, %v1767
        %v1776 = vadd.f32 %v1658, %v1768
        %s1777 = sld [smem:[#allocation12 + $0x281]]
        %v1778 = vstv %s1777
        %v1779 = vmul.f32 %v1751, %v1778
        %v1780 = vmul.f32 %v1752, %v1778
        %v1781 = vmul.f32 %v1753, %v1778
        %v1782 = vmul.f32 %v1754, %v1778
        %v1783 = vmul.f32 %v1755, %v1778
        %v1784 = vmul.f32 %v1756, %v1778
        %v1785 = vmul.f32 %v1757, %v1778
        %v1786 = vmul.f32 %v1758, %v1778
        %v1787 = vadd.f32 %v1669, %v1779
        %v1788 = vadd.f32 %v1670, %v1780
        %v1789 = vadd.f32 %v1671, %v1781
        %v1790 = vadd.f32 %v1672, %v1782
        %v1791 = vadd.f32 %v1673, %v1783
        %v1792 = vadd.f32 %v1674, %v1784
        %v1793 = vadd.f32 %v1675, %v1785
        %v1794 = vadd.f32 %v1676, %v1786
        %s1795 = sld [smem:[#allocation12 + $0x282]]
        %v1796 = vstv %s1795
        %v1797 = vmul.f32 %v1751, %v1796
        %v1798 = vmul.f32 %v1752, %v1796
        %v1799 = vmul.f32 %v1753, %v1796
        %v1800 = vmul.f32 %v1754, %v1796
        %v1801 = vmul.f32 %v1755, %v1796
        %v1802 = vmul.f32 %v1756, %v1796
        %v1803 = vmul.f32 %v1757, %v1796
        %v1804 = vmul.f32 %v1758, %v1796
        %v1805 = vadd.f32 %v1687, %v1797
        %v1806 = vadd.f32 %v1688, %v1798
        %v1807 = vadd.f32 %v1689, %v1799
        %v1808 = vadd.f32 %v1690, %v1800
        %v1809 = vadd.f32 %v1691, %v1801
        %v1810 = vadd.f32 %v1692, %v1802
        %v1811 = vadd.f32 %v1693, %v1803
        %v1812 = vadd.f32 %v1694, %v1804
        %s1813 = sld [smem:[#allocation9 + $0x6]]
        %v1814 = vstv %s1813
        %v1815 = vmul.f32 %v1105, %v1814
        %v1816 = vmul.f32 %v1106, %v1814
        %v1817 = vmul.f32 %v1107, %v1814
        %v1818 = vmul.f32 %v1108, %v1814
        %v1819 = vmul.f32 %v1109, %v1814
        %v1820 = vmul.f32 %v1110, %v1814
        %v1821 = vmul.f32 %v1111, %v1814
        %v1822 = vmul.f32 %v1112, %v1814
        %s1823 = sld [smem:[#allocation9 + $0x86]]
        %v1824 = vstv %s1823
        %v1825 = vmul.f32 %v1113, %v1824
        %v1826 = vmul.f32 %v1114, %v1824
        %v1827 = vmul.f32 %v1115, %v1824
        %v1828 = vmul.f32 %v1116, %v1824
        %v1829 = vmul.f32 %v1117, %v1824
        %v1830 = vmul.f32 %v1118, %v1824
        %v1831 = vmul.f32 %v1119, %v1824
        %v1832 = vmul.f32 %v1120, %v1824
        %v1833 = vadd.f32 %v1815, %v1825
        %v1834 = vadd.f32 %v1816, %v1826
        %v1835 = vadd.f32 %v1817, %v1827
        %v1836 = vadd.f32 %v1818, %v1828
        %v1837 = vadd.f32 %v1819, %v1829
        %v1838 = vadd.f32 %v1820, %v1830
        %v1839 = vadd.f32 %v1821, %v1831
        %v1840 = vadd.f32 %v1822, %v1832
        %s1841 = sld [smem:[#allocation9 + $0x106]]
        %v1842 = vstv %s1841
        %v1843 = vmul.f32 %v1121, %v1842
        %v1844 = vmul.f32 %v1122, %v1842
        %v1845 = vmul.f32 %v1123, %v1842
        %v1846 = vmul.f32 %v1124, %v1842
        %v1847 = vmul.f32 %v1125, %v1842
        %v1848 = vmul.f32 %v1126, %v1842
        %v1849 = vmul.f32 %v1127, %v1842
        %v1850 = vmul.f32 %v1128, %v1842
        %v1851 = vadd.f32 %v1833, %v1843
        %v1852 = vadd.f32 %v1834, %v1844
        %v1853 = vadd.f32 %v1835, %v1845
        %v1854 = vadd.f32 %v1836, %v1846
        %v1855 = vadd.f32 %v1837, %v1847
        %v1856 = vadd.f32 %v1838, %v1848
        %v1857 = vadd.f32 %v1839, %v1849
        %v1858 = vadd.f32 %v1840, %v1850
        %s1859 = sld [smem:[#allocation10 + $0x6]]
        %v1860 = vstv %s1859
        %v1861 = vadd.f32 %v1851, %v1860
        %v1862 = vadd.f32 %v1852, %v1860
        %v1863 = vadd.f32 %v1853, %v1860
        %v1864 = vadd.f32 %v1854, %v1860
        %v1865 = vadd.f32 %v1855, %v1860
        %v1866 = vadd.f32 %v1856, %v1860
        %v1867 = vadd.f32 %v1857, %v1860
        %v1868 = vadd.f32 %v1858, %v1860
        %v1869 = vmax.f32 %v1861, 0.0
        %v1870 = vmax.f32 %v1862, 0.0
        %v1871 = vmax.f32 %v1863, 0.0
        %v1872 = vmax.f32 %v1864, 0.0
        %v1873 = vmax.f32 %v1865, 0.0
        %v1874 = vmax.f32 %v1866, 0.0
        %v1875 = vmax.f32 %v1867, 0.0
        %v1876 = vmax.f32 %v1868, 0.0
        %s1877 = sld [smem:[#allocation12 + $0x300]]
        %v1878 = vstv %s1877
        %v1879 = vmul.f32 %v1869, %v1878
        %v1880 = vmul.f32 %v1870, %v1878
        %v1881 = vmul.f32 %v1871, %v1878
        %v1882 = vmul.f32 %v1872, %v1878
        %v1883 = vmul.f32 %v1873, %v1878
        %v1884 = vmul.f32 %v1874, %v1878
        %v1885 = vmul.f32 %v1875, %v1878
        %v1886 = vmul.f32 %v1876, %v1878
        %v1887 = vadd.f32 %v1769, %v1879
        %v1888 = vadd.f32 %v1770, %v1880
        %v1889 = vadd.f32 %v1771, %v1881
        %v1890 = vadd.f32 %v1772, %v1882
        %v1891 = vadd.f32 %v1773, %v1883
        %v1892 = vadd.f32 %v1774, %v1884
        %v1893 = vadd.f32 %v1775, %v1885
        %v1894 = vadd.f32 %v1776, %v1886
        %s1895 = sld [smem:[#allocation12 + $0x301]]
        %v1896 = vstv %s1895
        %v1897 = vmul.f32 %v1869, %v1896
        %v1898 = vmul.f32 %v1870, %v1896
        %v1899 = vmul.f32 %v1871, %v1896
        %v1900 = vmul.f32 %v1872, %v1896
        %v1901 = vmul.f32 %v1873, %v1896
        %v1902 = vmul.f32 %v1874, %v1896
        %v1903 = vmul.f32 %v1875, %v1896
        %v1904 = vmul.f32 %v1876, %v1896
        %v1905 = vadd.f32 %v1787, %v1897
        %v1906 = vadd.f32 %v1788, %v1898
        %v1907 = vadd.f32 %v1789, %v1899
        %v1908 = vadd.f32 %v1790, %v1900
        %v1909 = vadd.f32 %v1791, %v1901
        %v1910 = vadd.f32 %v1792, %v1902
        %v1911 = vadd.f32 %v1793, %v1903
        %v1912 = vadd.f32 %v1794, %v1904
        %s1913 = sld [smem:[#allocation12 + $0x302]]
        %v1914 = vstv %s1913
        %v1915 = vmul.f32 %v1869, %v1914
        %v1916 = vmul.f32 %v1870, %v1914
        %v1917 = vmul.f32 %v1871, %v1914
        %v1918 = vmul.f32 %v1872, %v1914
        %v1919 = vmul.f32 %v1873, %v1914
        %v1920 = vmul.f32 %v1874, %v1914
        %v1921 = vmul.f32 %v1875, %v1914
        %v1922 = vmul.f32 %v1876, %v1914
        %v1923 = vadd.f32 %v1805, %v1915
        %v1924 = vadd.f32 %v1806, %v1916
        %v1925 = vadd.f32 %v1807, %v1917
        %v1926 = vadd.f32 %v1808, %v1918
        %v1927 = vadd.f32 %v1809, %v1919
        %v1928 = vadd.f32 %v1810, %v1920
        %v1929 = vadd.f32 %v1811, %v1921
        %v1930 = vadd.f32 %v1812, %v1922
        %s1931 = sld [smem:[#allocation9 + $0x7]]
        %v1932 = vstv %s1931
        %v1933 = vmul.f32 %v1105, %v1932
        %v1934 = vmul.f32 %v1106, %v1932
        %v1935 = vmul.f32 %v1107, %v1932
        %v1936 = vmul.f32 %v1108, %v1932
        %v1937 = vmul.f32 %v1109, %v1932
        %v1938 = vmul.f32 %v1110, %v1932
        %v1939 = vmul.f32 %v1111, %v1932
        %v1940 = vmul.f32 %v1112, %v1932
        %s1941 = sld [smem:[#allocation9 + $0x87]]
        %v1942 = vstv %s1941
        %v1943 = vmul.f32 %v1113, %v1942
        %v1944 = vmul.f32 %v1114, %v1942
        %v1945 = vmul.f32 %v1115, %v1942
        %v1946 = vmul.f32 %v1116, %v1942
        %v1947 = vmul.f32 %v1117, %v1942
        %v1948 = vmul.f32 %v1118, %v1942
        %v1949 = vmul.f32 %v1119, %v1942
        %v1950 = vmul.f32 %v1120, %v1942
        %v1951 = vadd.f32 %v1933, %v1943
        %v1952 = vadd.f32 %v1934, %v1944
        %v1953 = vadd.f32 %v1935, %v1945
        %v1954 = vadd.f32 %v1936, %v1946
        %v1955 = vadd.f32 %v1937, %v1947
        %v1956 = vadd.f32 %v1938, %v1948
        %v1957 = vadd.f32 %v1939, %v1949
        %v1958 = vadd.f32 %v1940, %v1950
        %s1959 = sld [smem:[#allocation9 + $0x107]]
        %v1960 = vstv %s1959
        %v1961 = vmul.f32 %v1121, %v1960
        %v1962 = vmul.f32 %v1122, %v1960
        %v1963 = vmul.f32 %v1123, %v1960
        %v1964 = vmul.f32 %v1124, %v1960
        %v1965 = vmul.f32 %v1125, %v1960
        %v1966 = vmul.f32 %v1126, %v1960
        %v1967 = vmul.f32 %v1127, %v1960
        %v1968 = vmul.f32 %v1128, %v1960
        %v1969 = vadd.f32 %v1951, %v1961
        %v1970 = vadd.f32 %v1952, %v1962
        %v1971 = vadd.f32 %v1953, %v1963
        %v1972 = vadd.f32 %v1954, %v1964
        %v1973 = vadd.f32 %v1955, %v1965
        %v1974 = vadd.f32 %v1956, %v1966
        %v1975 = vadd.f32 %v1957, %v1967
        %v1976 = vadd.f32 %v1958, %v1968
        %s1977 = sld [smem:[#allocation10 + $0x7]]
        %v1978 = vstv %s1977
        %v1979 = vadd.f32 %v1969, %v1978
        %v1980 = vadd.f32 %v1970, %v1978
        %v1981 = vadd.f32 %v1971, %v1978
        %v1982 = vadd.f32 %v1972, %v1978
        %v1983 = vadd.f32 %v1973, %v1978
        %v1984 = vadd.f32 %v1974, %v1978
        %v1985 = vadd.f32 %v1975, %v1978
        %v1986 = vadd.f32 %v1976, %v1978
        %v1987 = vmax.f32 %v1979, 0.0
        %v1988 = vmax.f32 %v1980, 0.0
        %v1989 = vmax.f32 %v1981, 0.0
        %v1990 = vmax.f32 %v1982, 0.0
        %v1991 = vmax.f32 %v1983, 0.0
        %v1992 = vmax.f32 %v1984, 0.0
        %v1993 = vmax.f32 %v1985, 0.0
        %v1994 = vmax.f32 %v1986, 0.0
        %s1995 = sld [smem:[#allocation12 + $0x380]]
        %v1996 = vstv %s1995
        %v1997 = vmul.f32 %v1987, %v1996
        %v1998 = vmul.f32 %v1988, %v1996
        %v1999 = vmul.f32 %v1989, %v1996
        %v2000 = vmul.f32 %v1990, %v1996
        %v2001 = vmul.f32 %v1991, %v1996
        %v2002 = vmul.f32 %v1992, %v1996
        %v2003 = vmul.f32 %v1993, %v1996
        %v2004 = vmul.f32 %v1994, %v1996
        %v2005 = vadd.f32 %v1887, %v1997
        %v2006 = vadd.f32 %v1888, %v1998
        %v2007 = vadd.f32 %v1889, %v1999
        %v2008 = vadd.f32 %v1890, %v2000
        %v2009 = vadd.f32 %v1891, %v2001
        %v2010 = vadd.f32 %v1892, %v2002
        %v2011 = vadd.f32 %v1893, %v2003
        %v2012 = vadd.f32 %v1894, %v2004
        %s2013 = sld [smem:[#allocation12 + $0x381]]
        %v2014 = vstv %s2013
        %v2015 = vmul.f32 %v1987, %v2014
        %v2016 = vmul.f32 %v1988, %v2014
        %v2017 = vmul.f32 %v1989, %v2014
        %v2018 = vmul.f32 %v1990, %v2014
        %v2019 = vmul.f32 %v1991, %v2014
        %v2020 = vmul.f32 %v1992, %v2014
        %v2021 = vmul.f32 %v1993, %v2014
        %v2022 = vmul.f32 %v1994, %v2014
        %v2023 = vadd.f32 %v1905, %v2015
        %v2024 = vadd.f32 %v1906, %v2016
        %v2025 = vadd.f32 %v1907, %v2017
        %v2026 = vadd.f32 %v1908, %v2018
        %v2027 = vadd.f32 %v1909, %v2019
        %v2028 = vadd.f32 %v1910, %v2020
        %v2029 = vadd.f32 %v1911, %v2021
        %v2030 = vadd.f32 %v1912, %v2022
        %s2031 = sld [smem:[#allocation12 + $0x382]]
        %v2032 = vstv %s2031
        %v2033 = vmul.f32 %v1987, %v2032
        %v2034 = vmul.f32 %v1988, %v2032
        %v2035 = vmul.f32 %v1989, %v2032
        %v2036 = vmul.f32 %v1990, %v2032
        %v2037 = vmul.f32 %v1991, %v2032
        %v2038 = vmul.f32 %v1992, %v2032
        %v2039 = vmul.f32 %v1993, %v2032
        %v2040 = vmul.f32 %v1994, %v2032
        %v2041 = vadd.f32 %v1923, %v2033
        %v2042 = vadd.f32 %v1924, %v2034
        %v2043 = vadd.f32 %v1925, %v2035
        %v2044 = vadd.f32 %v1926, %v2036
        %v2045 = vadd.f32 %v1927, %v2037
        %v2046 = vadd.f32 %v1928, %v2038
        %v2047 = vadd.f32 %v1929, %v2039
        %v2048 = vadd.f32 %v1930, %v2040
        %s2049 = sld [smem:[#allocation13]]
        %v2050 = vstv %s2049
        %v2051 = vadd.f32 %v2005, %v2050
        %v2052 = vadd.f32 %v2006, %v2050
        %v2053 = vadd.f32 %v2007, %v2050
        %v2054 = vadd.f32 %v2008, %v2050
        %v2055 = vadd.f32 %v2009, %v2050
        %v2056 = vadd.f32 %v2010, %v2050
        %v2057 = vadd.f32 %v2011, %v2050
        %v2058 = vadd.f32 %v2012, %v2050
        %v2059 = vtanh.pop %v2051
        %v2060 = vtanh.pop %v2052
        %v2061 = vtanh.pop %v2053
        %v2062 = vtanh.pop %v2054
        %v2063 = vtanh.pop %v2055
        %v2064 = vtanh.pop %v2056
        %v2065 = vtanh.pop %v2057
        %v2066 = vtanh.pop %v2058
        %v2067 = vmul.f32 %v2059, %v1097
        %v2068 = vmul.f32 %v2060, %v1098
        %v2069 = vmul.f32 %v2061, %v1099
        %v2070 = vmul.f32 %v2062, %v1100
        %v2071 = vmul.f32 %v2063, %v1101
        %v2072 = vmul.f32 %v2064, %v1102
        %v2073 = vmul.f32 %v2065, %v1103
        %v2074 = vmul.f32 %v2066, %v1104
        %v2075 = vadd.f32 %v519, %v2067
        %v2076 = vadd.f32 %v520, %v2068
        %v2077 = vadd.f32 %v521, %v2069
        %v2078 = vadd.f32 %v522, %v2070
        %v2079 = vadd.f32 %v523, %v2071
        %v2080 = vadd.f32 %v524, %v2072
        %v2081 = vadd.f32 %v525, %v2073
        %v2082 = vadd.f32 %v526, %v2074
        %v2083 = vmax.f32 %v2075, 0.0
        %v2084 = vmax.f32 %v2076, 0.0
        %v2085 = vmax.f32 %v2077, 0.0
        %v2086 = vmax.f32 %v2078, 0.0
        %v2087 = vmax.f32 %v2079, 0.0
        %v2088 = vmax.f32 %v2080, 0.0
        %v2089 = vmax.f32 %v2081, 0.0
        %v2090 = vmax.f32 %v2082, 0.0
        %v2091 = vmin.f32 %v2083, 1.0
        %v2092 = vmin.f32 %v2084, 1.0
        %v2093 = vmin.f32 %v2085, 1.0
        %v2094 = vmin.f32 %v2086, 1.0
        %v2095 = vmin.f32 %v2087, 1.0
        %v2096 = vmin.f32 %v2088, 1.0
        %v2097 = vmin.f32 %v2089, 1.0
        %v2098 = vmin.f32 %v2090, 1.0
        %2099 = vst.msk [vmem:[%s512] sm:$0xff] %vm641, %v2091
        %2100 = vst.msk [vmem:[%s512 + $0x8] sm:$0xff] %vm641, %v2092
        %2101 = vst.msk [vmem:[%s512 + $0x10] sm:$0xff] %vm641, %v2093
        %2102 = vst.msk [vmem:[%s512 + $0x18] sm:$0xff] %vm641, %v2094
        %2103 = vst.msk [vmem:[%s512 + $0x20] sm:$0xff] %vm641, %v2095
        %2104 = vst.msk [vmem:[%s512 + $0x28] sm:$0xff] %vm641, %v2096
        %2105 = vst.msk [vmem:[%s512 + $0x30] sm:$0xff] %vm641, %v2097
        %2106 = vst.msk [vmem:[%s512 + $0x38] sm:$0xff] %vm641, %v2098
        %s2107 = sld [smem:[#allocation13 + $0x1]]
        %v2108 = vstv %s2107
        %v2109 = vadd.f32 %v2023, %v2108
        %v2110 = vadd.f32 %v2024, %v2108
        %v2111 = vadd.f32 %v2025, %v2108
        %v2112 = vadd.f32 %v2026, %v2108
        %v2113 = vadd.f32 %v2027, %v2108
        %v2114 = vadd.f32 %v2028, %v2108
        %v2115 = vadd.f32 %v2029, %v2108
        %v2116 = vadd.f32 %v2030, %v2108
        %v2117 = vtanh.pop %v2109
        %v2118 = vtanh.pop %v2110
        %v2119 = vtanh.pop %v2111
        %v2120 = vtanh.pop %v2112
        %v2121 = vtanh.pop %v2113
        %v2122 = vtanh.pop %v2114
        %v2123 = vtanh.pop %v2115
        %v2124 = vtanh.pop %v2116
        %v2125 = vmul.f32 %v2117, %v1097
        %v2126 = vmul.f32 %v2118, %v1098
        %v2127 = vmul.f32 %v2119, %v1099
        %v2128 = vmul.f32 %v2120, %v1100
        %v2129 = vmul.f32 %v2121, %v1101
        %v2130 = vmul.f32 %v2122, %v1102
        %v2131 = vmul.f32 %v2123, %v1103
        %v2132 = vmul.f32 %v2124, %v1104
        %v2133 = vadd.f32 %v528, %v2125
        %v2134 = vadd.f32 %v529, %v2126
        %v2135 = vadd.f32 %v530, %v2127
        %v2136 = vadd.f32 %v531, %v2128
        %v2137 = vadd.f32 %v532, %v2129
        %v2138 = vadd.f32 %v533, %v2130
        %v2139 = vadd.f32 %v534, %v2131
        %v2140 = vadd.f32 %v535, %v2132
        %v2141 = vmax.f32 %v2133, 0.0
        %v2142 = vmax.f32 %v2134, 0.0
        %v2143 = vmax.f32 %v2135, 0.0
        %v2144 = vmax.f32 %v2136, 0.0
        %v2145 = vmax.f32 %v2137, 0.0
        %v2146 = vmax.f32 %v2138, 0.0
        %v2147 = vmax.f32 %v2139, 0.0
        %v2148 = vmax.f32 %v2140, 0.0
        %v2149 = vmin.f32 %v2141, 1.0
        %v2150 = vmin.f32 %v2142, 1.0
        %v2151 = vmin.f32 %v2143, 1.0
        %v2152 = vmin.f32 %v2144, 1.0
        %v2153 = vmin.f32 %v2145, 1.0
        %v2154 = vmin.f32 %v2146, 1.0
        %v2155 = vmin.f32 %v2147, 1.0
        %v2156 = vmin.f32 %v2148, 1.0
        %s2157 = scalar_lea.vmem %s512, 64 [#allocation15]
        %2158 = vst.msk [vmem:[%s2157] sm:$0xff] %vm641, %v2149
        %2159 = vst.msk [vmem:[%s2157 + $0x8] sm:$0xff] %vm641, %v2150
        %2160 = vst.msk [vmem:[%s2157 + $0x10] sm:$0xff] %vm641, %v2151
        %2161 = vst.msk [vmem:[%s2157 + $0x18] sm:$0xff] %vm641, %v2152
        %2162 = vst.msk [vmem:[%s2157 + $0x20] sm:$0xff] %vm641, %v2153
        %2163 = vst.msk [vmem:[%s2157 + $0x28] sm:$0xff] %vm641, %v2154
        %2164 = vst.msk [vmem:[%s2157 + $0x30] sm:$0xff] %vm641, %v2155
        %2165 = vst.msk [vmem:[%s2157 + $0x38] sm:$0xff] %vm641, %v2156
        %s2166 = sld [smem:[#allocation13 + $0x2]]
        %v2167 = vstv %s2166
        %v2168 = vadd.f32 %v2041, %v2167
        %v2169 = vadd.f32 %v2042, %v2167
        %v2170 = vadd.f32 %v2043, %v2167
        %v2171 = vadd.f32 %v2044, %v2167
        %v2172 = vadd.f32 %v2045, %v2167
        %v2173 = vadd.f32 %v2046, %v2167
        %v2174 = vadd.f32 %v2047, %v2167
        %v2175 = vadd.f32 %v2048, %v2167
        %v2176 = vtanh.pop %v2168
        %v2177 = vtanh.pop %v2169
        %v2178 = vtanh.pop %v2170
        %v2179 = vtanh.pop %v2171
        %v2180 = vtanh.pop %v2172
        %v2181 = vtanh.pop %v2173
        %v2182 = vtanh.pop %v2174
        %v2183 = vtanh.pop %v2175
        %v2184 = vmul.f32 %v2176, %v1097
        %v2185 = vmul.f32 %v2177, %v1098
        %v2186 = vmul.f32 %v2178, %v1099
        %v2187 = vmul.f32 %v2179, %v1100
        %v2188 = vmul.f32 %v2180, %v1101
        %v2189 = vmul.f32 %v2181, %v1102
        %v2190 = vmul.f32 %v2182, %v1103
        %v2191 = vmul.f32 %v2183, %v1104
        %v2192 = vadd.f32 %v537, %v2184
        %v2193 = vadd.f32 %v538, %v2185
        %v2194 = vadd.f32 %v539, %v2186
        %v2195 = vadd.f32 %v540, %v2187
        %v2196 = vadd.f32 %v541, %v2188
        %v2197 = vadd.f32 %v542, %v2189
        %v2198 = vadd.f32 %v543, %v2190
        %v2199 = vadd.f32 %v544, %v2191
        %v2200 = vmax.f32 %v2192, 0.0
        %v2201 = vmax.f32 %v2193, 0.0
        %v2202 = vmax.f32 %v2194, 0.0
        %v2203 = vmax.f32 %v2195, 0.0
        %v2204 = vmax.f32 %v2196, 0.0
        %v2205 = vmax.f32 %v2197, 0.0
        %v2206 = vmax.f32 %v2198, 0.0
        %v2207 = vmax.f32 %v2199, 0.0
        %v2208 = vmin.f32 %v2200, 1.0
        %v2209 = vmin.f32 %v2201, 1.0
        %v2210 = vmin.f32 %v2202, 1.0
        %v2211 = vmin.f32 %v2203, 1.0
        %v2212 = vmin.f32 %v2204, 1.0
        %v2213 = vmin.f32 %v2205, 1.0
        %v2214 = vmin.f32 %v2206, 1.0
        %v2215 = vmin.f32 %v2207, 1.0
        %s2216 = scalar_lea.vmem %s512, 128 [#allocation15]
        %2217 = vst.msk [vmem:[%s2216] sm:$0xff] %vm641, %v2208
        %2218 = vst.msk [vmem:[%s2216 + $0x8] sm:$0xff] %vm641, %v2209
        %2219 = vst.msk [vmem:[%s2216 + $0x10] sm:$0xff] %vm641, %v2210
        %2220 = vst.msk [vmem:[%s2216 + $0x18] sm:$0xff] %vm641, %v2211
        %2221 = vst.msk [vmem:[%s2216 + $0x20] sm:$0xff] %vm641, %v2212
        %2222 = vst.msk [vmem:[%s2216 + $0x28] sm:$0xff] %vm641, %v2213
        %2223 = vst.msk [vmem:[%s2216 + $0x30] sm:$0xff] %vm641, %v2214
        %2224 = vst.msk [vmem:[%s2216 + $0x38] sm:$0xff] %vm641, %v2215
        %s2225 = sand.u32 %s319, 1
        %s2226 = scalar_lea.sflag [#allocation5], %s2225
        %s2227 = sand.u32 %s319, 1
        %s2228 = smul.addr %s2227, 192
        %s2229 = scalar_lea.vmem [#allocation15], %s2228
        // Predicated region
        $region97: #{inference_forward.5} parent=71 // pred_check
          %p2230 = pneg %p329
        $region98: #{inference_forward.5} parent=71 // pred_check_branch
          %2232 = sbr.rel (%p2230) target = $region100
        $region99: #{inference_forward.5} parent=71 // pred_region
          %s2234 = ssub.s32 3072, 3072
          %2235 = vsyncadd %s2226, %s2234
          %s2236 = smul.addr %s33, 24
          %s2237 = smul.addr %s2236, 128
          %s2238 = scalar_lea.hbm %s13, %s2237
          %s2239 = sshll.u32 %s2229, 4
          %s2240 = int_to_ptr.vmem [resolvable:$true] %s2239
          %2245 = dma.vmem_to_hbm [thread:$0]  %s2240, 3072, %s2238, %s2226, 128, 128, 8
        $region100: #{inference_forward.5} parent=71 // pred_fallthru
          _
      $region72: #{inference_forward.5} parent=5 // pred_fallthru
        _
      %p2246 = scmp.le.s32.totalorder 2, %s28
      // Predicated region
      $region101: #{inference_forward.5} parent=5 // pred_check
        %p2247 = pneg %p2246
      $region102: #{inference_forward.5} parent=5 // pred_check_branch
        %2249 = sbr.rel (%p2247) target = $region104
      $region103: #{inference_forward.5} parent=5 // pred_region
        %s2250 = ssub.s32 %s28, 2
        // Predicated region
        $region105: #{inference_forward.5} parent=103 // pred_check
          %p2251 = pneg %p335
        $region106: #{inference_forward.5} parent=103 // pred_check_branch
          %2253 = sbr.rel (%p2251) target = $region108
        $region107: #{inference_forward.5} parent=103 // pred_region
          %s2254 = sand.u32 %s320, 1
          %s2255 = scalar_lea.sflag [#allocation5], %s2254
          %s2256 = sand.u32 %s320, 1
          %s2257 = smul.addr %s2256, 192
          %s2258 = scalar_lea.vmem [#allocation15], %s2257
          %2259 = dma.done %s2255, 3072
        $region108: #{inference_forward.5} parent=103 // pred_fallthru
          _
      $region104: #{inference_forward.5} parent=5 // pred_fallthru
        _
    $region6: #{inference_forward.5} parent=1 // loop_footer
      %s32 = sadd.s32 1, %s28
    $region7: #{inference_forward.5} parent=1 // loop_footer_branch
      %27 = sbr.rel target = $region3
    $region8: #{inference_forward.5} parent=1 // loop_exit
      _
    %2260 = vsyncpa [#allocation5], 1
    %s2261 = scalar_lea.sflag [#allocation5], 1
    %2262 = vsyncpa %s2261, 1
    %2263 = vsyncpa [#allocation6], 1
    %s2264 = scalar_lea.sflag [#allocation6], 1
    %2265 = vsyncpa %s2264, 1
    %2266 = vsyncpa [#allocation8], 1
    %2267 = vsyncpa [#allocation11], 1
    %2268 = vsyncpa [#allocation14], 1

</llo_original>
